<compile_context>
chip_gen: v6e
topology: v6e:2x2x1
jax: 0.10.0
libtpu: 0.0.40
codegen_flags: <defaults>
</compile_context>

<pallas_src>
import functools

import jax
import jax.numpy as jnp
from jax.experimental import pallas as pl
from jax.experimental.pallas import tpu as pltpu

EPS = 1e-5                      # nn.LayerNorm default eps
VMEM_LIMIT = 48 * 1024 * 1024   # sized for v7x (64 MiB physical); fine on v5e/v6e


def _ln(x, g, b):
    # PyTorch LayerNorm: biased variance over last dim, eps inside sqrt.
    mu = jnp.mean(x, axis=-1, keepdims=True)
    var = jnp.mean((x - mu) ** 2, axis=-1, keepdims=True)
    return (x - mu) * jax.lax.rsqrt(var + EPS) * g + b


# ---------------------------------------------------------------- kernels ---

def layernorm_kernel(x_ref, g_ref, b_ref, o_ref):
    # Fallback LN1 kernel (only used when window padding prevents fusing LN
    # into the attention kernel).
    x = x_ref[0].astype(jnp.float32)                 # (TS, C)
    o_ref[0] = _ln(x, g_ref[...], b_ref[...]).astype(o_ref.dtype)


def attn_kernel(x_ref, ln_g_ref, ln_b_ref, wqkv_ref, bqkv_ref,
                wproj_ref, bproj_ref, o_ref, *, num_heads, apply_ln,
                compute_dtype):
    x = x_ref[0].astype(jnp.float32)                 # (S, C)
    if apply_ln:
        # LN1 fused here (per-token over C, commutes with window_partition).
        x = _ln(x, ln_g_ref[...], ln_b_ref[...])
    S, C = x.shape
    hd = C // num_heads

    # qkv projection; 1/sqrt(hd) is already folded into the q columns/bias.
    qkv = jnp.dot(x.astype(compute_dtype), wqkv_ref[...].astype(compute_dtype),
                  preferred_element_type=jnp.float32) + bqkv_ref[...]     # (S, 3C)
    q = qkv[:, :C].reshape(S, num_heads, hd)
    k = qkv[:, C:2 * C].reshape(S, num_heads, hd)
    v = qkv[:, 2 * C:].reshape(S, num_heads, hd)

    # Batched-head attention: one MXU contraction per stage (no per-head
    # Python loop, no concatenate, no per-head lane relayouts).
    scores = jnp.einsum("qhd,khd->hqk",
                        q.astype(compute_dtype), k.astype(compute_dtype),
                        preferred_element_type=jnp.float32)               # (nh, S, S)

    # Explicit softmax: exp goes to the EUP slot; multiply by reciprocal
    # instead of dividing.  (approx=True would also move the reciprocal to the
    # EUP but loosens numerics — keep exact to match the f32 reference.)
    m = jnp.max(scores, axis=-1, keepdims=True)
    e = jnp.exp(scores - m)
    denom = jnp.sum(e, axis=-1, keepdims=True)
    probs = e * pl.reciprocal(denom, approx=False)

    o = jnp.einsum("hqk,khd->qhd",
                   probs.astype(compute_dtype), v.astype(compute_dtype),
                   preferred_element_type=jnp.float32).reshape(S, C)      # head-major

    o = jnp.dot(o.astype(compute_dtype), wproj_ref[...].astype(compute_dtype),
                preferred_element_type=jnp.float32) + bproj_ref[...]
    o_ref[0] = o.astype(o_ref.dtype)


def mlp_residual_kernel(short_ref, attn_ref, g_ref, b_ref,
                        w1_ref, b1_ref, w2_ref, b2_ref, o_ref, *, compute_dtype):
    x = short_ref[0].astype(jnp.float32) + attn_ref[0].astype(jnp.float32)  # residual 1
    h = _ln(x, g_ref[...], b_ref[...])
    h = jnp.dot(h.astype(compute_dtype), w1_ref[...].astype(compute_dtype),
                preferred_element_type=jnp.float32) + b1_ref[...]
    h = jax.nn.gelu(h, approximate=False)            # exact erf == nn.GELU() default
    h = jnp.dot(h.astype(compute_dtype), w2_ref[...].astype(compute_dtype),
                preferred_element_type=jnp.float32) + b2_ref[...]
    o_ref[0] = (x + h).astype(o_ref.dtype)           # residual 2


# ------------------------------------------------------------------- glue ---

def window_partition_jax(x, ws):
    B, H, W, C = x.shape
    pad_h = (ws - H % ws) % ws
    pad_w = (ws - W % ws) % ws
    if pad_h > 0 or pad_w > 0:
        x = jnp.pad(x, ((0, 0), (0, pad_h), (0, pad_w), (0, 0)))
    Hp, Wp = H + pad_h, W + pad_w
    x = x.reshape(B, Hp // ws, ws, Wp // ws, ws, C)
    windows = x.transpose(0, 1, 3, 2, 4, 5).reshape(-1, ws, ws, C)
    return windows, (Hp, Wp)


def window_unpartition_jax(windows, ws, pad_hw, hw):
    Hp, Wp = pad_hw
    H, W = hw
    B = windows.shape[0] // (Hp * Wp // ws // ws)
    x = windows.reshape(B, Hp // ws, Wp // ws, ws, ws, -1)
    x = x.transpose(0, 1, 3, 2, 4, 5).reshape(B, Hp, Wp, -1)
    return x[:, :H, :W, :]


def _pick_seq_tile(S, max_tile=512):
    """Largest sequence tile <= max_tile that divides S and keeps the
    second-to-last block dim a multiple of 8 (or the full extent)."""
    if S <= max_tile:
        return S
    for ts in range(max_tile, 7, -1):
        if S % ts == 0 and ts % 8 == 0:
            return ts
    return S


def _const_spec(shape, grid_rank):
    zeros = (0,) * len(shape)
    if grid_rank == 1:
        return pl.BlockSpec(shape, lambda i: zeros)
    return pl.BlockSpec(shape, lambda i, j: zeros)


def prepare_kernel_params(p, num_heads):
    """One-time weight prep: fold 1/sqrt(head_dim) into the q columns of the
    qkv projection so the kernel never multiplies q by the scale."""
    C = p["w_qkv"].shape[0]
    hd = C // num_heads
    scale = hd ** (-0.5)
    q = dict(p)
    q["w_qkv"] = jnp.concatenate([p["w_qkv"][:, :C] * scale, p["w_qkv"][:, C:]], axis=1)
    q["b_qkv"] = jnp.concatenate([p["b_qkv"][:, :C] * scale, p["b_qkv"][:, C:]], axis=1)
    return q


def encoder_block_forward(x, p, *, num_heads, window_size=0,
                          compute_dtype=jnp.float32):
    """p must come from prepare_kernel_params (scale folded into w_qkv/b_qkv)."""
    B, H, W, C = x.shape
    S_full = H * W
    M = p["w_fc1"].shape[1]
    shortcut = x.reshape(B, S_full, C)

    cparams1 = pltpu.CompilerParams(dimension_semantics=("parallel",),
                                    vmem_limit_bytes=VMEM_LIMIT)
    cparams2 = pltpu.CompilerParams(dimension_semantics=("parallel", "parallel"),
                                    vmem_limit_bytes=VMEM_LIMIT)

    def row_spec_1(S):   # grid (N,)
        return pl.BlockSpec((1, S, C), lambda i: (i, 0, 0))

    def row_spec_2(TS):  # grid (B, nS)
        return pl.BlockSpec((1, TS, C), lambda b, s: (b, s, 0))

    TS = _pick_seq_tile(S_full)
    nS = S_full // TS

    # LN1 fuses into the attention kernel unless window padding is needed
    # (PyTorch pads *after* LN, so padded tokens must stay exactly zero).
    needs_pad = window_size > 0 and (H % window_size != 0 or W % window_size != 0)
    fuse_ln = not needs_pad

    if fuse_ln:
        x_for_attn = x                      # raw input; LN applied in attn kernel
    else:
        xn = pl.pallas_call(
            layernorm_kernel,
            grid=(B, nS),
            in_specs=[row_spec_2(TS), _const_spec((1, C), 2), _const_spec((1, C), 2)],
            out_specs=row_spec_2(TS),
            out_shape=jax.ShapeDtypeStruct((B, S_full, C), jnp.float32),
            compiler_params=cparams2,
        )(shortcut, p["ln1_g"], p["ln1_b"])
        x_for_attn = xn.reshape(B, H, W, C)

    # --- window partition (pure reshape/pad glue) ----------------------------
    if window_size > 0:
        xw, pad_hw = window_partition_jax(x_for_attn, window_size)
        hh = ww = window_size
    else:
        xw, pad_hw = x_for_attn, (H, W)
        hh, ww = H, W
    Bn = xw.shape[0]
    S = hh * ww
    xw = xw.reshape(Bn, S, C)

    # --- fused (LN1 +) attention ---------------------------------------------
    attn = pl.pallas_call(
        functools.partial(attn_kernel, num_heads=num_heads,
                          apply_ln=fuse_ln, compute_dtype=compute_dtype),
        grid=(Bn,),
        in_specs=[row_spec_1(S),
                  _const_spec((1, C), 1), _const_spec((1, C), 1),
                  _const_spec((C, 3 * C), 1), _const_spec((1, 3 * C), 1),
                  _const_spec((C, C), 1), _const_spec((1, C), 1)],
        out_specs=row_spec_1(S),
        out_shape=jax.ShapeDtypeStruct((Bn, S, C), jnp.float32),
        compiler_params=cparams1,
    )(xw, p["ln1_g"], p["ln1_b"], p["w_qkv"], p["b_qkv"], p["w_proj"], p["b_proj"])
    attn = attn.reshape(Bn, hh, ww, C)

    if window_size > 0:
        attn = window_unpartition_jax(attn, window_size, pad_hw, (H, W))
    attn = attn.reshape(B, S_full, C)

    # --- residual1 + LN2 + MLP + residual2, tiled over the sequence ----------
    out = pl.pallas_call(
        functools.partial(mlp_residual_kernel, compute_dtype=compute_dtype),
        grid=(B, nS),
        in_specs=[row_spec_2(TS), row_spec_2(TS),
                  _const_spec((1, C), 2), _const_spec((1, C), 2),
                  _const_spec((C, M), 2), _const_spec((1, M), 2),
                  _const_spec((M, C), 2), _const_spec((1, C), 2)],
        out_specs=row_spec_2(TS),
        out_shape=jax.ShapeDtypeStruct((B, S_full, C), jnp.float32),
        compiler_params=cparams2,
    )(shortcut, attn, p["ln2_g"], p["ln2_b"],
      p["w_fc1"], p["b_fc1"], p["w_fc2"], p["b_fc2"])

    return out.reshape(B, H, W, C)


# ------------------------------------------------------- pure-JAX reference --

def ref_forward(x, p, *, num_heads, window_size=0):
    B, H, W, C = x.shape
    shortcut = x
    xn = _ln(x, p["ln1_g"][0], p["ln1_b"][0])
    if window_size > 0:
        xw, pad_hw = window_partition_jax(xn, window_size)
        hh = ww = window_size
    else:
        xw, pad_hw = xn, (H, W)
        hh, ww = H, W
    Bn = xw.shape[0]
    S = hh * ww
    hd = C // num_heads
    scale = hd ** (-0.5)

    qkv = xw.reshape(Bn, S, C) @ p["w_qkv"] + p["b_qkv"][0]
    qkv = qkv.reshape(Bn, S, 3, num_heads, hd).transpose(2, 0, 3, 1, 4)
    q, k, v = qkv[0], qkv[1], qkv[2]                       # (Bn, nh, S, hd)
    a = jax.nn.softmax((q * scale) @ jnp.swapaxes(k, -2, -1), axis=-1)
    o = (a @ v).transpose(0, 2, 1, 3).reshape(Bn, hh, ww, C)
    o = o @ p["w_proj"] + p["b_proj"][0]

    if window_size > 0:
        o = window_unpartition_jax(o, window_size, pad_hw, (H, W))

    x1 = shortcut + o
    h = _ln(x1, p["ln2_g"][0], p["ln2_b"][0])
    h = jax.nn.gelu(h @ p["w_fc1"] + p["b_fc1"][0], approximate=False)
    h = h @ p["w_fc2"] + p["b_fc2"][0]
    return x1 + h


# ------------------------------------------------------------------- main ---

if __name__ == "__main__":
    B, H, W, C = 2, 8, 8, 32
    num_heads = 4
    mlp_dim = 4 * C

    key = jax.random.PRNGKey(0)
    ks = jax.random.split(key, 13)
    f32 = jnp.float32
    x = jax.random.normal(ks[0], (B, H, W, C), f32)

    # Weights stored (in_features, out_features); equivalent to torch Linear W^T.
    params = {
        "ln1_g": 1.0 + 0.1 * jax.random.normal(ks[1], (1, C), f32),
        "ln1_b": 0.1 * jax.random.normal(ks[2], (1, C), f32),
        "w_qkv": 0.05 * jax.random.normal(ks[3], (C, 3 * C), f32),
        "b_qkv": 0.05 * jax.random.normal(ks[4], (1, 3 * C), f32),
        "w_proj": 0.05 * jax.random.normal(ks[5], (C, C), f32),
        "b_proj": 0.05 * jax.random.normal(ks[6], (1, C), f32),
        "ln2_g": 1.0 + 0.1 * jax.random.normal(ks[7], (1, C), f32),
        "ln2_b": 0.1 * jax.random.normal(ks[8], (1, C), f32),
        "w_fc1": 0.05 * jax.random.normal(ks[9], (C, mlp_dim), f32),
        "b_fc1": 0.05 * jax.random.normal(ks[10], (1, mlp_dim), f32),
        "w_fc2": 0.05 * jax.random.normal(ks[11], (mlp_dim, C), f32),
        "b_fc2": 0.05 * jax.random.normal(ks[12], (1, C), f32),
    }

    # One-time parameter preparation (attention scale folded into w_qkv/b_qkv).
    kparams = prepare_kernel_params(params, num_heads)

    # --- global attention (window_size=0), f32 -------------------------------
    out = encoder_block_forward(x, kparams, num_heads=num_heads, window_size=0)
    out = jax.block_until_ready(out)
    ref = ref_forward(x, params, num_heads=num_heads, window_size=0)
    err = float(jnp.max(jnp.abs(out - ref)))
    assert out.shape == (B, H, W, C), out.shape
    assert err < 1e-4, f"global f32 max abs err {err}"

    # --- windowed, ws divides H/W (fused-LN path), f32 ------------------------
    out_w = encoder_block_forward(x, kparams, num_heads=num_heads, window_size=4)
    out_w = jax.block_until_ready(out_w)
    ref_w = ref_forward(x, params, num_heads=num_heads, window_size=4)
    err_w = float(jnp.max(jnp.abs(out_w - ref_w)))
    assert err_w < 1e-4, f"windowed f32 max abs err {err_w}"

    # --- windowed with padding (standalone-LN fallback path), f32 -------------
    out_p = encoder_block_forward(x, kparams, num_heads=num_heads, window_size=3)
    out_p = jax.block_until_ready(out_p)
    ref_p = ref_forward(x, params, num_heads=num_heads, window_size=3)
    err_p = float(jnp.max(jnp.abs(out_p - ref_p)))
    assert err_p < 1e-4, f"padded-window f32 max abs err {err_p}"

    # --- bf16 matmul inputs, f32 accumulation (loose tolerance vs f32 ref) ----
    out_bf = encoder_block_forward(x, kparams, num_heads=num_heads, window_size=0,
                                   compute_dtype=jnp.bfloat16)
    out_bf = jax.block_until_ready(out_bf)
    assert bool(jnp.all(jnp.isfinite(out_bf)))
    err_bf = float(jnp.max(jnp.abs(out_bf - ref)))
    assert err_bf < 0.5, f"bf16 max abs err {err_bf}"

    print("KERNEL_OK")
</pallas_src>

<mosaic_0001>
module attributes {stable_mosaic.version = 11 : i64} {
  func.func @attn_kernel(%arg0: i32, %arg1: memref<1x64x32xf32, #tpu.memory_space<vmem>>, %arg2: memref<1x32xf32, #tpu.memory_space<vmem>>, %arg3: memref<1x32xf32, #tpu.memory_space<vmem>>, %arg4: memref<32x96xf32, #tpu.memory_space<vmem>>, %arg5: memref<1x96xf32, #tpu.memory_space<vmem>>, %arg6: memref<32x32xf32, #tpu.memory_space<vmem>>, %arg7: memref<1x32xf32, #tpu.memory_space<vmem>>, %arg8: memref<1x64x32xf32, #tpu.memory_space<vmem>>) attributes {dimension_semantics = [#tpu.dimension_semantics<parallel>], iteration_bounds = array<i64: 2>, scalar_prefetch = 0 : i64, scratch_operands = 0 : i64, tpu.core_type = #tpu.core_type<tc>, window_params = [{transform_indices = @transform_0, window_bounds = array<i64: 1, 64, 32>}, {pipeline_mode = #tpu.pipeline_mode<synchronous>, transform_indices = @transform_1, window_bounds = array<i64: 1, 32>}, {pipeline_mode = #tpu.pipeline_mode<synchronous>, transform_indices = @transform_2, window_bounds = array<i64: 1, 32>}, {pipeline_mode = #tpu.pipeline_mode<synchronous>, transform_indices = @transform_3, window_bounds = array<i64: 32, 96>}, {pipeline_mode = #tpu.pipeline_mode<synchronous>, transform_indices = @transform_4, window_bounds = array<i64: 1, 96>}, {pipeline_mode = #tpu.pipeline_mode<synchronous>, transform_indices = @transform_5, window_bounds = array<i64: 32, 32>}, {pipeline_mode = #tpu.pipeline_mode<synchronous>, transform_indices = @transform_6, window_bounds = array<i64: 1, 32>}, {transform_indices = @transform_7, window_bounds = array<i64: 1, 64, 32>}]} {
    %c0 = arith.constant 0 : index
    %c0_0 = arith.constant 0 : index
    %c0_1 = arith.constant 0 : index
    %0 = vector.load %arg1[%c0, %c0_0, %c0_1] : memref<1x64x32xf32, #tpu.memory_space<vmem>>, vector<1x64x32xf32>
    %1 = vector.shape_cast %0 : vector<1x64x32xf32> to vector<64x32xf32>
    %c0_2 = arith.constant 0 : index
    %c0_3 = arith.constant 0 : index
    %2 = vector.load %arg2[%c0_2, %c0_3] : memref<1x32xf32, #tpu.memory_space<vmem>>, vector<1x32xf32>
    %c0_4 = arith.constant 0 : index
    %c0_5 = arith.constant 0 : index
    %3 = vector.load %arg3[%c0_4, %c0_5] : memref<1x32xf32, #tpu.memory_space<vmem>>, vector<1x32xf32>
    %cst = arith.constant dense<0.000000e+00> : vector<64xf32>
    %4 = vector.multi_reduction <add>, %1, %cst [1] : vector<64x32xf32> to vector<64xf32>
    %5 = vector.shape_cast %4 : vector<64xf32> to vector<64x1xf32>
    %cst_6 = arith.constant 3.200000e+01 : f32
    %6 = vector.broadcast %cst_6 : f32 to vector<64x1xf32>
    %7 = arith.divf %5, %6 : vector<64x1xf32>
    %8 = vector.broadcast %7 : vector<64x1xf32> to vector<64x32xf32>
    %9 = arith.subf %1, %8 : vector<64x32xf32>
    %10 = arith.mulf %9, %9 : vector<64x32xf32>
    %cst_7 = arith.constant dense<0.000000e+00> : vector<64xf32>
    %11 = vector.multi_reduction <add>, %10, %cst_7 [1] : vector<64x32xf32> to vector<64xf32>
    %12 = vector.shape_cast %11 : vector<64xf32> to vector<64x1xf32>
    %cst_8 = arith.constant 3.200000e+01 : f32
    %13 = vector.broadcast %cst_8 : f32 to vector<64x1xf32>
    %14 = arith.divf %12, %13 : vector<64x1xf32>
    %15 = vector.broadcast %7 : vector<64x1xf32> to vector<64x32xf32>
    %16 = arith.subf %1, %15 : vector<64x32xf32>
    %cst_9 = arith.constant 9.99999974E-6 : f32
    %17 = vector.broadcast %cst_9 : f32 to vector<64x1xf32>
    %18 = arith.addf %14, %17 : vector<64x1xf32>
    %19 = math.rsqrt %18 : vector<64x1xf32>
    %20 = vector.broadcast %19 : vector<64x1xf32> to vector<64x32xf32>
    %21 = arith.mulf %16, %20 : vector<64x32xf32>
    %22 = vector.broadcast %2 : vector<1x32xf32> to vector<64x32xf32>
    %23 = arith.mulf %21, %22 : vector<64x32xf32>
    %24 = vector.broadcast %3 : vector<1x32xf32> to vector<64x32xf32>
    %25 = arith.addf %23, %24 : vector<64x32xf32>
    %c0_10 = arith.constant 0 : index
    %c0_11 = arith.constant 0 : index
    %26 = vector.load %arg4[%c0_10, %c0_11] : memref<32x96xf32, #tpu.memory_space<vmem>>, vector<32x96xf32>
    %cst_12 = arith.constant dense<0.000000e+00> : vector<64x96xf32>
    %27 = tpu.matmul %25, %26, %cst_12 {dimension_numbers = #tpu.dot_dimension_numbers<[1], [0], [0], [1], [0, 0, 1, 1], [], []>} : vector<64x32xf32>, vector<32x96xf32>, vector<64x96xf32> -> vector<64x96xf32>
    %c0_13 = arith.constant 0 : index
    %c0_14 = arith.constant 0 : index
    %28 = vector.load %arg5[%c0_13, %c0_14] : memref<1x96xf32, #tpu.memory_space<vmem>>, vector<1x96xf32>
    %29 = vector.broadcast %28 : vector<1x96xf32> to vector<64x96xf32>
    %30 = arith.addf %27, %29 : vector<64x96xf32>
    %31 = vector.extract_strided_slice %30 {offsets = [0, 0], sizes = [64, 32], strides = [1, 1]} : vector<64x96xf32> to vector<64x32xf32>
    %32 = vector.shape_cast %31 : vector<64x32xf32> to vector<64x4x8xf32>
    %33 = vector.extract_strided_slice %30 {offsets = [0, 32], sizes = [64, 32], strides = [1, 1]} : vector<64x96xf32> to vector<64x32xf32>
    %34 = vector.shape_cast %33 : vector<64x32xf32> to vector<64x4x8xf32>
    %35 = vector.extract_strided_slice %30 {offsets = [0, 64], sizes = [64, 32], strides = [1, 1]} : vector<64x96xf32> to vector<64x32xf32>
    %36 = vector.shape_cast %35 : vector<64x32xf32> to vector<64x4x8xf32>
    "tpu.trace_start"() <{level = 10 : i32, message = "qhd,khd->hqk"}> : () -> ()
    %cst_15 = arith.constant dense<0.000000e+00> : vector<4x64x64xf32>
    %37 = tpu.matmul %32, %34, %cst_15 {dimension_numbers = #tpu.dot_dimension_numbers<[2], [2], [0], [0], [0, 1, 0, 0, 1, 0], [1], [1]>} : vector<64x4x8xf32>, vector<64x4x8xf32>, vector<4x64x64xf32> -> vector<4x64x64xf32>
    "tpu.trace_stop"() : () -> ()
    %cst_16 = arith.constant dense<0xFF800000> : vector<4x64xf32>
    %38 = vector.multi_reduction <maximumf>, %37, %cst_16 [2] : vector<4x64x64xf32> to vector<4x64xf32>
    %39 = vector.shape_cast %38 : vector<4x64xf32> to vector<4x64x1xf32>
    %40 = vector.broadcast %39 : vector<4x64x1xf32> to vector<4x64x64xf32>
    %41 = arith.subf %37, %40 : vector<4x64x64xf32>
    %42 = math.exp %41 : vector<4x64x64xf32>
    %cst_17 = arith.constant dense<0.000000e+00> : vector<4x64xf32>
    %43 = vector.multi_reduction <add>, %42, %cst_17 [2] : vector<4x64x64xf32> to vector<4x64xf32>
    %44 = vector.shape_cast %43 : vector<4x64xf32> to vector<4x64x1xf32>
    %45 = tpu.reciprocal %44 : vector<4x64x1xf32> -> vector<4x64x1xf32>
    %46 = vector.broadcast %45 : vector<4x64x1xf32> to vector<4x64x64xf32>
    %47 = arith.mulf %42, %46 : vector<4x64x64xf32>
    "tpu.trace_start"() <{level = 10 : i32, message = "hqk,khd->qhd"}> : () -> ()
    %cst_18 = arith.constant dense<0.000000e+00> : vector<4x8x64xf32>
    %48 = tpu.matmul %36, %47, %cst_18 {dimension_numbers = #tpu.dot_dimension_numbers<[0], [2], [2], [1], [0, 1, 0, 2, 1, 1], [1], [0]>} : vector<64x4x8xf32>, vector<4x64x64xf32>, vector<4x8x64xf32> -> vector<4x8x64xf32>
    %49 = tpu.transpose %48, [2, 0, 1] : vector<4x8x64xf32> -> vector<64x4x8xf32>
    "tpu.trace_stop"() : () -> ()
    %50 = vector.shape_cast %49 : vector<64x4x8xf32> to vector<64x32xf32>
    %c0_19 = arith.constant 0 : index
    %c0_20 = arith.constant 0 : index
    %51 = vector.load %arg6[%c0_19, %c0_20] : memref<32x32xf32, #tpu.memory_space<vmem>>, vector<32x32xf32>
    %cst_21 = arith.constant dense<0.000000e+00> : vector<64x32xf32>
    %52 = tpu.matmul %50, %51, %cst_21 {dimension_numbers = #tpu.dot_dimension_numbers<[1], [0], [0], [1], [0, 0, 1, 1], [], []>} : vector<64x32xf32>, vector<32x32xf32>, vector<64x32xf32> -> vector<64x32xf32>
    %c0_22 = arith.constant 0 : index
    %c0_23 = arith.constant 0 : index
    %53 = vector.load %arg7[%c0_22, %c0_23] : memref<1x32xf32, #tpu.memory_space<vmem>>, vector<1x32xf32>
    %54 = vector.broadcast %53 : vector<1x32xf32> to vector<64x32xf32>
    %55 = arith.addf %52, %54 : vector<64x32xf32>
    %c0_24 = arith.constant 0 : index
    %c0_25 = arith.constant 0 : index
    %c0_26 = arith.constant 0 : index
    %56 = vector.load %arg8[%c0_24, %c0_25, %c0_26] : memref<1x64x32xf32, #tpu.memory_space<vmem>>, vector<1x64x32xf32>
    %57 = vector.shape_cast %56 : vector<1x64x32xf32> to vector<64x32xf32>
    %58 = vector.shape_cast %55 : vector<64x32xf32> to vector<1x64x32xf32>
    tpu.vector_store %arg8[%c0_24, %c0_25, %c0_26], %58 {strides = array<i32>} : memref<1x64x32xf32, #tpu.memory_space<vmem>>, vector<1x64x32xf32>,
    return
  }
  func.func @transform_0(%arg0: i32) -> (i32, i32, i32) {
    %c0_i32 = arith.constant 0 : i32
    %c0_i32_0 = arith.constant 0 : i32
    %c0_i32_1 = arith.constant 0 : i32
    return %arg0, %c0_i32, %c0_i32_0 : i32, i32, i32
  }
  func.func @transform_1(%arg0: i32) -> (i32, i32) {
    %c0_i32 = arith.constant 0 : i32
    %c0_i32_0 = arith.constant 0 : i32
    %c0_i32_1 = arith.constant 0 : i32
    return %c0_i32, %c0_i32_0 : i32, i32
  }
  func.func @transform_2(%arg0: i32) -> (i32, i32) {
    %c0_i32 = arith.constant 0 : i32
    %c0_i32_0 = arith.constant 0 : i32
    %c0_i32_1 = arith.constant 0 : i32
    return %c0_i32, %c0_i32_0 : i32, i32
  }
  func.func @transform_3(%arg0: i32) -> (i32, i32) {
    %c0_i32 = arith.constant 0 : i32
    %c0_i32_0 = arith.constant 0 : i32
    %c0_i32_1 = arith.constant 0 : i32
    return %c0_i32, %c0_i32_0 : i32, i32
  }
  func.func @transform_4(%arg0: i32) -> (i32, i32) {
    %c0_i32 = arith.constant 0 : i32
    %c0_i32_0 = arith.constant 0 : i32
    %c0_i32_1 = arith.constant 0 : i32
    return %c0_i32, %c0_i32_0 : i32, i32
  }
  func.func @transform_5(%arg0: i32) -> (i32, i32) {
    %c0_i32 = arith.constant 0 : i32
    %c0_i32_0 = arith.constant 0 : i32
    %c0_i32_1 = arith.constant 0 : i32
    return %c0_i32, %c0_i32_0 : i32, i32
  }
  func.func @transform_6(%arg0: i32) -> (i32, i32) {
    %c0_i32 = arith.constant 0 : i32
    %c0_i32_0 = arith.constant 0 : i32
    %c0_i32_1 = arith.constant 0 : i32
    return %c0_i32, %c0_i32_0 : i32, i32
  }
  func.func @transform_7(%arg0: i32) -> (i32, i32, i32) {
    %c0_i32 = arith.constant 0 : i32
    %c0_i32_0 = arith.constant 0 : i32
    %c0_i32_1 = arith.constant 0 : i32
    return %arg0, %c0_i32, %c0_i32_0 : i32, i32, i32
  }
}

</mosaic_0001>

<llo_original>
// kernel: tpu_custom_call.1
$region0: #{tpu_custom_call.1}
  #allocation0 [shape = 'u32[]', space=smem, size = 0x4, offset = 0x4, fixed_abs, tag = 'smem constant byte address 0x4 - core index']
  #allocation1 [shape = 'u32[144,128]{1,0:T(1,128)}', space=vmem, size = 0x12000, scoped, tag = 'internal scratch']
  %s0 = inlined_call_operand.vmem [shape: f32[2,64,32], index: 0, kind: input, shape index: {}]
  %s1 = inlined_call_operand.vmem [shape: f32[1,32], index: 1, kind: input, shape index: {}]
  %s2 = inlined_call_operand.vmem [shape: f32[1,32], index: 2, kind: input, shape index: {}]
  %s3 = inlined_call_operand.vmem [shape: f32[32,96], index: 3, kind: input, shape index: {}]
  %s4 = inlined_call_operand.vmem [shape: f32[1,96], index: 4, kind: input, shape index: {}]
  %s5 = inlined_call_operand.vmem [shape: f32[32,32], index: 5, kind: input, shape index: {}]
  %s6 = inlined_call_operand.vmem [shape: f32[1,32], index: 6, kind: input, shape index: {}]
  %s7 = inlined_call_operand.vmem [shape: f32[2,64,32], index: 7, kind: output, shape index: {}]
  %s8 = sld [smem:[#allocation0]]
  $region61: #{tpu_custom_call.1} parent=0
    _
  %s10 = ssub.s32 1, %s8
  %s11 = scalar_select 0, %s10, %s8
  loop: start=0, step=1, limit=4
  $region2: #{tpu_custom_call.1} parent=0 // loop_pre_header
    _
  $region3: #{tpu_custom_call.1} parent=0 // loop_header
    %s13 = sphi 0, %s17
    %p14 = scmp.ge.s32.totalorder %s13, 4
    %s23 = sphi 0, %s25
    %s26 = sphi 0, %s23
    %s27 = sphi 0, %s26
    %s43 = sphi 0, %s27
    %s47 = sphi 0, %s47
    %s49 = sphi 0, %s47
    %s50 = sphi 0, %s49
    %s64 = sphi 0, %s50
    %s68 = sphi 0, %s68
    %s70 = sphi 0, %s68
    %s71 = sphi 0, %s70
    %s85 = sphi 0, %s71
    %s89 = sphi 0, %s89
    %s91 = sphi 0, %s89
    %s92 = sphi 0, %s91
    %s106 = sphi 0, %s92
    %s110 = sphi 0, %s110
    %s112 = sphi 0, %s110
    %s113 = sphi 0, %s112
    %s127 = sphi 0, %s113
    %s131 = sphi 0, %s131
    %s133 = sphi 0, %s131
    %s134 = sphi 0, %s133
    %s148 = sphi 0, %s134
    %s152 = sphi 0, %s152
    %s154 = sphi 0, %s152
    %s155 = sphi 0, %s154
    %s169 = sphi 0, %s155
    %s175 = sphi 0, %s177
    %s178 = sphi 0, %s175
    %s179 = sphi 0, %s178
    %s195 = sphi 0, %s179
  $region4: #{tpu_custom_call.1} parent=0 // loop_header_branch
    %16 = sbr.rel (%p14) target = $region8
  $region5: #{tpu_custom_call.1} parent=0 // loop_body
    %s18 = ssub.s32 %s13, 1
    %s19 = ssub.s32 %s13, 2
    %s20 = sadd.s32 %s13, 1
    %s21 = ssub.s32 %s13, %s20
    %p22 = scmp.eq.s32.totalorder %s21, 0
    %s24 = sadd.s32 %s23, 1
    %s25 = scalar_select %p22, %s23, %s24
    %p28 = pneg %p22
    %p29 = scmp.eq.s32.totalorder %s13, 1
    %p30 = por %p28, %p29
    %p31 = scmp.ne.s32.totalorder %s23, %s26
    %p32 = scmp.eq.s32.totalorder %s13, 0
    %p33 = por %p31, %p32
    %p34 = scmp.ne.s32.totalorder %s23, %s26
    %p35 = scmp.eq.s32.totalorder %s18, 1
    %p36 = por %p34, %p35
    %p37 = scmp.ne.s32.totalorder %s26, %s27
    %p38 = scmp.eq.s32.totalorder %s18, 0
    %p39 = por %p37, %p38
    %p40 = scmp.ne.s32.totalorder %s26, %s27
    %p41 = scmp.eq.s32.totalorder %s19, 1
    %p42 = por %p40, %p41
    %p44 = scmp.ne.s32.totalorder %s27, %s43
    %p45 = scmp.eq.s32.totalorder %s19, 0
    %p46 = por %p44, %p45
    %s48 = sadd.s32 %s47, 1
    %p51 = scmp.eq.s32.totalorder %s13, 1
    %p52 = scmp.ne.s32.totalorder %s47, %s49
    %p53 = scmp.eq.s32.totalorder %s13, 0
    %p54 = por %p52, %p53
    %p55 = scmp.ne.s32.totalorder %s47, %s49
    %p56 = scmp.eq.s32.totalorder %s18, 1
    %p57 = por %p55, %p56
    %p58 = scmp.ne.s32.totalorder %s49, %s50
    %p59 = scmp.eq.s32.totalorder %s18, 0
    %p60 = por %p58, %p59
    %p61 = scmp.ne.s32.totalorder %s49, %s50
    %p62 = scmp.eq.s32.totalorder %s19, 1
    %p63 = por %p61, %p62
    %p65 = scmp.ne.s32.totalorder %s50, %s64
    %p66 = scmp.eq.s32.totalorder %s19, 0
    %p67 = por %p65, %p66
    %s69 = sadd.s32 %s68, 1
    %p72 = scmp.eq.s32.totalorder %s13, 1
    %p73 = scmp.ne.s32.totalorder %s68, %s70
    %p74 = scmp.eq.s32.totalorder %s13, 0
    %p75 = por %p73, %p74
    %p76 = scmp.ne.s32.totalorder %s68, %s70
    %p77 = scmp.eq.s32.totalorder %s18, 1
    %p78 = por %p76, %p77
    %p79 = scmp.ne.s32.totalorder %s70, %s71
    %p80 = scmp.eq.s32.totalorder %s18, 0
    %p81 = por %p79, %p80
    %p82 = scmp.ne.s32.totalorder %s70, %s71
    %p83 = scmp.eq.s32.totalorder %s19, 1
    %p84 = por %p82, %p83
    %p86 = scmp.ne.s32.totalorder %s71, %s85
    %p87 = scmp.eq.s32.totalorder %s19, 0
    %p88 = por %p86, %p87
    %s90 = sadd.s32 %s89, 1
    %p93 = scmp.eq.s32.totalorder %s13, 1
    %p94 = scmp.ne.s32.totalorder %s89, %s91
    %p95 = scmp.eq.s32.totalorder %s13, 0
    %p96 = por %p94, %p95
    %p97 = scmp.ne.s32.totalorder %s89, %s91
    %p98 = scmp.eq.s32.totalorder %s18, 1
    %p99 = por %p97, %p98
    %p100 = scmp.ne.s32.totalorder %s91, %s92
    %p101 = scmp.eq.s32.totalorder %s18, 0
    %p102 = por %p100, %p101
    %p103 = scmp.ne.s32.totalorder %s91, %s92
    %p104 = scmp.eq.s32.totalorder %s19, 1
    %p105 = por %p103, %p104
    %p107 = scmp.ne.s32.totalorder %s92, %s106
    %p108 = scmp.eq.s32.totalorder %s19, 0
    %p109 = por %p107, %p108
    %s111 = sadd.s32 %s110, 1
    %p114 = scmp.eq.s32.totalorder %s13, 1
    %p115 = scmp.ne.s32.totalorder %s110, %s112
    %p116 = scmp.eq.s32.totalorder %s13, 0
    %p117 = por %p115, %p116
    %p118 = scmp.ne.s32.totalorder %s110, %s112
    %p119 = scmp.eq.s32.totalorder %s18, 1
    %p120 = por %p118, %p119
    %p121 = scmp.ne.s32.totalorder %s112, %s113
    %p122 = scmp.eq.s32.totalorder %s18, 0
    %p123 = por %p121, %p122
    %p124 = scmp.ne.s32.totalorder %s112, %s113
    %p125 = scmp.eq.s32.totalorder %s19, 1
    %p126 = por %p124, %p125
    %p128 = scmp.ne.s32.totalorder %s113, %s127
    %p129 = scmp.eq.s32.totalorder %s19, 0
    %p130 = por %p128, %p129
    %s132 = sadd.s32 %s131, 1
    %p135 = scmp.eq.s32.totalorder %s13, 1
    %p136 = scmp.ne.s32.totalorder %s131, %s133
    %p137 = scmp.eq.s32.totalorder %s13, 0
    %p138 = por %p136, %p137
    %p139 = scmp.ne.s32.totalorder %s131, %s133
    %p140 = scmp.eq.s32.totalorder %s18, 1
    %p141 = por %p139, %p140
    %p142 = scmp.ne.s32.totalorder %s133, %s134
    %p143 = scmp.eq.s32.totalorder %s18, 0
    %p144 = por %p142, %p143
    %p145 = scmp.ne.s32.totalorder %s133, %s134
    %p146 = scmp.eq.s32.totalorder %s19, 1
    %p147 = por %p145, %p146
    %p149 = scmp.ne.s32.totalorder %s134, %s148
    %p150 = scmp.eq.s32.totalorder %s19, 0
    %p151 = por %p149, %p150
    %s153 = sadd.s32 %s152, 1
    %p156 = scmp.eq.s32.totalorder %s13, 1
    %p157 = scmp.ne.s32.totalorder %s152, %s154
    %p158 = scmp.eq.s32.totalorder %s13, 0
    %p159 = por %p157, %p158
    %p160 = scmp.ne.s32.totalorder %s152, %s154
    %p161 = scmp.eq.s32.totalorder %s18, 1
    %p162 = por %p160, %p161
    %p163 = scmp.ne.s32.totalorder %s154, %s155
    %p164 = scmp.eq.s32.totalorder %s18, 0
    %p165 = por %p163, %p164
    %p166 = scmp.ne.s32.totalorder %s154, %s155
    %p167 = scmp.eq.s32.totalorder %s19, 1
    %p168 = por %p166, %p167
    %p170 = scmp.ne.s32.totalorder %s155, %s169
    %p171 = scmp.eq.s32.totalorder %s19, 0
    %p172 = por %p170, %p171
    %s173 = ssub.s32 %s13, %s20
    %p174 = scmp.eq.s32.totalorder %s173, 0
    %s176 = sadd.s32 %s175, 1
    %s177 = scalar_select %p174, %s175, %s176
    %p180 = pneg %p174
    %p181 = scmp.eq.s32.totalorder %s13, 1
    %p182 = por %p180, %p181
    %p183 = scmp.ne.s32.totalorder %s175, %s178
    %p184 = scmp.eq.s32.totalorder %s13, 0
    %p185 = por %p183, %p184
    %p186 = scmp.ne.s32.totalorder %s175, %s178
    %p187 = scmp.eq.s32.totalorder %s18, 1
    %p188 = por %p186, %p187
    %p189 = scmp.ne.s32.totalorder %s178, %s179
    %p190 = scmp.eq.s32.totalorder %s18, 0
    %p191 = por %p189, %p190
    %p192 = scmp.ne.s32.totalorder %s178, %s179
    %p193 = scmp.eq.s32.totalorder %s19, 1
    %p194 = por %p192, %p193
    %p196 = scmp.ne.s32.totalorder %s179, %s195
    %p197 = scmp.eq.s32.totalorder %s19, 0
    %p198 = por %p196, %p197
    %p199 = scmp.le.s32.totalorder 1, %s13
    %p200 = scmp.lt.s32.totalorder %s13, 3
    %p201 = pnand %p199, %p200
    %p202 = pneg %p201
    // Predicated region
    $region9: #{tpu_custom_call.1} parent=5 // pred_check
      _
    $region10: #{tpu_custom_call.1} parent=5 // pred_check_branch
      %204 = sbr.rel (%p201) target = $region12
    $region11: #{tpu_custom_call.1} parent=5 // pred_region
      %s205 = ssub.s32 %s13, 1
      // Predicated region
      $region13: #{tpu_custom_call.1} parent=11 // pred_check
        %p206 = pneg %p60
      $region14: #{tpu_custom_call.1} parent=11 // pred_check_branch
        %208 = sbr.rel (%p206) target = $region16
      $region15: #{tpu_custom_call.1} parent=11 // pred_region
        _
      $region16: #{tpu_custom_call.1} parent=11 // pred_fallthru
        _
      // Predicated region
      $region17: #{tpu_custom_call.1} parent=11 // pred_check
        %p209 = pneg %p81
      $region18: #{tpu_custom_call.1} parent=11 // pred_check_branch
        %211 = sbr.rel (%p209) target = $region20
      $region19: #{tpu_custom_call.1} parent=11 // pred_region
        _
      $region20: #{tpu_custom_call.1} parent=11 // pred_fallthru
        _
      // Predicated region
      $region21: #{tpu_custom_call.1} parent=11 // pred_check
        %p212 = pneg %p102
      $region22: #{tpu_custom_call.1} parent=11 // pred_check_branch
        %214 = sbr.rel (%p212) target = $region24
      $region23: #{tpu_custom_call.1} parent=11 // pred_region
        _
      $region24: #{tpu_custom_call.1} parent=11 // pred_fallthru
        _
      // Predicated region
      $region25: #{tpu_custom_call.1} parent=11 // pred_check
        %p215 = pneg %p123
      $region26: #{tpu_custom_call.1} parent=11 // pred_check_branch
        %217 = sbr.rel (%p215) target = $region28
      $region27: #{tpu_custom_call.1} parent=11 // pred_region
        _
      $region28: #{tpu_custom_call.1} parent=11 // pred_fallthru
        _
      // Predicated region
      $region29: #{tpu_custom_call.1} parent=11 // pred_check
        %p218 = pneg %p144
      $region30: #{tpu_custom_call.1} parent=11 // pred_check_branch
        %220 = sbr.rel (%p218) target = $region32
      $region31: #{tpu_custom_call.1} parent=11 // pred_region
        _
      $region32: #{tpu_custom_call.1} parent=11 // pred_fallthru
        _
      // Predicated region
      $region33: #{tpu_custom_call.1} parent=11 // pred_check
        %p221 = pneg %p165
      $region34: #{tpu_custom_call.1} parent=11 // pred_check_branch
        %223 = sbr.rel (%p221) target = $region36
      $region35: #{tpu_custom_call.1} parent=11 // pred_region
        _
      $region36: #{tpu_custom_call.1} parent=11 // pred_fallthru
        _
    $region12: #{tpu_custom_call.1} parent=5 // pred_fallthru
      _
    %p224 = scmp.lt.s32.totalorder %s13, 2
    // Predicated region
    $region37: #{tpu_custom_call.1} parent=5 // pred_check
      %p225 = pneg %p224
    $region38: #{tpu_custom_call.1} parent=5 // pred_check_branch
      %227 = sbr.rel (%p225) target = $region40
    $region39: #{tpu_custom_call.1} parent=5 // pred_region
      // Predicated region
      $region41: #{tpu_custom_call.1} parent=39 // pred_check
        %p228 = pneg %p33
      $region42: #{tpu_custom_call.1} parent=39 // pred_check_branch
        %230 = sbr.rel (%p228) target = $region44
      $region43: #{tpu_custom_call.1} parent=39 // pred_region
        %p231 = scmp.lt.s32.totalorder %s13, 1
        %s232 = scalar_select %p231, %s13, 1
        %s233 = smul.addr %s232, 8
        %s234 = smul.addr %s233, 8
        %s235 = scalar_lea.vmem %s0, %s234
      $region44: #{tpu_custom_call.1} parent=39 // pred_fallthru
        _
    $region40: #{tpu_custom_call.1} parent=5 // pred_fallthru
      _
    %p236 = scmp.le.s32.totalorder 1, %s13
    %p237 = scmp.lt.s32.totalorder %s13, 3
    %p238 = pnand %p236, %p237
    %p239 = pneg %p238
    // Predicated region
    $region45: #{tpu_custom_call.1} parent=5 // pred_check
      _
    $region46: #{tpu_custom_call.1} parent=5 // pred_check_branch
      %241 = sbr.rel (%p238) target = $region48
    $region47: #{tpu_custom_call.1} parent=5 // pred_region
      %s242 = ssub.s32 %s13, 1
      %p243 = scmp.lt.s32.totalorder %s18, 1
      %s244 = scalar_select %p243, %s18, 1
      %s245 = smul.addr %s244, 8
      %s246 = smul.addr %s245, 8
      %s247 = scalar_lea.vmem %s0, %s246
      %p248 = pneg %p39
      %p249 = pneg %p36
      %p250 = pneg %p60
      %p251 = pneg %p57
      %p252 = pneg %p81
      %p253 = pneg %p78
      %p254 = pneg %p102
      %p255 = pneg %p99
      %p256 = pneg %p123
      %p257 = pneg %p120
      %p258 = pneg %p144
      %p259 = pneg %p141
      %p260 = pneg %p165
      %p261 = pneg %p162
      %p262 = pneg %p191
      %p263 = pneg %p188
      %p264 = scmp.lt.s32.totalorder %s18, 1
      %s265 = scalar_select %p264, %s18, 1
      %s266 = smul.addr %s265, 8
      %s267 = smul.addr %s266, 8
      %s268 = scalar_lea.vmem %s7, %s267
      %p269 = scmp.lt.s32.totalorder %s18, 1
      %s270 = scalar_select %p269, %s18, 1
      %s271 = smul.addr %s270, 8
      %s272 = smul.addr %s271, 8
      %s273 = scalar_lea.vmem %s0, %s272
      %p274 = scmp.lt.s32.totalorder %s18, 1
      %s275 = scalar_select %p274, %s18, 1
      %s276 = smul.addr %s275, 8
      %s277 = smul.addr %s276, 8
      %s278 = scalar_lea.vmem %s7, %s277
      %v279 = vld [vmem:[%s273] sm:$0xff]
      %v280 = vld [vmem:[%s273 + $0x8] sm:$0xff]
      %v281 = vld [vmem:[%s273 + $0x10] sm:$0xff]
      %v282 = vld [vmem:[%s273 + $0x18] sm:$0xff]
      %v283 = vld [vmem:[%s273 + $0x20] sm:$0xff]
      %v284 = vld [vmem:[%s273 + $0x28] sm:$0xff]
      %v285 = vld [vmem:[%s273 + $0x30] sm:$0xff]
      %v286 = vld [vmem:[%s273 + $0x38] sm:$0xff]
      %v287 = vld [vmem:[%s1] sm:$0x1]
      %v288 = vld [vmem:[%s2] sm:$0x1]
      %vm289 = vcmask 261120
      %v290 = vsel %vm289, %v279, 0.0
      %291 = vadd.xlane.f32.xlu0 %v290
      %v292 = vpop.xlane.xlu0 %291
      %v293 = vsel %vm289, %v280, 0.0
      %294 = vadd.xlane.f32.xlu0 %v293
      %v295 = vpop.xlane.xlu0 %294
      %v296 = vsel %vm289, %v281, 0.0
      %297 = vadd.xlane.f32.xlu0 %v296
      %v298 = vpop.xlane.xlu0 %297
      %v299 = vsel %vm289, %v282, 0.0
      %300 = vadd.xlane.f32.xlu0 %v299
      %v301 = vpop.xlane.xlu0 %300
      %v302 = vsel %vm289, %v283, 0.0
      %303 = vadd.xlane.f32.xlu0 %v302
      %v304 = vpop.xlane.xlu0 %303
      %v305 = vsel %vm289, %v284, 0.0
      %306 = vadd.xlane.f32.xlu0 %v305
      %v307 = vpop.xlane.xlu0 %306
      %v308 = vsel %vm289, %v285, 0.0
      %309 = vadd.xlane.f32.xlu0 %v308
      %v310 = vpop.xlane.xlu0 %309
      %v311 = vsel %vm289, %v286, 0.0
      %312 = vadd.xlane.f32.xlu0 %v311
      %v313 = vpop.xlane.xlu0 %312
      %v314 = vrcp.pop 32.0
      %v315 = vmul.f32 %v292, %v314
      %v316 = vmul.f32 %v295, %v314
      %v317 = vmul.f32 %v298, %v314
      %v318 = vmul.f32 %v301, %v314
      %v319 = vmul.f32 %v304, %v314
      %v320 = vmul.f32 %v307, %v314
      %v321 = vmul.f32 %v310, %v314
      %v322 = vmul.f32 %v313, %v314
      %v323 = vsub.f32 %v279, %v315
      %v324 = vsub.f32 %v280, %v316
      %v325 = vsub.f32 %v281, %v317
      %v326 = vsub.f32 %v282, %v318
      %v327 = vsub.f32 %v283, %v319
      %v328 = vsub.f32 %v284, %v320
      %v329 = vsub.f32 %v285, %v321
      %v330 = vsub.f32 %v286, %v322
      %v331 = vmul.f32 %v323, %v323
      %v332 = vmul.f32 %v324, %v324
      %v333 = vmul.f32 %v325, %v325
      %v334 = vmul.f32 %v326, %v326
      %v335 = vmul.f32 %v327, %v327
      %v336 = vmul.f32 %v328, %v328
      %v337 = vmul.f32 %v329, %v329
      %v338 = vmul.f32 %v330, %v330
      %v339 = vsel %vm289, %v331, 0.0
      %340 = vadd.xlane.f32.xlu0 %v339
      %v341 = vpop.xlane.xlu0 %340
      %v342 = vsel %vm289, %v332, 0.0
      %343 = vadd.xlane.f32.xlu0 %v342
      %v344 = vpop.xlane.xlu0 %343
      %v345 = vsel %vm289, %v333, 0.0
      %346 = vadd.xlane.f32.xlu0 %v345
      %v347 = vpop.xlane.xlu0 %346
      %v348 = vsel %vm289, %v334, 0.0
      %349 = vadd.xlane.f32.xlu0 %v348
      %v350 = vpop.xlane.xlu0 %349
      %v351 = vsel %vm289, %v335, 0.0
      %352 = vadd.xlane.f32.xlu0 %v351
      %v353 = vpop.xlane.xlu0 %352
      %v354 = vsel %vm289, %v336, 0.0
      %355 = vadd.xlane.f32.xlu0 %v354
      %v356 = vpop.xlane.xlu0 %355
      %v357 = vsel %vm289, %v337, 0.0
      %358 = vadd.xlane.f32.xlu0 %v357
      %v359 = vpop.xlane.xlu0 %358
      %v360 = vsel %vm289, %v338, 0.0
      %361 = vadd.xlane.f32.xlu0 %v360
      %v362 = vpop.xlane.xlu0 %361
      %v363 = vmul.f32 %v341, %v314
      %v364 = vmul.f32 %v344, %v314
      %v365 = vmul.f32 %v347, %v314
      %v366 = vmul.f32 %v350, %v314
      %v367 = vmul.f32 %v353, %v314
      %v368 = vmul.f32 %v356, %v314
      %v369 = vmul.f32 %v359, %v314
      %v370 = vmul.f32 %v362, %v314
      %v371 = vadd.f32 %v363, 1e-05
      %v372 = vadd.f32 %v364, 1e-05
      %v373 = vadd.f32 %v365, 1e-05
      %v374 = vadd.f32 %v366, 1e-05
      %v375 = vadd.f32 %v367, 1e-05
      %v376 = vadd.f32 %v368, 1e-05
      %v377 = vadd.f32 %v369, 1e-05
      %v378 = vadd.f32 %v370, 1e-05
      %v379 = vrsqrt.pop %v371
      %v380 = vrsqrt.pop %v372
      %v381 = vrsqrt.pop %v373
      %v382 = vrsqrt.pop %v374
      %v383 = vrsqrt.pop %v375
      %v384 = vrsqrt.pop %v376
      %v385 = vrsqrt.pop %v377
      %v386 = vrsqrt.pop %v378
      %v387 = vmul.f32 %v323, %v379
      %v388 = vmul.f32 %v324, %v380
      %v389 = vmul.f32 %v325, %v381
      %v390 = vmul.f32 %v326, %v382
      %v391 = vmul.f32 %v327, %v383
      %v392 = vmul.f32 %v328, %v384
      %v393 = vmul.f32 %v329, %v385
      %v394 = vmul.f32 %v330, %v386
      %v396 = vlaneseq
      %v397 = vshrl.u32 %v396, 7
      %v398 = vsub.s32 0, %v397
      %v399 = vrot.slane %v287, %v398
      %v401 = vmul.f32 %v387, %v399
      %v402 = vmul.f32 %v388, %v399
      %v403 = vmul.f32 %v389, %v399
      %v404 = vmul.f32 %v390, %v399
      %v405 = vmul.f32 %v391, %v399
      %v406 = vmul.f32 %v392, %v399
      %v407 = vmul.f32 %v393, %v399
      %v408 = vmul.f32 %v394, %v399
      %v410 = vlaneseq
      %v411 = vshrl.u32 %v410, 7
      %v412 = vsub.s32 0, %v411
      %v413 = vrot.slane %v288, %v412
      %v415 = vadd.f32 %v401, %v413
      %v416 = vadd.f32 %v402, %v413
      %v417 = vadd.f32 %v403, %v413
      %v418 = vadd.f32 %v404, %v413
      %v419 = vadd.f32 %v405, %v413
      %v420 = vadd.f32 %v406, %v413
      %v421 = vadd.f32 %v407, %v413
      %v422 = vadd.f32 %v408, %v413
      %v423 = vld [vmem:[%s3] sm:$0xff]
      %v424 = vld [vmem:[%s3 + $0x8] sm:$0xff]
      %v425 = vld [vmem:[%s3 + $0x10] sm:$0xff]
      %v426 = vld [vmem:[%s3 + $0x18] sm:$0xff]
      %v427 = vld [vmem:[%s4] sm:$0x1]
      %v429 = vlaneseq
      %v430 = vshrl.u32 %v429, 7
      %v431 = vsub.s32 0, %v430
      %v432 = vrot.slane %v427, %v431
      %v435 = vsel %vm289, %v415, 0
      %v438 = vsel %vm289, %v416, 0
      %v441 = vsel %vm289, %v417, 0
      %v444 = vsel %vm289, %v418, 0
      %v447 = vsel %vm289, %v419, 0
      %v450 = vsel %vm289, %v420, 0
      %v453 = vsel %vm289, %v421, 0
      %v456 = vsel %vm289, %v422, 0
      %458 = vmatprep.subr.mxu0 0.0
      %459 = vmatpush1.msra.mxu0 0.0
      %460 = vmatprep.subr.mxu0 0.0
      %461 = vmatpush1.msra.mxu0 0.0
      %462 = vmatprep.subr.mxu0 0.0
      %463 = vmatpush1.msra.mxu0 0.0
      %464 = vmatprep.subr.mxu0 0.0
      %465 = vmatpush1.msra.mxu0 0.0
      %466 = vmatprep.subr.mxu0 0.0
      %467 = vmatpush1.msra.mxu0 0.0
      %468 = vmatprep.subr.mxu0 0.0
      %469 = vmatpush1.msra.mxu0 0.0
      %470 = vmatprep.subr.mxu0 0.0
      %471 = vmatpush1.msra.mxu0 0.0
      %472 = vmatprep.subr.mxu0 0.0
      %473 = vmatpush1.msra.mxu0 0.0
      %474 = vmatprep.subr.mxu0 0.0
      %475 = vmatpush1.msra.mxu0 0.0
      %476 = vmatprep.subr.mxu0 0.0
      %477 = vmatpush1.msra.mxu0 0.0
      %478 = vmatprep.subr.mxu0 0.0
      %479 = vmatpush1.msra.mxu0 0.0
      %480 = vmatprep.subr.mxu0 0.0
      %481 = vmatpush1.msra.mxu0 0.0
      %482 = vmatprep.subr.mxu0 0.0
      %483 = vmatpush1.msra.mxu0 %v426
      %484 = vmatprep.subr.mxu0 0.0
      %485 = vmatpush1.msra.mxu0 %v425
      %486 = vmatprep.subr.mxu0 0.0
      %487 = vmatpush1.msra.mxu0 %v424
      %488 = vmatprep.subr.mxu0 0.0
      %489 = vmatpush1.msra.mxu0 %v423
      %490 = vmatprep.subr.mxu0 0.0
      %491 = vmatpush2.msra.mxu0 0.0
      %492 = vmatprep.subr.mxu0 0.0
      %493 = vmatpush2.msra.mxu0 0.0
      %494 = vmatprep.subr.mxu0 0.0
      %495 = vmatpush2.msra.mxu0 0.0
      %496 = vmatprep.subr.mxu0 0.0
      %497 = vmatpush2.msra.mxu0 0.0
      %498 = vmatprep.subr.mxu0 0.0
      %499 = vmatpush2.msra.mxu0 0.0
      %500 = vmatprep.subr.mxu0 0.0
      %501 = vmatpush2.msra.mxu0 0.0
      %502 = vmatprep.subr.mxu0 0.0
      %503 = vmatpush2.msra.mxu0 0.0
      %504 = vmatprep.subr.mxu0 0.0
      %505 = vmatpush2.msra.mxu0 0.0
      %506 = vmatprep.subr.mxu0 0.0
      %507 = vmatpush2.msra.mxu0 0.0
      %508 = vmatprep.subr.mxu0 0.0
      %509 = vmatpush2.msra.mxu0 0.0
      %510 = vmatprep.subr.mxu0 0.0
      %511 = vmatpush2.msra.mxu0 0.0
      %512 = vmatprep.subr.mxu0 0.0
      %513 = vmatpush2.msra.mxu0 0.0
      %514 = vmatprep.subr.mxu0 0.0
      %515 = vmatpush2.msra.mxu0 0.0
      %516 = vmatprep.subr.mxu0 0.0
      %517 = vmatpush2.msra.mxu0 0.0
      %518 = vmatprep.subr.mxu0 0.0
      %519 = vmatpush2.msra.mxu0 0.0
      %520 = vmatprep.subr.mxu0 0.0
      %521 = vmatpush2.msra.mxu0 0.0
      %522 = vmatprep.mubr.f32.mxu0 0.0
      %523 = vmatmul.mubr.f32.gmra.mxu0 %v435
      %v524 = vpop.f32.mrf.mxu0
      %v525 = vadd.f32 %v432, %v524
      %v526 = vpop.f32.mrf.mxu0
      %527 = vmatprep.mubr.f32.mxu0 0.0
      %528 = vmatmul.mubr.f32.gmra.mxu0 %v438
      %v529 = vpop.f32.mrf.mxu0
      %v530 = vadd.f32 %v432, %v529
      %v531 = vpop.f32.mrf.mxu0
      %532 = vmatprep.mubr.f32.mxu0 0.0
      %533 = vmatmul.mubr.f32.gmra.mxu0 %v441
      %v534 = vpop.f32.mrf.mxu0
      %v535 = vadd.f32 %v432, %v534
      %v536 = vpop.f32.mrf.mxu0
      %537 = vmatprep.mubr.f32.mxu0 0.0
      %538 = vmatmul.mubr.f32.gmra.mxu0 %v444
      %v539 = vpop.f32.mrf.mxu0
      %v540 = vadd.f32 %v432, %v539
      %v541 = vpop.f32.mrf.mxu0
      %542 = vmatprep.mubr.f32.mxu0 0.0
      %543 = vmatmul.mubr.f32.gmra.mxu0 %v447
      %v544 = vpop.f32.mrf.mxu0
      %v545 = vadd.f32 %v432, %v544
      %v546 = vpop.f32.mrf.mxu0
      %547 = vmatprep.mubr.f32.mxu0 0.0
      %548 = vmatmul.mubr.f32.gmra.mxu0 %v450
      %v549 = vpop.f32.mrf.mxu0
      %v550 = vadd.f32 %v432, %v549
      %v551 = vpop.f32.mrf.mxu0
      %552 = vmatprep.mubr.f32.mxu0 0.0
      %553 = vmatmul.mubr.f32.gmra.mxu0 %v453
      %v554 = vpop.f32.mrf.mxu0
      %v555 = vadd.f32 %v432, %v554
      %v556 = vpop.f32.mrf.mxu0
      %557 = vmatprep.mubr.f32.mxu0 0.0
      %558 = vmatmul.mubr.f32.gmra.mxu0 %v456
      %v559 = vpop.f32.mrf.mxu0
      %v560 = vadd.f32 %v432, %v559
      %v561 = vpop.f32.mrf.mxu0
      %562 = vdwg.mxu0
      %571 = vrot.lane.b32.xlu0 %v525, 120
      %v572 = vpop.permute.xlu0 %571
      %573 = vrot.lane.b32.xlu0 %v530, 120
      %v574 = vpop.permute.xlu0 %573
      %575 = vrot.lane.b32.xlu0 %v535, 120
      %v576 = vpop.permute.xlu0 %575
      %577 = vrot.lane.b32.xlu0 %v540, 120
      %v578 = vpop.permute.xlu0 %577
      %579 = vrot.lane.b32.xlu0 %v545, 120
      %v580 = vpop.permute.xlu0 %579
      %581 = vrot.lane.b32.xlu0 %v550, 120
      %v582 = vpop.permute.xlu0 %581
      %583 = vrot.lane.b32.xlu0 %v555, 120
      %v584 = vpop.permute.xlu0 %583
      %585 = vrot.lane.b32.xlu0 %v560, 120
      %v586 = vpop.permute.xlu0 %585
      %587 = vrot.lane.b32.xlu0 %v525, 112
      %v588 = vpop.permute.xlu0 %587
      %589 = vrot.lane.b32.xlu0 %v530, 112
      %v590 = vpop.permute.xlu0 %589
      %591 = vrot.lane.b32.xlu0 %v535, 112
      %v592 = vpop.permute.xlu0 %591
      %593 = vrot.lane.b32.xlu0 %v540, 112
      %v594 = vpop.permute.xlu0 %593
      %595 = vrot.lane.b32.xlu0 %v545, 112
      %v596 = vpop.permute.xlu0 %595
      %597 = vrot.lane.b32.xlu0 %v550, 112
      %v598 = vpop.permute.xlu0 %597
      %599 = vrot.lane.b32.xlu0 %v555, 112
      %v600 = vpop.permute.xlu0 %599
      %601 = vrot.lane.b32.xlu0 %v560, 112
      %v602 = vpop.permute.xlu0 %601
      %603 = vrot.lane.b32.xlu0 %v525, 104
      %v604 = vpop.permute.xlu0 %603
      %605 = vrot.lane.b32.xlu0 %v530, 104
      %v606 = vpop.permute.xlu0 %605
      %607 = vrot.lane.b32.xlu0 %v535, 104
      %v608 = vpop.permute.xlu0 %607
      %609 = vrot.lane.b32.xlu0 %v540, 104
      %v610 = vpop.permute.xlu0 %609
      %611 = vrot.lane.b32.xlu0 %v545, 104
      %v612 = vpop.permute.xlu0 %611
      %613 = vrot.lane.b32.xlu0 %v550, 104
      %v614 = vpop.permute.xlu0 %613
      %615 = vrot.lane.b32.xlu0 %v555, 104
      %v616 = vpop.permute.xlu0 %615
      %617 = vrot.lane.b32.xlu0 %v560, 104
      %v618 = vpop.permute.xlu0 %617
      %619 = vrot.lane.b32.xlu0 %v525, 96
      %v620 = vpop.permute.xlu0 %619
      %621 = vrot.lane.b32.xlu0 %v530, 96
      %v622 = vpop.permute.xlu0 %621
      %623 = vrot.lane.b32.xlu0 %v535, 96
      %v624 = vpop.permute.xlu0 %623
      %625 = vrot.lane.b32.xlu0 %v540, 96
      %v626 = vpop.permute.xlu0 %625
      %627 = vrot.lane.b32.xlu0 %v545, 96
      %v628 = vpop.permute.xlu0 %627
      %629 = vrot.lane.b32.xlu0 %v550, 96
      %v630 = vpop.permute.xlu0 %629
      %631 = vrot.lane.b32.xlu0 %v555, 96
      %v632 = vpop.permute.xlu0 %631
      %633 = vrot.lane.b32.xlu0 %v560, 96
      %v634 = vpop.permute.xlu0 %633
      %635 = vrot.lane.b32.xlu0 %v572, 96
      %v636 = vpop.permute.xlu0 %635
      %637 = vrot.lane.b32.xlu0 %v574, 96
      %v638 = vpop.permute.xlu0 %637
      %639 = vrot.lane.b32.xlu0 %v576, 96
      %v640 = vpop.permute.xlu0 %639
      %641 = vrot.lane.b32.xlu0 %v578, 96
      %v642 = vpop.permute.xlu0 %641
      %643 = vrot.lane.b32.xlu0 %v580, 96
      %v644 = vpop.permute.xlu0 %643
      %645 = vrot.lane.b32.xlu0 %v582, 96
      %v646 = vpop.permute.xlu0 %645
      %647 = vrot.lane.b32.xlu0 %v584, 96
      %v648 = vpop.permute.xlu0 %647
      %649 = vrot.lane.b32.xlu0 %v586, 96
      %v650 = vpop.permute.xlu0 %649
      %651 = vrot.lane.b32.xlu0 %v588, 96
      %v652 = vpop.permute.xlu0 %651
      %653 = vrot.lane.b32.xlu0 %v590, 96
      %v654 = vpop.permute.xlu0 %653
      %655 = vrot.lane.b32.xlu0 %v592, 96
      %v656 = vpop.permute.xlu0 %655
      %657 = vrot.lane.b32.xlu0 %v594, 96
      %v658 = vpop.permute.xlu0 %657
      %659 = vrot.lane.b32.xlu0 %v596, 96
      %v660 = vpop.permute.xlu0 %659
      %661 = vrot.lane.b32.xlu0 %v598, 96
      %v662 = vpop.permute.xlu0 %661
      %663 = vrot.lane.b32.xlu0 %v600, 96
      %v664 = vpop.permute.xlu0 %663
      %665 = vrot.lane.b32.xlu0 %v602, 96
      %v666 = vpop.permute.xlu0 %665
      %667 = vrot.lane.b32.xlu0 %v604, 96
      %v668 = vpop.permute.xlu0 %667
      %669 = vrot.lane.b32.xlu0 %v606, 96
      %v670 = vpop.permute.xlu0 %669
      %671 = vrot.lane.b32.xlu0 %v608, 96
      %v672 = vpop.permute.xlu0 %671
      %673 = vrot.lane.b32.xlu0 %v610, 96
      %v674 = vpop.permute.xlu0 %673
      %675 = vrot.lane.b32.xlu0 %v612, 96
      %v676 = vpop.permute.xlu0 %675
      %677 = vrot.lane.b32.xlu0 %v614, 96
      %v678 = vpop.permute.xlu0 %677
      %679 = vrot.lane.b32.xlu0 %v616, 96
      %v680 = vpop.permute.xlu0 %679
      %681 = vrot.lane.b32.xlu0 %v618, 96
      %v682 = vpop.permute.xlu0 %681
      %715 = vxpose.xlu0.b32.start [1/16] %v620, 128
      %716 = vxpose.xlu0.b32.cont [2/16] %v622, 128
      %717 = vxpose.xlu0.b32.cont [3/16] %v624, 128
      %718 = vxpose.xlu0.b32.cont [4/16] %v626, 128
      %719 = vxpose.xlu0.b32.cont [5/16] %v628, 128
      %720 = vxpose.xlu0.b32.cont [6/16] %v630, 128
      %721 = vxpose.xlu0.b32.cont [7/16] %v632, 128
      %722 = vxpose.xlu0.b32.cont [8/16] %v634, 128
      %723 = vxpose.xlu0.b32.cont [9/16] 0.0, 128
      %724 = vxpose.xlu0.b32.cont [10/16] 0.0, 128
      %725 = vxpose.xlu0.b32.cont [11/16] 0.0, 128
      %726 = vxpose.xlu0.b32.cont [12/16] 0.0, 128
      %727 = vxpose.xlu0.b32.cont [13/16] 0.0, 128
      %728 = vxpose.xlu0.b32.cont [14/16] 0.0, 128
      %729 = vxpose.xlu0.b32.cont [15/16] 0.0, 128
      %730 = vxpose.xlu0.b32.end [16/16] 0.0, 128
      %v731 = vpop.trf.xlu0
      %v732 = vpop.trf.xlu0
      %v733 = vpop.trf.xlu0
      %v734 = vpop.trf.xlu0
      %v735 = vpop.trf.xlu0
      %v736 = vpop.trf.xlu0
      %v737 = vpop.trf.xlu0
      %v738 = vpop.trf.xlu0
      %v739 = vpop.trf.xlu0
      %v740 = vpop.trf.xlu0
      %v741 = vpop.trf.xlu0
      %v742 = vpop.trf.xlu0
      %v743 = vpop.trf.xlu0
      %v744 = vpop.trf.xlu0
      %v745 = vpop.trf.xlu0
      %v746 = vpop.trf.xlu0
      %747 = vxpose.xlu0.b32.start [1/16] %v636, 128
      %748 = vxpose.xlu0.b32.cont [2/16] %v638, 128
      %749 = vxpose.xlu0.b32.cont [3/16] %v640, 128
      %750 = vxpose.xlu0.b32.cont [4/16] %v642, 128
      %751 = vxpose.xlu0.b32.cont [5/16] %v644, 128
      %752 = vxpose.xlu0.b32.cont [6/16] %v646, 128
      %753 = vxpose.xlu0.b32.cont [7/16] %v648, 128
      %754 = vxpose.xlu0.b32.cont [8/16] %v650, 128
      %755 = vxpose.xlu0.b32.cont [9/16] 0.0, 128
      %756 = vxpose.xlu0.b32.cont [10/16] 0.0, 128
      %757 = vxpose.xlu0.b32.cont [11/16] 0.0, 128
      %758 = vxpose.xlu0.b32.cont [12/16] 0.0, 128
      %759 = vxpose.xlu0.b32.cont [13/16] 0.0, 128
      %760 = vxpose.xlu0.b32.cont [14/16] 0.0, 128
      %761 = vxpose.xlu0.b32.cont [15/16] 0.0, 128
      %762 = vxpose.xlu0.b32.end [16/16] 0.0, 128
      %v763 = vpop.trf.xlu0
      %v764 = vpop.trf.xlu0
      %v765 = vpop.trf.xlu0
      %v766 = vpop.trf.xlu0
      %v767 = vpop.trf.xlu0
      %v768 = vpop.trf.xlu0
      %v769 = vpop.trf.xlu0
      %v770 = vpop.trf.xlu0
      %v771 = vpop.trf.xlu0
      %v772 = vpop.trf.xlu0
      %v773 = vpop.trf.xlu0
      %v774 = vpop.trf.xlu0
      %v775 = vpop.trf.xlu0
      %v776 = vpop.trf.xlu0
      %v777 = vpop.trf.xlu0
      %v778 = vpop.trf.xlu0
      %779 = vxpose.xlu0.b32.start [1/16] %v652, 128
      %780 = vxpose.xlu0.b32.cont [2/16] %v654, 128
      %781 = vxpose.xlu0.b32.cont [3/16] %v656, 128
      %782 = vxpose.xlu0.b32.cont [4/16] %v658, 128
      %783 = vxpose.xlu0.b32.cont [5/16] %v660, 128
      %784 = vxpose.xlu0.b32.cont [6/16] %v662, 128
      %785 = vxpose.xlu0.b32.cont [7/16] %v664, 128
      %786 = vxpose.xlu0.b32.cont [8/16] %v666, 128
      %787 = vxpose.xlu0.b32.cont [9/16] 0.0, 128
      %788 = vxpose.xlu0.b32.cont [10/16] 0.0, 128
      %789 = vxpose.xlu0.b32.cont [11/16] 0.0, 128
      %790 = vxpose.xlu0.b32.cont [12/16] 0.0, 128
      %791 = vxpose.xlu0.b32.cont [13/16] 0.0, 128
      %792 = vxpose.xlu0.b32.cont [14/16] 0.0, 128
      %793 = vxpose.xlu0.b32.cont [15/16] 0.0, 128
      %794 = vxpose.xlu0.b32.end [16/16] 0.0, 128
      %v795 = vpop.trf.xlu0
      %v796 = vpop.trf.xlu0
      %v797 = vpop.trf.xlu0
      %v798 = vpop.trf.xlu0
      %v799 = vpop.trf.xlu0
      %v800 = vpop.trf.xlu0
      %v801 = vpop.trf.xlu0
      %v802 = vpop.trf.xlu0
      %v803 = vpop.trf.xlu0
      %v804 = vpop.trf.xlu0
      %v805 = vpop.trf.xlu0
      %v806 = vpop.trf.xlu0
      %v807 = vpop.trf.xlu0
      %v808 = vpop.trf.xlu0
      %v809 = vpop.trf.xlu0
      %v810 = vpop.trf.xlu0
      %811 = vxpose.xlu0.b32.start [1/16] %v668, 128
      %812 = vxpose.xlu0.b32.cont [2/16] %v670, 128
      %813 = vxpose.xlu0.b32.cont [3/16] %v672, 128
      %814 = vxpose.xlu0.b32.cont [4/16] %v674, 128
      %815 = vxpose.xlu0.b32.cont [5/16] %v676, 128
      %816 = vxpose.xlu0.b32.cont [6/16] %v678, 128
      %817 = vxpose.xlu0.b32.cont [7/16] %v680, 128
      %818 = vxpose.xlu0.b32.cont [8/16] %v682, 128
      %819 = vxpose.xlu0.b32.cont [9/16] 0.0, 128
      %820 = vxpose.xlu0.b32.cont [10/16] 0.0, 128
      %821 = vxpose.xlu0.b32.cont [11/16] 0.0, 128
      %822 = vxpose.xlu0.b32.cont [12/16] 0.0, 128
      %823 = vxpose.xlu0.b32.cont [13/16] 0.0, 128
      %824 = vxpose.xlu0.b32.cont [14/16] 0.0, 128
      %825 = vxpose.xlu0.b32.cont [15/16] 0.0, 128
      %826 = vxpose.xlu0.b32.end [16/16] 0.0, 128
      %v827 = vpop.trf.xlu0
      %v828 = vpop.trf.xlu0
      %v829 = vpop.trf.xlu0
      %v830 = vpop.trf.xlu0
      %v831 = vpop.trf.xlu0
      %v832 = vpop.trf.xlu0
      %v833 = vpop.trf.xlu0
      %v834 = vpop.trf.xlu0
      %v835 = vpop.trf.xlu0
      %v836 = vpop.trf.xlu0
      %v837 = vpop.trf.xlu0
      %v838 = vpop.trf.xlu0
      %v839 = vpop.trf.xlu0
      %v840 = vpop.trf.xlu0
      %v841 = vpop.trf.xlu0
      %v842 = vpop.trf.xlu0
      %vm843 = vcmask 64512
      %v844 = vsel %vm843, %v525, 0
      %v846 = vsel %vm843, %v530, 0
      %v848 = vsel %vm843, %v535, 0
      %v850 = vsel %vm843, %v540, 0
      %v852 = vsel %vm843, %v545, 0
      %v854 = vsel %vm843, %v550, 0
      %v856 = vsel %vm843, %v555, 0
      %v858 = vsel %vm843, %v560, 0
      %860 = vmatprep.subr.mxu0 0.0
      %861 = vmatpush1.msra.mxu0 0.0
      %862 = vmatprep.subr.mxu0 0.0
      %863 = vmatpush1.msra.mxu0 0.0
      %864 = vmatprep.subr.mxu0 0.0
      %865 = vmatpush1.msra.mxu0 0.0
      %866 = vmatprep.subr.mxu0 0.0
      %867 = vmatpush1.msra.mxu0 0.0
      %868 = vmatprep.subr.mxu0 0.0
      %869 = vmatpush1.msra.mxu0 0.0
      %870 = vmatprep.subr.mxu0 0.0
      %871 = vmatpush1.msra.mxu0 0.0
      %872 = vmatprep.subr.mxu0 0.0
      %873 = vmatpush1.msra.mxu0 0.0
      %874 = vmatprep.subr.mxu0 0.0
      %875 = vmatpush1.msra.mxu0 0.0
      %876 = vmatprep.subr.mxu0 0.0
      %877 = vmatpush1.msra.mxu0 0.0
      %878 = vmatprep.subr.mxu0 0.0
      %879 = vmatpush1.msra.mxu0 0.0
      %880 = vmatprep.subr.mxu0 0.0
      %881 = vmatpush1.msra.mxu0 0.0
      %882 = vmatprep.subr.mxu0 0.0
      %883 = vmatpush1.msra.mxu0 0.0
      %884 = vmatprep.subr.mxu0 0.0
      %885 = vmatpush1.msra.mxu0 0.0
      %886 = vmatprep.subr.mxu0 0.0
      %887 = vmatpush1.msra.mxu0 0.0
      %888 = vmatprep.subr.mxu0 0.0
      %889 = vmatpush1.msra.mxu0 0.0
      %890 = vmatprep.subr.mxu0 0.0
      %891 = vmatpush1.msra.mxu0 %v731
      %892 = vmatprep.subr.mxu0 0.0
      %893 = vmatpush2.msra.mxu0 0.0
      %894 = vmatprep.subr.mxu0 0.0
      %895 = vmatpush2.msra.mxu0 0.0
      %896 = vmatprep.subr.mxu0 0.0
      %897 = vmatpush2.msra.mxu0 0.0
      %898 = vmatprep.subr.mxu0 0.0
      %899 = vmatpush2.msra.mxu0 0.0
      %900 = vmatprep.subr.mxu0 0.0
      %901 = vmatpush2.msra.mxu0 0.0
      %902 = vmatprep.subr.mxu0 0.0
      %903 = vmatpush2.msra.mxu0 0.0
      %904 = vmatprep.subr.mxu0 0.0
      %905 = vmatpush2.msra.mxu0 0.0
      %906 = vmatprep.subr.mxu0 0.0
      %907 = vmatpush2.msra.mxu0 0.0
      %908 = vmatprep.subr.mxu0 0.0
      %909 = vmatpush2.msra.mxu0 0.0
      %910 = vmatprep.subr.mxu0 0.0
      %911 = vmatpush2.msra.mxu0 0.0
      %912 = vmatprep.subr.mxu0 0.0
      %913 = vmatpush2.msra.mxu0 0.0
      %914 = vmatprep.subr.mxu0 0.0
      %915 = vmatpush2.msra.mxu0 0.0
      %916 = vmatprep.subr.mxu0 0.0
      %917 = vmatpush2.msra.mxu0 0.0
      %918 = vmatprep.subr.mxu0 0.0
      %919 = vmatpush2.msra.mxu0 0.0
      %920 = vmatprep.subr.mxu0 0.0
      %921 = vmatpush2.msra.mxu0 0.0
      %922 = vmatprep.subr.mxu0 0.0
      %923 = vmatpush2.msra.mxu0 0.0
      %924 = vmatprep.mubr.f32.mxu0 0.0
      %925 = vmatmul.mubr.f32.gmra.mxu0 %v844
      %v926 = vpop.f32.mrf.mxu0
      %v927 = vadd.f32 0.0, %v926
      %v928 = vpop.f32.mrf.mxu0
      %929 = vmatprep.mubr.f32.mxu0 0.0
      %930 = vmatmul.mubr.f32.gmra.mxu0 %v846
      %v931 = vpop.f32.mrf.mxu0
      %v932 = vadd.f32 0.0, %v931
      %v933 = vpop.f32.mrf.mxu0
      %934 = vmatprep.mubr.f32.mxu0 0.0
      %935 = vmatmul.mubr.f32.gmra.mxu0 %v848
      %v936 = vpop.f32.mrf.mxu0
      %v937 = vadd.f32 0.0, %v936
      %v938 = vpop.f32.mrf.mxu0
      %939 = vmatprep.mubr.f32.mxu0 0.0
      %940 = vmatmul.mubr.f32.gmra.mxu0 %v850
      %v941 = vpop.f32.mrf.mxu0
      %v942 = vadd.f32 0.0, %v941
      %v943 = vpop.f32.mrf.mxu0
      %944 = vmatprep.mubr.f32.mxu0 0.0
      %945 = vmatmul.mubr.f32.gmra.mxu0 %v852
      %v946 = vpop.f32.mrf.mxu0
      %v947 = vadd.f32 0.0, %v946
      %v948 = vpop.f32.mrf.mxu0
      %949 = vmatprep.mubr.f32.mxu0 0.0
      %950 = vmatmul.mubr.f32.gmra.mxu0 %v854
      %v951 = vpop.f32.mrf.mxu0
      %v952 = vadd.f32 0.0, %v951
      %v953 = vpop.f32.mrf.mxu0
      %954 = vmatprep.mubr.f32.mxu0 0.0
      %955 = vmatmul.mubr.f32.gmra.mxu0 %v856
      %v956 = vpop.f32.mrf.mxu0
      %v957 = vadd.f32 0.0, %v956
      %v958 = vpop.f32.mrf.mxu0
      %959 = vmatprep.mubr.f32.mxu0 0.0
      %960 = vmatmul.mubr.f32.gmra.mxu0 %v858
      %v961 = vpop.f32.mrf.mxu0
      %v962 = vadd.f32 0.0, %v961
      %v963 = vpop.f32.mrf.mxu0
      %964 = vdwg.mxu0
      %v965 = vsel %vm843, %v572, 0
      %v967 = vsel %vm843, %v574, 0
      %v969 = vsel %vm843, %v576, 0
      %v971 = vsel %vm843, %v578, 0
      %v973 = vsel %vm843, %v580, 0
      %v975 = vsel %vm843, %v582, 0
      %v977 = vsel %vm843, %v584, 0
      %v979 = vsel %vm843, %v586, 0
      %981 = vmatprep.subr.mxu0 0.0
      %982 = vmatpush1.msra.mxu0 0.0
      %983 = vmatprep.subr.mxu0 0.0
      %984 = vmatpush1.msra.mxu0 0.0
      %985 = vmatprep.subr.mxu0 0.0
      %986 = vmatpush1.msra.mxu0 0.0
      %987 = vmatprep.subr.mxu0 0.0
      %988 = vmatpush1.msra.mxu0 0.0
      %989 = vmatprep.subr.mxu0 0.0
      %990 = vmatpush1.msra.mxu0 0.0
      %991 = vmatprep.subr.mxu0 0.0
      %992 = vmatpush1.msra.mxu0 0.0
      %993 = vmatprep.subr.mxu0 0.0
      %994 = vmatpush1.msra.mxu0 0.0
      %995 = vmatprep.subr.mxu0 0.0
      %996 = vmatpush1.msra.mxu0 0.0
      %997 = vmatprep.subr.mxu0 0.0
      %998 = vmatpush1.msra.mxu0 0.0
      %999 = vmatprep.subr.mxu0 0.0
      %1000 = vmatpush1.msra.mxu0 0.0
      %1001 = vmatprep.subr.mxu0 0.0
      %1002 = vmatpush1.msra.mxu0 0.0
      %1003 = vmatprep.subr.mxu0 0.0
      %1004 = vmatpush1.msra.mxu0 0.0
      %1005 = vmatprep.subr.mxu0 0.0
      %1006 = vmatpush1.msra.mxu0 0.0
      %1007 = vmatprep.subr.mxu0 0.0
      %1008 = vmatpush1.msra.mxu0 0.0
      %1009 = vmatprep.subr.mxu0 0.0
      %1010 = vmatpush1.msra.mxu0 0.0
      %1011 = vmatprep.subr.mxu0 0.0
      %1012 = vmatpush1.msra.mxu0 %v763
      %1013 = vmatprep.subr.mxu0 0.0
      %1014 = vmatpush2.msra.mxu0 0.0
      %1015 = vmatprep.subr.mxu0 0.0
      %1016 = vmatpush2.msra.mxu0 0.0
      %1017 = vmatprep.subr.mxu0 0.0
      %1018 = vmatpush2.msra.mxu0 0.0
      %1019 = vmatprep.subr.mxu0 0.0
      %1020 = vmatpush2.msra.mxu0 0.0
      %1021 = vmatprep.subr.mxu0 0.0
      %1022 = vmatpush2.msra.mxu0 0.0
      %1023 = vmatprep.subr.mxu0 0.0
      %1024 = vmatpush2.msra.mxu0 0.0
      %1025 = vmatprep.subr.mxu0 0.0
      %1026 = vmatpush2.msra.mxu0 0.0
      %1027 = vmatprep.subr.mxu0 0.0
      %1028 = vmatpush2.msra.mxu0 0.0
      %1029 = vmatprep.subr.mxu0 0.0
      %1030 = vmatpush2.msra.mxu0 0.0
      %1031 = vmatprep.subr.mxu0 0.0
      %1032 = vmatpush2.msra.mxu0 0.0
      %1033 = vmatprep.subr.mxu0 0.0
      %1034 = vmatpush2.msra.mxu0 0.0
      %1035 = vmatprep.subr.mxu0 0.0
      %1036 = vmatpush2.msra.mxu0 0.0
      %1037 = vmatprep.subr.mxu0 0.0
      %1038 = vmatpush2.msra.mxu0 0.0
      %1039 = vmatprep.subr.mxu0 0.0
      %1040 = vmatpush2.msra.mxu0 0.0
      %1041 = vmatprep.subr.mxu0 0.0
      %1042 = vmatpush2.msra.mxu0 0.0
      %1043 = vmatprep.subr.mxu0 0.0
      %1044 = vmatpush2.msra.mxu0 0.0
      %1045 = vmatprep.mubr.f32.mxu0 0.0
      %1046 = vmatmul.mubr.f32.gmra.mxu0 %v965
      %v1047 = vpop.f32.mrf.mxu0
      %v1048 = vadd.f32 0.0, %v1047
      %v1049 = vpop.f32.mrf.mxu0
      %1050 = vmatprep.mubr.f32.mxu0 0.0
      %1051 = vmatmul.mubr.f32.gmra.mxu0 %v967
      %v1052 = vpop.f32.mrf.mxu0
      %v1053 = vadd.f32 0.0, %v1052
      %v1054 = vpop.f32.mrf.mxu0
      %1055 = vmatprep.mubr.f32.mxu0 0.0
      %1056 = vmatmul.mubr.f32.gmra.mxu0 %v969
      %v1057 = vpop.f32.mrf.mxu0
      %v1058 = vadd.f32 0.0, %v1057
      %v1059 = vpop.f32.mrf.mxu0
      %1060 = vmatprep.mubr.f32.mxu0 0.0
      %1061 = vmatmul.mubr.f32.gmra.mxu0 %v971
      %v1062 = vpop.f32.mrf.mxu0
      %v1063 = vadd.f32 0.0, %v1062
      %v1064 = vpop.f32.mrf.mxu0
      %1065 = vmatprep.mubr.f32.mxu0 0.0
      %1066 = vmatmul.mubr.f32.gmra.mxu0 %v973
      %v1067 = vpop.f32.mrf.mxu0
      %v1068 = vadd.f32 0.0, %v1067
      %v1069 = vpop.f32.mrf.mxu0
      %1070 = vmatprep.mubr.f32.mxu0 0.0
      %1071 = vmatmul.mubr.f32.gmra.mxu0 %v975
      %v1072 = vpop.f32.mrf.mxu0
      %v1073 = vadd.f32 0.0, %v1072
      %v1074 = vpop.f32.mrf.mxu0
      %1075 = vmatprep.mubr.f32.mxu0 0.0
      %1076 = vmatmul.mubr.f32.gmra.mxu0 %v977
      %v1077 = vpop.f32.mrf.mxu0
      %v1078 = vadd.f32 0.0, %v1077
      %v1079 = vpop.f32.mrf.mxu0
      %1080 = vmatprep.mubr.f32.mxu0 0.0
      %1081 = vmatmul.mubr.f32.gmra.mxu0 %v979
      %v1082 = vpop.f32.mrf.mxu0
      %v1083 = vadd.f32 0.0, %v1082
      %v1084 = vpop.f32.mrf.mxu0
      %1085 = vdwg.mxu0
      %v1086 = vsel %vm843, %v588, 0
      %v1088 = vsel %vm843, %v590, 0
      %v1090 = vsel %vm843, %v592, 0
      %v1092 = vsel %vm843, %v594, 0
      %v1094 = vsel %vm843, %v596, 0
      %v1096 = vsel %vm843, %v598, 0
      %v1098 = vsel %vm843, %v600, 0
      %v1100 = vsel %vm843, %v602, 0
      %1102 = vmatprep.subr.mxu0 0.0
      %1103 = vmatpush1.msra.mxu0 0.0
      %1104 = vmatprep.subr.mxu0 0.0
      %1105 = vmatpush1.msra.mxu0 0.0
      %1106 = vmatprep.subr.mxu0 0.0
      %1107 = vmatpush1.msra.mxu0 0.0
      %1108 = vmatprep.subr.mxu0 0.0
      %1109 = vmatpush1.msra.mxu0 0.0
      %1110 = vmatprep.subr.mxu0 0.0
      %1111 = vmatpush1.msra.mxu0 0.0
      %1112 = vmatprep.subr.mxu0 0.0
      %1113 = vmatpush1.msra.mxu0 0.0
      %1114 = vmatprep.subr.mxu0 0.0
      %1115 = vmatpush1.msra.mxu0 0.0
      %1116 = vmatprep.subr.mxu0 0.0
      %1117 = vmatpush1.msra.mxu0 0.0
      %1118 = vmatprep.subr.mxu0 0.0
      %1119 = vmatpush1.msra.mxu0 0.0
      %1120 = vmatprep.subr.mxu0 0.0
      %1121 = vmatpush1.msra.mxu0 0.0
      %1122 = vmatprep.subr.mxu0 0.0
      %1123 = vmatpush1.msra.mxu0 0.0
      %1124 = vmatprep.subr.mxu0 0.0
      %1125 = vmatpush1.msra.mxu0 0.0
      %1126 = vmatprep.subr.mxu0 0.0
      %1127 = vmatpush1.msra.mxu0 0.0
      %1128 = vmatprep.subr.mxu0 0.0
      %1129 = vmatpush1.msra.mxu0 0.0
      %1130 = vmatprep.subr.mxu0 0.0
      %1131 = vmatpush1.msra.mxu0 0.0
      %1132 = vmatprep.subr.mxu0 0.0
      %1133 = vmatpush1.msra.mxu0 %v795
      %1134 = vmatprep.subr.mxu0 0.0
      %1135 = vmatpush2.msra.mxu0 0.0
      %1136 = vmatprep.subr.mxu0 0.0
      %1137 = vmatpush2.msra.mxu0 0.0
      %1138 = vmatprep.subr.mxu0 0.0
      %1139 = vmatpush2.msra.mxu0 0.0
      %1140 = vmatprep.subr.mxu0 0.0
      %1141 = vmatpush2.msra.mxu0 0.0
      %1142 = vmatprep.subr.mxu0 0.0
      %1143 = vmatpush2.msra.mxu0 0.0
      %1144 = vmatprep.subr.mxu0 0.0
      %1145 = vmatpush2.msra.mxu0 0.0
      %1146 = vmatprep.subr.mxu0 0.0
      %1147 = vmatpush2.msra.mxu0 0.0
      %1148 = vmatprep.subr.mxu0 0.0
      %1149 = vmatpush2.msra.mxu0 0.0
      %1150 = vmatprep.subr.mxu0 0.0
      %1151 = vmatpush2.msra.mxu0 0.0
      %1152 = vmatprep.subr.mxu0 0.0
      %1153 = vmatpush2.msra.mxu0 0.0
      %1154 = vmatprep.subr.mxu0 0.0
      %1155 = vmatpush2.msra.mxu0 0.0
      %1156 = vmatprep.subr.mxu0 0.0
      %1157 = vmatpush2.msra.mxu0 0.0
      %1158 = vmatprep.subr.mxu0 0.0
      %1159 = vmatpush2.msra.mxu0 0.0
      %1160 = vmatprep.subr.mxu0 0.0
      %1161 = vmatpush2.msra.mxu0 0.0
      %1162 = vmatprep.subr.mxu0 0.0
      %1163 = vmatpush2.msra.mxu0 0.0
      %1164 = vmatprep.subr.mxu0 0.0
      %1165 = vmatpush2.msra.mxu0 0.0
      %1166 = vmatprep.mubr.f32.mxu0 0.0
      %1167 = vmatmul.mubr.f32.gmra.mxu0 %v1086
      %v1168 = vpop.f32.mrf.mxu0
      %v1169 = vadd.f32 0.0, %v1168
      %v1170 = vpop.f32.mrf.mxu0
      %1171 = vmatprep.mubr.f32.mxu0 0.0
      %1172 = vmatmul.mubr.f32.gmra.mxu0 %v1088
      %v1173 = vpop.f32.mrf.mxu0
      %v1174 = vadd.f32 0.0, %v1173
      %v1175 = vpop.f32.mrf.mxu0
      %1176 = vmatprep.mubr.f32.mxu0 0.0
      %1177 = vmatmul.mubr.f32.gmra.mxu0 %v1090
      %v1178 = vpop.f32.mrf.mxu0
      %v1179 = vadd.f32 0.0, %v1178
      %v1180 = vpop.f32.mrf.mxu0
      %1181 = vmatprep.mubr.f32.mxu0 0.0
      %1182 = vmatmul.mubr.f32.gmra.mxu0 %v1092
      %v1183 = vpop.f32.mrf.mxu0
      %v1184 = vadd.f32 0.0, %v1183
      %v1185 = vpop.f32.mrf.mxu0
      %1186 = vmatprep.mubr.f32.mxu0 0.0
      %1187 = vmatmul.mubr.f32.gmra.mxu0 %v1094
      %v1188 = vpop.f32.mrf.mxu0
      %v1189 = vadd.f32 0.0, %v1188
      %v1190 = vpop.f32.mrf.mxu0
      %1191 = vmatprep.mubr.f32.mxu0 0.0
      %1192 = vmatmul.mubr.f32.gmra.mxu0 %v1096
      %v1193 = vpop.f32.mrf.mxu0
      %v1194 = vadd.f32 0.0, %v1193
      %v1195 = vpop.f32.mrf.mxu0
      %1196 = vmatprep.mubr.f32.mxu0 0.0
      %1197 = vmatmul.mubr.f32.gmra.mxu0 %v1098
      %v1198 = vpop.f32.mrf.mxu0
      %v1199 = vadd.f32 0.0, %v1198
      %v1200 = vpop.f32.mrf.mxu0
      %1201 = vmatprep.mubr.f32.mxu0 0.0
      %1202 = vmatmul.mubr.f32.gmra.mxu0 %v1100
      %v1203 = vpop.f32.mrf.mxu0
      %v1204 = vadd.f32 0.0, %v1203
      %v1205 = vpop.f32.mrf.mxu0
      %1206 = vdwg.mxu0
      %v1207 = vsel %vm843, %v604, 0
      %v1209 = vsel %vm843, %v606, 0
      %v1211 = vsel %vm843, %v608, 0
      %v1213 = vsel %vm843, %v610, 0
      %v1215 = vsel %vm843, %v612, 0
      %v1217 = vsel %vm843, %v614, 0
      %v1219 = vsel %vm843, %v616, 0
      %v1221 = vsel %vm843, %v618, 0
      %1223 = vmatprep.subr.mxu0 0.0
      %1224 = vmatpush1.msra.mxu0 0.0
      %1225 = vmatprep.subr.mxu0 0.0
      %1226 = vmatpush1.msra.mxu0 0.0
      %1227 = vmatprep.subr.mxu0 0.0
      %1228 = vmatpush1.msra.mxu0 0.0
      %1229 = vmatprep.subr.mxu0 0.0
      %1230 = vmatpush1.msra.mxu0 0.0
      %1231 = vmatprep.subr.mxu0 0.0
      %1232 = vmatpush1.msra.mxu0 0.0
      %1233 = vmatprep.subr.mxu0 0.0
      %1234 = vmatpush1.msra.mxu0 0.0
      %1235 = vmatprep.subr.mxu0 0.0
      %1236 = vmatpush1.msra.mxu0 0.0
      %1237 = vmatprep.subr.mxu0 0.0
      %1238 = vmatpush1.msra.mxu0 0.0
      %1239 = vmatprep.subr.mxu0 0.0
      %1240 = vmatpush1.msra.mxu0 0.0
      %1241 = vmatprep.subr.mxu0 0.0
      %1242 = vmatpush1.msra.mxu0 0.0
      %1243 = vmatprep.subr.mxu0 0.0
      %1244 = vmatpush1.msra.mxu0 0.0
      %1245 = vmatprep.subr.mxu0 0.0
      %1246 = vmatpush1.msra.mxu0 0.0
      %1247 = vmatprep.subr.mxu0 0.0
      %1248 = vmatpush1.msra.mxu0 0.0
      %1249 = vmatprep.subr.mxu0 0.0
      %1250 = vmatpush1.msra.mxu0 0.0
      %1251 = vmatprep.subr.mxu0 0.0
      %1252 = vmatpush1.msra.mxu0 0.0
      %1253 = vmatprep.subr.mxu0 0.0
      %1254 = vmatpush1.msra.mxu0 %v827
      %1255 = vmatprep.subr.mxu0 0.0
      %1256 = vmatpush2.msra.mxu0 0.0
      %1257 = vmatprep.subr.mxu0 0.0
      %1258 = vmatpush2.msra.mxu0 0.0
      %1259 = vmatprep.subr.mxu0 0.0
      %1260 = vmatpush2.msra.mxu0 0.0
      %1261 = vmatprep.subr.mxu0 0.0
      %1262 = vmatpush2.msra.mxu0 0.0
      %1263 = vmatprep.subr.mxu0 0.0
      %1264 = vmatpush2.msra.mxu0 0.0
      %1265 = vmatprep.subr.mxu0 0.0
      %1266 = vmatpush2.msra.mxu0 0.0
      %1267 = vmatprep.subr.mxu0 0.0
      %1268 = vmatpush2.msra.mxu0 0.0
      %1269 = vmatprep.subr.mxu0 0.0
      %1270 = vmatpush2.msra.mxu0 0.0
      %1271 = vmatprep.subr.mxu0 0.0
      %1272 = vmatpush2.msra.mxu0 0.0
      %1273 = vmatprep.subr.mxu0 0.0
      %1274 = vmatpush2.msra.mxu0 0.0
      %1275 = vmatprep.subr.mxu0 0.0
      %1276 = vmatpush2.msra.mxu0 0.0
      %1277 = vmatprep.subr.mxu0 0.0
      %1278 = vmatpush2.msra.mxu0 0.0
      %1279 = vmatprep.subr.mxu0 0.0
      %1280 = vmatpush2.msra.mxu0 0.0
      %1281 = vmatprep.subr.mxu0 0.0
      %1282 = vmatpush2.msra.mxu0 0.0
      %1283 = vmatprep.subr.mxu0 0.0
      %1284 = vmatpush2.msra.mxu0 0.0
      %1285 = vmatprep.subr.mxu0 0.0
      %1286 = vmatpush2.msra.mxu0 0.0
      %1287 = vmatprep.mubr.f32.mxu0 0.0
      %1288 = vmatmul.mubr.f32.gmra.mxu0 %v1207
      %v1289 = vpop.f32.mrf.mxu0
      %v1290 = vadd.f32 0.0, %v1289
      %v1291 = vpop.f32.mrf.mxu0
      %1292 = vmatprep.mubr.f32.mxu0 0.0
      %1293 = vmatmul.mubr.f32.gmra.mxu0 %v1209
      %v1294 = vpop.f32.mrf.mxu0
      %v1295 = vadd.f32 0.0, %v1294
      %v1296 = vpop.f32.mrf.mxu0
      %1297 = vmatprep.mubr.f32.mxu0 0.0
      %1298 = vmatmul.mubr.f32.gmra.mxu0 %v1211
      %v1299 = vpop.f32.mrf.mxu0
      %v1300 = vadd.f32 0.0, %v1299
      %v1301 = vpop.f32.mrf.mxu0
      %1302 = vmatprep.mubr.f32.mxu0 0.0
      %1303 = vmatmul.mubr.f32.gmra.mxu0 %v1213
      %v1304 = vpop.f32.mrf.mxu0
      %v1305 = vadd.f32 0.0, %v1304
      %v1306 = vpop.f32.mrf.mxu0
      %1307 = vmatprep.mubr.f32.mxu0 0.0
      %1308 = vmatmul.mubr.f32.gmra.mxu0 %v1215
      %v1309 = vpop.f32.mrf.mxu0
      %v1310 = vadd.f32 0.0, %v1309
      %v1311 = vpop.f32.mrf.mxu0
      %1312 = vmatprep.mubr.f32.mxu0 0.0
      %1313 = vmatmul.mubr.f32.gmra.mxu0 %v1217
      %v1314 = vpop.f32.mrf.mxu0
      %v1315 = vadd.f32 0.0, %v1314
      %v1316 = vpop.f32.mrf.mxu0
      %1317 = vmatprep.mubr.f32.mxu0 0.0
      %1318 = vmatmul.mubr.f32.gmra.mxu0 %v1219
      %v1319 = vpop.f32.mrf.mxu0
      %v1320 = vadd.f32 0.0, %v1319
      %v1321 = vpop.f32.mrf.mxu0
      %1322 = vmatprep.mubr.f32.mxu0 0.0
      %1323 = vmatmul.mubr.f32.gmra.mxu0 %v1221
      %v1324 = vpop.f32.mrf.mxu0
      %v1325 = vadd.f32 0.0, %v1324
      %v1326 = vpop.f32.mrf.mxu0
      %1327 = vdwg.mxu0
      %vm1328 = vcmask 523264
      %v1329 = vsel %vm1328, %v927, -inf
      %1330 = vmax.xlane.f32.xlu0 %v1329
      %v1331 = vpop.xlane.xlu0 %1330
      %v1332 = vsel %vm1328, %v932, -inf
      %1333 = vmax.xlane.f32.xlu0 %v1332
      %v1334 = vpop.xlane.xlu0 %1333
      %v1335 = vsel %vm1328, %v937, -inf
      %1336 = vmax.xlane.f32.xlu0 %v1335
      %v1337 = vpop.xlane.xlu0 %1336
      %v1338 = vsel %vm1328, %v942, -inf
      %1339 = vmax.xlane.f32.xlu0 %v1338
      %v1340 = vpop.xlane.xlu0 %1339
      %v1341 = vsel %vm1328, %v947, -inf
      %1342 = vmax.xlane.f32.xlu0 %v1341
      %v1343 = vpop.xlane.xlu0 %1342
      %v1344 = vsel %vm1328, %v952, -inf
      %1345 = vmax.xlane.f32.xlu0 %v1344
      %v1346 = vpop.xlane.xlu0 %1345
      %v1347 = vsel %vm1328, %v957, -inf
      %1348 = vmax.xlane.f32.xlu0 %v1347
      %v1349 = vpop.xlane.xlu0 %1348
      %v1350 = vsel %vm1328, %v962, -inf
      %1351 = vmax.xlane.f32.xlu0 %v1350
      %v1352 = vpop.xlane.xlu0 %1351
      %v1353 = vsel %vm1328, %v1048, -inf
      %1354 = vmax.xlane.f32.xlu0 %v1353
      %v1355 = vpop.xlane.xlu0 %1354
      %v1356 = vsel %vm1328, %v1053, -inf
      %1357 = vmax.xlane.f32.xlu0 %v1356
      %v1358 = vpop.xlane.xlu0 %1357
      %v1359 = vsel %vm1328, %v1058, -inf
      %1360 = vmax.xlane.f32.xlu0 %v1359
      %v1361 = vpop.xlane.xlu0 %1360
      %v1362 = vsel %vm1328, %v1063, -inf
      %1363 = vmax.xlane.f32.xlu0 %v1362
      %v1364 = vpop.xlane.xlu0 %1363
      %v1365 = vsel %vm1328, %v1068, -inf
      %1366 = vmax.xlane.f32.xlu0 %v1365
      %v1367 = vpop.xlane.xlu0 %1366
      %v1368 = vsel %vm1328, %v1073, -inf
      %1369 = vmax.xlane.f32.xlu0 %v1368
      %v1370 = vpop.xlane.xlu0 %1369
      %v1371 = vsel %vm1328, %v1078, -inf
      %1372 = vmax.xlane.f32.xlu0 %v1371
      %v1373 = vpop.xlane.xlu0 %1372
      %v1374 = vsel %vm1328, %v1083, -inf
      %1375 = vmax.xlane.f32.xlu0 %v1374
      %v1376 = vpop.xlane.xlu0 %1375
      %v1377 = vsel %vm1328, %v1169, -inf
      %1378 = vmax.xlane.f32.xlu0 %v1377
      %v1379 = vpop.xlane.xlu0 %1378
      %v1380 = vsel %vm1328, %v1174, -inf
      %1381 = vmax.xlane.f32.xlu0 %v1380
      %v1382 = vpop.xlane.xlu0 %1381
      %v1383 = vsel %vm1328, %v1179, -inf
      %1384 = vmax.xlane.f32.xlu0 %v1383
      %v1385 = vpop.xlane.xlu0 %1384
      %v1386 = vsel %vm1328, %v1184, -inf
      %1387 = vmax.xlane.f32.xlu0 %v1386
      %v1388 = vpop.xlane.xlu0 %1387
      %v1389 = vsel %vm1328, %v1189, -inf
      %1390 = vmax.xlane.f32.xlu0 %v1389
      %v1391 = vpop.xlane.xlu0 %1390
      %v1392 = vsel %vm1328, %v1194, -inf
      %1393 = vmax.xlane.f32.xlu0 %v1392
      %v1394 = vpop.xlane.xlu0 %1393
      %v1395 = vsel %vm1328, %v1199, -inf
      %1396 = vmax.xlane.f32.xlu0 %v1395
      %v1397 = vpop.xlane.xlu0 %1396
      %v1398 = vsel %vm1328, %v1204, -inf
      %1399 = vmax.xlane.f32.xlu0 %v1398
      %v1400 = vpop.xlane.xlu0 %1399
      %v1401 = vsel %vm1328, %v1290, -inf
      %1402 = vmax.xlane.f32.xlu0 %v1401
      %v1403 = vpop.xlane.xlu0 %1402
      %v1404 = vsel %vm1328, %v1295, -inf
      %1405 = vmax.xlane.f32.xlu0 %v1404
      %v1406 = vpop.xlane.xlu0 %1405
      %v1407 = vsel %vm1328, %v1300, -inf
      %1408 = vmax.xlane.f32.xlu0 %v1407
      %v1409 = vpop.xlane.xlu0 %1408
      %v1410 = vsel %vm1328, %v1305, -inf
      %1411 = vmax.xlane.f32.xlu0 %v1410
      %v1412 = vpop.xlane.xlu0 %1411
      %v1413 = vsel %vm1328, %v1310, -inf
      %1414 = vmax.xlane.f32.xlu0 %v1413
      %v1415 = vpop.xlane.xlu0 %1414
      %v1416 = vsel %vm1328, %v1315, -inf
      %1417 = vmax.xlane.f32.xlu0 %v1416
      %v1418 = vpop.xlane.xlu0 %1417
      %v1419 = vsel %vm1328, %v1320, -inf
      %1420 = vmax.xlane.f32.xlu0 %v1419
      %v1421 = vpop.xlane.xlu0 %1420
      %v1422 = vsel %vm1328, %v1325, -inf
      %1423 = vmax.xlane.f32.xlu0 %v1422
      %v1424 = vpop.xlane.xlu0 %1423
      %v1425 = vsub.f32 %v927, %v1331
      %v1426 = vsub.f32 %v932, %v1334
      %v1427 = vsub.f32 %v937, %v1337
      %v1428 = vsub.f32 %v942, %v1340
      %v1429 = vsub.f32 %v947, %v1343
      %v1430 = vsub.f32 %v952, %v1346
      %v1431 = vsub.f32 %v957, %v1349
      %v1432 = vsub.f32 %v962, %v1352
      %v1433 = vsub.f32 %v1048, %v1355
      %v1434 = vsub.f32 %v1053, %v1358
      %v1435 = vsub.f32 %v1058, %v1361
      %v1436 = vsub.f32 %v1063, %v1364
      %v1437 = vsub.f32 %v1068, %v1367
      %v1438 = vsub.f32 %v1073, %v1370
      %v1439 = vsub.f32 %v1078, %v1373
      %v1440 = vsub.f32 %v1083, %v1376
      %v1441 = vsub.f32 %v1169, %v1379
      %v1442 = vsub.f32 %v1174, %v1382
      %v1443 = vsub.f32 %v1179, %v1385
      %v1444 = vsub.f32 %v1184, %v1388
      %v1445 = vsub.f32 %v1189, %v1391
      %v1446 = vsub.f32 %v1194, %v1394
      %v1447 = vsub.f32 %v1199, %v1397
      %v1448 = vsub.f32 %v1204, %v1400
      %v1449 = vsub.f32 %v1290, %v1403
      %v1450 = vsub.f32 %v1295, %v1406
      %v1451 = vsub.f32 %v1300, %v1409
      %v1452 = vsub.f32 %v1305, %v1412
      %v1453 = vsub.f32 %v1310, %v1415
      %v1454 = vsub.f32 %v1315, %v1418
      %v1455 = vsub.f32 %v1320, %v1421
      %v1456 = vsub.f32 %v1325, %v1424
      %v1457 = vmul.f32 %v1425, 1.442695
      %v1458 = vpow.pop %v1457
      %v1459 = vmul.f32 %v1426, 1.442695
      %v1460 = vpow.pop %v1459
      %v1461 = vmul.f32 %v1427, 1.442695
      %v1462 = vpow.pop %v1461
      %v1463 = vmul.f32 %v1428, 1.442695
      %v1464 = vpow.pop %v1463
      %v1465 = vmul.f32 %v1429, 1.442695
      %v1466 = vpow.pop %v1465
      %v1467 = vmul.f32 %v1430, 1.442695
      %v1468 = vpow.pop %v1467
      %v1469 = vmul.f32 %v1431, 1.442695
      %v1470 = vpow.pop %v1469
      %v1471 = vmul.f32 %v1432, 1.442695
      %v1472 = vpow.pop %v1471
      %v1473 = vmul.f32 %v1433, 1.442695
      %v1474 = vpow.pop %v1473
      %v1475 = vmul.f32 %v1434, 1.442695
      %v1476 = vpow.pop %v1475
      %v1477 = vmul.f32 %v1435, 1.442695
      %v1478 = vpow.pop %v1477
      %v1479 = vmul.f32 %v1436, 1.442695
      %v1480 = vpow.pop %v1479
      %v1481 = vmul.f32 %v1437, 1.442695
      %v1482 = vpow.pop %v1481
      %v1483 = vmul.f32 %v1438, 1.442695
      %v1484 = vpow.pop %v1483
      %v1485 = vmul.f32 %v1439, 1.442695
      %v1486 = vpow.pop %v1485
      %v1487 = vmul.f32 %v1440, 1.442695
      %v1488 = vpow.pop %v1487
      %v1489 = vmul.f32 %v1441, 1.442695
      %v1490 = vpow.pop %v1489
      %v1491 = vmul.f32 %v1442, 1.442695
      %v1492 = vpow.pop %v1491
      %v1493 = vmul.f32 %v1443, 1.442695
      %v1494 = vpow.pop %v1493
      %v1495 = vmul.f32 %v1444, 1.442695
      %v1496 = vpow.pop %v1495
      %v1497 = vmul.f32 %v1445, 1.442695
      %v1498 = vpow.pop %v1497
      %v1499 = vmul.f32 %v1446, 1.442695
      %v1500 = vpow.pop %v1499
      %v1501 = vmul.f32 %v1447, 1.442695
      %v1502 = vpow.pop %v1501
      %v1503 = vmul.f32 %v1448, 1.442695
      %v1504 = vpow.pop %v1503
      %v1505 = vmul.f32 %v1449, 1.442695
      %v1506 = vpow.pop %v1505
      %v1507 = vmul.f32 %v1450, 1.442695
      %v1508 = vpow.pop %v1507
      %v1509 = vmul.f32 %v1451, 1.442695
      %v1510 = vpow.pop %v1509
      %v1511 = vmul.f32 %v1452, 1.442695
      %v1512 = vpow.pop %v1511
      %v1513 = vmul.f32 %v1453, 1.442695
      %v1514 = vpow.pop %v1513
      %v1515 = vmul.f32 %v1454, 1.442695
      %v1516 = vpow.pop %v1515
      %v1517 = vmul.f32 %v1455, 1.442695
      %v1518 = vpow.pop %v1517
      %v1519 = vmul.f32 %v1456, 1.442695
      %v1520 = vpow.pop %v1519
      %v1521 = vsel %vm1328, %v1458, 0.0
      %1522 = vadd.xlane.f32.xlu0 %v1521
      %v1523 = vpop.xlane.xlu0 %1522
      %v1524 = vsel %vm1328, %v1460, 0.0
      %1525 = vadd.xlane.f32.xlu0 %v1524
      %v1526 = vpop.xlane.xlu0 %1525
      %v1527 = vsel %vm1328, %v1462, 0.0
      %1528 = vadd.xlane.f32.xlu0 %v1527
      %v1529 = vpop.xlane.xlu0 %1528
      %v1530 = vsel %vm1328, %v1464, 0.0
      %1531 = vadd.xlane.f32.xlu0 %v1530
      %v1532 = vpop.xlane.xlu0 %1531
      %v1533 = vsel %vm1328, %v1466, 0.0
      %1534 = vadd.xlane.f32.xlu0 %v1533
      %v1535 = vpop.xlane.xlu0 %1534
      %v1536 = vsel %vm1328, %v1468, 0.0
      %1537 = vadd.xlane.f32.xlu0 %v1536
      %v1538 = vpop.xlane.xlu0 %1537
      %v1539 = vsel %vm1328, %v1470, 0.0
      %1540 = vadd.xlane.f32.xlu0 %v1539
      %v1541 = vpop.xlane.xlu0 %1540
      %v1542 = vsel %vm1328, %v1472, 0.0
      %1543 = vadd.xlane.f32.xlu0 %v1542
      %v1544 = vpop.xlane.xlu0 %1543
      %v1545 = vsel %vm1328, %v1474, 0.0
      %1546 = vadd.xlane.f32.xlu0 %v1545
      %v1547 = vpop.xlane.xlu0 %1546
      %v1548 = vsel %vm1328, %v1476, 0.0
      %1549 = vadd.xlane.f32.xlu0 %v1548
      %v1550 = vpop.xlane.xlu0 %1549
      %v1551 = vsel %vm1328, %v1478, 0.0
      %1552 = vadd.xlane.f32.xlu0 %v1551
      %v1553 = vpop.xlane.xlu0 %1552
      %v1554 = vsel %vm1328, %v1480, 0.0
      %1555 = vadd.xlane.f32.xlu0 %v1554
      %v1556 = vpop.xlane.xlu0 %1555
      %v1557 = vsel %vm1328, %v1482, 0.0
      %1558 = vadd.xlane.f32.xlu0 %v1557
      %v1559 = vpop.xlane.xlu0 %1558
      %v1560 = vsel %vm1328, %v1484, 0.0
      %1561 = vadd.xlane.f32.xlu0 %v1560
      %v1562 = vpop.xlane.xlu0 %1561
      %v1563 = vsel %vm1328, %v1486, 0.0
      %1564 = vadd.xlane.f32.xlu0 %v1563
      %v1565 = vpop.xlane.xlu0 %1564
      %v1566 = vsel %vm1328, %v1488, 0.0
      %1567 = vadd.xlane.f32.xlu0 %v1566
      %v1568 = vpop.xlane.xlu0 %1567
      %v1569 = vsel %vm1328, %v1490, 0.0
      %1570 = vadd.xlane.f32.xlu0 %v1569
      %v1571 = vpop.xlane.xlu0 %1570
      %v1572 = vsel %vm1328, %v1492, 0.0
      %1573 = vadd.xlane.f32.xlu0 %v1572
      %v1574 = vpop.xlane.xlu0 %1573
      %v1575 = vsel %vm1328, %v1494, 0.0
      %1576 = vadd.xlane.f32.xlu0 %v1575
      %v1577 = vpop.xlane.xlu0 %1576
      %v1578 = vsel %vm1328, %v1496, 0.0
      %1579 = vadd.xlane.f32.xlu0 %v1578
      %v1580 = vpop.xlane.xlu0 %1579
      %v1581 = vsel %vm1328, %v1498, 0.0
      %1582 = vadd.xlane.f32.xlu0 %v1581
      %v1583 = vpop.xlane.xlu0 %1582
      %v1584 = vsel %vm1328, %v1500, 0.0
      %1585 = vadd.xlane.f32.xlu0 %v1584
      %v1586 = vpop.xlane.xlu0 %1585
      %v1587 = vsel %vm1328, %v1502, 0.0
      %1588 = vadd.xlane.f32.xlu0 %v1587
      %v1589 = vpop.xlane.xlu0 %1588
      %v1590 = vsel %vm1328, %v1504, 0.0
      %1591 = vadd.xlane.f32.xlu0 %v1590
      %v1592 = vpop.xlane.xlu0 %1591
      %v1593 = vsel %vm1328, %v1506, 0.0
      %1594 = vadd.xlane.f32.xlu0 %v1593
      %v1595 = vpop.xlane.xlu0 %1594
      %v1596 = vsel %vm1328, %v1508, 0.0
      %1597 = vadd.xlane.f32.xlu0 %v1596
      %v1598 = vpop.xlane.xlu0 %1597
      %v1599 = vsel %vm1328, %v1510, 0.0
      %1600 = vadd.xlane.f32.xlu0 %v1599
      %v1601 = vpop.xlane.xlu0 %1600
      %v1602 = vsel %vm1328, %v1512, 0.0
      %1603 = vadd.xlane.f32.xlu0 %v1602
      %v1604 = vpop.xlane.xlu0 %1603
      %v1605 = vsel %vm1328, %v1514, 0.0
      %1606 = vadd.xlane.f32.xlu0 %v1605
      %v1607 = vpop.xlane.xlu0 %1606
      %v1608 = vsel %vm1328, %v1516, 0.0
      %1609 = vadd.xlane.f32.xlu0 %v1608
      %v1610 = vpop.xlane.xlu0 %1609
      %v1611 = vsel %vm1328, %v1518, 0.0
      %1612 = vadd.xlane.f32.xlu0 %v1611
      %v1613 = vpop.xlane.xlu0 %1612
      %v1614 = vsel %vm1328, %v1520, 0.0
      %1615 = vadd.xlane.f32.xlu0 %v1614
      %v1616 = vpop.xlane.xlu0 %1615
      %v1617 = vrcp.pop %v1523
      %v1618 = vrcp.pop %v1526
      %v1619 = vrcp.pop %v1529
      %v1620 = vrcp.pop %v1532
      %v1621 = vrcp.pop %v1535
      %v1622 = vrcp.pop %v1538
      %v1623 = vrcp.pop %v1541
      %v1624 = vrcp.pop %v1544
      %v1625 = vrcp.pop %v1547
      %v1626 = vrcp.pop %v1550
      %v1627 = vrcp.pop %v1553
      %v1628 = vrcp.pop %v1556
      %v1629 = vrcp.pop %v1559
      %v1630 = vrcp.pop %v1562
      %v1631 = vrcp.pop %v1565
      %v1632 = vrcp.pop %v1568
      %v1633 = vrcp.pop %v1571
      %v1634 = vrcp.pop %v1574
      %v1635 = vrcp.pop %v1577
      %v1636 = vrcp.pop %v1580
      %v1637 = vrcp.pop %v1583
      %v1638 = vrcp.pop %v1586
      %v1639 = vrcp.pop %v1589
      %v1640 = vrcp.pop %v1592
      %v1641 = vrcp.pop %v1595
      %v1642 = vrcp.pop %v1598
      %v1643 = vrcp.pop %v1601
      %v1644 = vrcp.pop %v1604
      %v1645 = vrcp.pop %v1607
      %v1646 = vrcp.pop %v1610
      %v1647 = vrcp.pop %v1613
      %v1648 = vrcp.pop %v1616
      %v1649 = vmul.f32 %v1458, %v1617
      %v1650 = vmul.f32 %v1460, %v1618
      %v1651 = vmul.f32 %v1462, %v1619
      %v1652 = vmul.f32 %v1464, %v1620
      %v1653 = vmul.f32 %v1466, %v1621
      %v1654 = vmul.f32 %v1468, %v1622
      %v1655 = vmul.f32 %v1470, %v1623
      %v1656 = vmul.f32 %v1472, %v1624
      %v1657 = vmul.f32 %v1474, %v1625
      %v1658 = vmul.f32 %v1476, %v1626
      %v1659 = vmul.f32 %v1478, %v1627
      %v1660 = vmul.f32 %v1480, %v1628
      %v1661 = vmul.f32 %v1482, %v1629
      %v1662 = vmul.f32 %v1484, %v1630
      %v1663 = vmul.f32 %v1486, %v1631
      %v1664 = vmul.f32 %v1488, %v1632
      %v1665 = vmul.f32 %v1490, %v1633
      %v1666 = vmul.f32 %v1492, %v1634
      %v1667 = vmul.f32 %v1494, %v1635
      %v1668 = vmul.f32 %v1496, %v1636
      %v1669 = vmul.f32 %v1498, %v1637
      %v1670 = vmul.f32 %v1500, %v1638
      %v1671 = vmul.f32 %v1502, %v1639
      %v1672 = vmul.f32 %v1504, %v1640
      %v1673 = vmul.f32 %v1506, %v1641
      %v1674 = vmul.f32 %v1508, %v1642
      %v1675 = vmul.f32 %v1510, %v1643
      %v1676 = vmul.f32 %v1512, %v1644
      %v1677 = vmul.f32 %v1514, %v1645
      %v1678 = vmul.f32 %v1516, %v1646
      %v1679 = vmul.f32 %v1518, %v1647
      %v1680 = vmul.f32 %v1520, %v1648
      %1681 = vrot.lane.b32.xlu0 %v525, 64
      %v1682 = vpop.permute.xlu0 %1681
      %1683 = vrot.lane.b32.xlu0 %v530, 64
      %v1684 = vpop.permute.xlu0 %1683
      %1685 = vrot.lane.b32.xlu0 %v535, 64
      %v1686 = vpop.permute.xlu0 %1685
      %1687 = vrot.lane.b32.xlu0 %v540, 64
      %v1688 = vpop.permute.xlu0 %1687
      %1689 = vrot.lane.b32.xlu0 %v545, 64
      %v1690 = vpop.permute.xlu0 %1689
      %1691 = vrot.lane.b32.xlu0 %v550, 64
      %v1692 = vpop.permute.xlu0 %1691
      %1693 = vrot.lane.b32.xlu0 %v555, 64
      %v1694 = vpop.permute.xlu0 %1693
      %1695 = vrot.lane.b32.xlu0 %v560, 64
      %v1696 = vpop.permute.xlu0 %1695
      %1697 = vrot.lane.b32.xlu0 %v572, 64
      %v1698 = vpop.permute.xlu0 %1697
      %1699 = vrot.lane.b32.xlu0 %v574, 64
      %v1700 = vpop.permute.xlu0 %1699
      %1701 = vrot.lane.b32.xlu0 %v576, 64
      %v1702 = vpop.permute.xlu0 %1701
      %1703 = vrot.lane.b32.xlu0 %v578, 64
      %v1704 = vpop.permute.xlu0 %1703
      %1705 = vrot.lane.b32.xlu0 %v580, 64
      %v1706 = vpop.permute.xlu0 %1705
      %1707 = vrot.lane.b32.xlu0 %v582, 64
      %v1708 = vpop.permute.xlu0 %1707
      %1709 = vrot.lane.b32.xlu0 %v584, 64
      %v1710 = vpop.permute.xlu0 %1709
      %1711 = vrot.lane.b32.xlu0 %v586, 64
      %v1712 = vpop.permute.xlu0 %1711
      %1713 = vrot.lane.b32.xlu0 %v588, 64
      %v1714 = vpop.permute.xlu0 %1713
      %1715 = vrot.lane.b32.xlu0 %v590, 64
      %v1716 = vpop.permute.xlu0 %1715
      %1717 = vrot.lane.b32.xlu0 %v592, 64
      %v1718 = vpop.permute.xlu0 %1717
      %1719 = vrot.lane.b32.xlu0 %v594, 64
      %v1720 = vpop.permute.xlu0 %1719
      %1721 = vrot.lane.b32.xlu0 %v596, 64
      %v1722 = vpop.permute.xlu0 %1721
      %1723 = vrot.lane.b32.xlu0 %v598, 64
      %v1724 = vpop.permute.xlu0 %1723
      %1725 = vrot.lane.b32.xlu0 %v600, 64
      %v1726 = vpop.permute.xlu0 %1725
      %1727 = vrot.lane.b32.xlu0 %v602, 64
      %v1728 = vpop.permute.xlu0 %1727
      %1729 = vrot.lane.b32.xlu0 %v604, 64
      %v1730 = vpop.permute.xlu0 %1729
      %1731 = vrot.lane.b32.xlu0 %v606, 64
      %v1732 = vpop.permute.xlu0 %1731
      %1733 = vrot.lane.b32.xlu0 %v608, 64
      %v1734 = vpop.permute.xlu0 %1733
      %1735 = vrot.lane.b32.xlu0 %v610, 64
      %v1736 = vpop.permute.xlu0 %1735
      %1737 = vrot.lane.b32.xlu0 %v612, 64
      %v1738 = vpop.permute.xlu0 %1737
      %1739 = vrot.lane.b32.xlu0 %v614, 64
      %v1740 = vpop.permute.xlu0 %1739
      %1741 = vrot.lane.b32.xlu0 %v616, 64
      %v1742 = vpop.permute.xlu0 %1741
      %1743 = vrot.lane.b32.xlu0 %v618, 64
      %v1744 = vpop.permute.xlu0 %1743
      %1777 = vxpose.xlu0.b32.start [1/16] %v1682, 128
      %1778 = vxpose.xlu0.b32.cont [2/16] %v1684, 128
      %1779 = vxpose.xlu0.b32.cont [3/16] %v1686, 128
      %1780 = vxpose.xlu0.b32.cont [4/16] %v1688, 128
      %1781 = vxpose.xlu0.b32.cont [5/16] %v1690, 128
      %1782 = vxpose.xlu0.b32.cont [6/16] %v1692, 128
      %1783 = vxpose.xlu0.b32.cont [7/16] %v1694, 128
      %1784 = vxpose.xlu0.b32.cont [8/16] %v1696, 128
      %1785 = vxpose.xlu0.b32.cont [9/16] 0.0, 128
      %1786 = vxpose.xlu0.b32.cont [10/16] 0.0, 128
      %1787 = vxpose.xlu0.b32.cont [11/16] 0.0, 128
      %1788 = vxpose.xlu0.b32.cont [12/16] 0.0, 128
      %1789 = vxpose.xlu0.b32.cont [13/16] 0.0, 128
      %1790 = vxpose.xlu0.b32.cont [14/16] 0.0, 128
      %1791 = vxpose.xlu0.b32.cont [15/16] 0.0, 128
      %1792 = vxpose.xlu0.b32.end [16/16] 0.0, 128
      %v1793 = vpop.trf.xlu0
      %v1794 = vpop.trf.xlu0
      %v1795 = vpop.trf.xlu0
      %v1796 = vpop.trf.xlu0
      %v1797 = vpop.trf.xlu0
      %v1798 = vpop.trf.xlu0
      %v1799 = vpop.trf.xlu0
      %v1800 = vpop.trf.xlu0
      %v1801 = vpop.trf.xlu0
      %v1802 = vpop.trf.xlu0
      %v1803 = vpop.trf.xlu0
      %v1804 = vpop.trf.xlu0
      %v1805 = vpop.trf.xlu0
      %v1806 = vpop.trf.xlu0
      %v1807 = vpop.trf.xlu0
      %v1808 = vpop.trf.xlu0
      %1809 = vxpose.xlu0.b32.start [1/16] %v1698, 128
      %1810 = vxpose.xlu0.b32.cont [2/16] %v1700, 128
      %1811 = vxpose.xlu0.b32.cont [3/16] %v1702, 128
      %1812 = vxpose.xlu0.b32.cont [4/16] %v1704, 128
      %1813 = vxpose.xlu0.b32.cont [5/16] %v1706, 128
      %1814 = vxpose.xlu0.b32.cont [6/16] %v1708, 128
      %1815 = vxpose.xlu0.b32.cont [7/16] %v1710, 128
      %1816 = vxpose.xlu0.b32.cont [8/16] %v1712, 128
      %1817 = vxpose.xlu0.b32.cont [9/16] 0.0, 128
      %1818 = vxpose.xlu0.b32.cont [10/16] 0.0, 128
      %1819 = vxpose.xlu0.b32.cont [11/16] 0.0, 128
      %1820 = vxpose.xlu0.b32.cont [12/16] 0.0, 128
      %1821 = vxpose.xlu0.b32.cont [13/16] 0.0, 128
      %1822 = vxpose.xlu0.b32.cont [14/16] 0.0, 128
      %1823 = vxpose.xlu0.b32.cont [15/16] 0.0, 128
      %1824 = vxpose.xlu0.b32.end [16/16] 0.0, 128
      %v1825 = vpop.trf.xlu0
      %v1826 = vpop.trf.xlu0
      %v1827 = vpop.trf.xlu0
      %v1828 = vpop.trf.xlu0
      %v1829 = vpop.trf.xlu0
      %v1830 = vpop.trf.xlu0
      %v1831 = vpop.trf.xlu0
      %v1832 = vpop.trf.xlu0
      %v1833 = vpop.trf.xlu0
      %v1834 = vpop.trf.xlu0
      %v1835 = vpop.trf.xlu0
      %v1836 = vpop.trf.xlu0
      %v1837 = vpop.trf.xlu0
      %v1838 = vpop.trf.xlu0
      %v1839 = vpop.trf.xlu0
      %v1840 = vpop.trf.xlu0
      %1841 = vxpose.xlu0.b32.start [1/16] %v1714, 128
      %1842 = vxpose.xlu0.b32.cont [2/16] %v1716, 128
      %1843 = vxpose.xlu0.b32.cont [3/16] %v1718, 128
      %1844 = vxpose.xlu0.b32.cont [4/16] %v1720, 128
      %1845 = vxpose.xlu0.b32.cont [5/16] %v1722, 128
      %1846 = vxpose.xlu0.b32.cont [6/16] %v1724, 128
      %1847 = vxpose.xlu0.b32.cont [7/16] %v1726, 128
      %1848 = vxpose.xlu0.b32.cont [8/16] %v1728, 128
      %1849 = vxpose.xlu0.b32.cont [9/16] 0.0, 128
      %1850 = vxpose.xlu0.b32.cont [10/16] 0.0, 128
      %1851 = vxpose.xlu0.b32.cont [11/16] 0.0, 128
      %1852 = vxpose.xlu0.b32.cont [12/16] 0.0, 128
      %1853 = vxpose.xlu0.b32.cont [13/16] 0.0, 128
      %1854 = vxpose.xlu0.b32.cont [14/16] 0.0, 128
      %1855 = vxpose.xlu0.b32.cont [15/16] 0.0, 128
      %1856 = vxpose.xlu0.b32.end [16/16] 0.0, 128
      %v1857 = vpop.trf.xlu0
      %v1858 = vpop.trf.xlu0
      %v1859 = vpop.trf.xlu0
      %v1860 = vpop.trf.xlu0
      %v1861 = vpop.trf.xlu0
      %v1862 = vpop.trf.xlu0
      %v1863 = vpop.trf.xlu0
      %v1864 = vpop.trf.xlu0
      %v1865 = vpop.trf.xlu0
      %v1866 = vpop.trf.xlu0
      %v1867 = vpop.trf.xlu0
      %v1868 = vpop.trf.xlu0
      %v1869 = vpop.trf.xlu0
      %v1870 = vpop.trf.xlu0
      %v1871 = vpop.trf.xlu0
      %v1872 = vpop.trf.xlu0
      %1873 = vxpose.xlu0.b32.start [1/16] %v1730, 128
      %1874 = vxpose.xlu0.b32.cont [2/16] %v1732, 128
      %1875 = vxpose.xlu0.b32.cont [3/16] %v1734, 128
      %1876 = vxpose.xlu0.b32.cont [4/16] %v1736, 128
      %1877 = vxpose.xlu0.b32.cont [5/16] %v1738, 128
      %1878 = vxpose.xlu0.b32.cont [6/16] %v1740, 128
      %1879 = vxpose.xlu0.b32.cont [7/16] %v1742, 128
      %1880 = vxpose.xlu0.b32.cont [8/16] %v1744, 128
      %1881 = vxpose.xlu0.b32.cont [9/16] 0.0, 128
      %1882 = vxpose.xlu0.b32.cont [10/16] 0.0, 128
      %1883 = vxpose.xlu0.b32.cont [11/16] 0.0, 128
      %1884 = vxpose.xlu0.b32.cont [12/16] 0.0, 128
      %1885 = vxpose.xlu0.b32.cont [13/16] 0.0, 128
      %1886 = vxpose.xlu0.b32.cont [14/16] 0.0, 128
      %1887 = vxpose.xlu0.b32.cont [15/16] 0.0, 128
      %1888 = vxpose.xlu0.b32.end [16/16] 0.0, 128
      %v1889 = vpop.trf.xlu0
      %v1890 = vpop.trf.xlu0
      %v1891 = vpop.trf.xlu0
      %v1892 = vpop.trf.xlu0
      %v1893 = vpop.trf.xlu0
      %v1894 = vpop.trf.xlu0
      %v1895 = vpop.trf.xlu0
      %v1896 = vpop.trf.xlu0
      %v1897 = vpop.trf.xlu0
      %v1898 = vpop.trf.xlu0
      %v1899 = vpop.trf.xlu0
      %v1900 = vpop.trf.xlu0
      %v1901 = vpop.trf.xlu0
      %v1902 = vpop.trf.xlu0
      %v1903 = vpop.trf.xlu0
      %v1904 = vpop.trf.xlu0
      %v1906 = vsel %vm1328, %v1793, 0
      %v1909 = vsel %vm1328, %v1649, 0
      %v1912 = vsel %vm1328, %v1650, 0
      %v1915 = vsel %vm1328, %v1651, 0
      %v1918 = vsel %vm1328, %v1652, 0
      %v1921 = vsel %vm1328, %v1653, 0
      %v1924 = vsel %vm1328, %v1654, 0
      %v1927 = vsel %vm1328, %v1655, 0
      %v1930 = vsel %vm1328, %v1656, 0
      %1932 = vmatprep.subr.mxu0 0.0
      %1933 = vmatpush1.xpose.msra.mxu0 0.0
      %1934 = vmatprep.subr.mxu0 0.0
      %1935 = vmatpush1.xpose.msra.mxu0 0.0
      %1936 = vmatprep.subr.mxu0 0.0
      %1937 = vmatpush1.xpose.msra.mxu0 0.0
      %1938 = vmatprep.subr.mxu0 0.0
      %1939 = vmatpush1.xpose.msra.mxu0 0.0
      %1940 = vmatprep.subr.mxu0 0.0
      %1941 = vmatpush1.xpose.msra.mxu0 0.0
      %1942 = vmatprep.subr.mxu0 0.0
      %1943 = vmatpush1.xpose.msra.mxu0 0.0
      %1944 = vmatprep.subr.mxu0 0.0
      %1945 = vmatpush1.xpose.msra.mxu0 0.0
      %1946 = vmatprep.subr.mxu0 0.0
      %1947 = vmatpush1.xpose.msra.mxu0 0.0
      %1948 = vmatprep.subr.mxu0 0.0
      %1949 = vmatpush1.xpose.msra.mxu0 %v1930
      %1950 = vmatprep.subr.mxu0 0.0
      %1951 = vmatpush1.xpose.msra.mxu0 %v1927
      %1952 = vmatprep.subr.mxu0 0.0
      %1953 = vmatpush1.xpose.msra.mxu0 %v1924
      %1954 = vmatprep.subr.mxu0 0.0
      %1955 = vmatpush1.xpose.msra.mxu0 %v1921
      %1956 = vmatprep.subr.mxu0 0.0
      %1957 = vmatpush1.xpose.msra.mxu0 %v1918
      %1958 = vmatprep.subr.mxu0 0.0
      %1959 = vmatpush1.xpose.msra.mxu0 %v1915
      %1960 = vmatprep.subr.mxu0 0.0
      %1961 = vmatpush1.xpose.msra.mxu0 %v1912
      %1962 = vmatprep.subr.mxu0 0.0
      %1963 = vmatpush1.xpose.msra.mxu0 %v1909
      %1964 = vmatprep.subr.mxu0 0.0
      %1965 = vmatpush2.xpose.msra.mxu0 0.0
      %1966 = vmatprep.subr.mxu0 0.0
      %1967 = vmatpush2.xpose.msra.mxu0 0.0
      %1968 = vmatprep.subr.mxu0 0.0
      %1969 = vmatpush2.xpose.msra.mxu0 0.0
      %1970 = vmatprep.subr.mxu0 0.0
      %1971 = vmatpush2.xpose.msra.mxu0 0.0
      %1972 = vmatprep.subr.mxu0 0.0
      %1973 = vmatpush2.xpose.msra.mxu0 0.0
      %1974 = vmatprep.subr.mxu0 0.0
      %1975 = vmatpush2.xpose.msra.mxu0 0.0
      %1976 = vmatprep.subr.mxu0 0.0
      %1977 = vmatpush2.xpose.msra.mxu0 0.0
      %1978 = vmatprep.subr.mxu0 0.0
      %1979 = vmatpush2.xpose.msra.mxu0 0.0
      %1980 = vmatprep.subr.mxu0 0.0
      %1981 = vmatpush2.xpose.msra.mxu0 0.0
      %1982 = vmatprep.subr.mxu0 0.0
      %1983 = vmatpush2.xpose.msra.mxu0 0.0
      %1984 = vmatprep.subr.mxu0 0.0
      %1985 = vmatpush2.xpose.msra.mxu0 0.0
      %1986 = vmatprep.subr.mxu0 0.0
      %1987 = vmatpush2.xpose.msra.mxu0 0.0
      %1988 = vmatprep.subr.mxu0 0.0
      %1989 = vmatpush2.xpose.msra.mxu0 0.0
      %1990 = vmatprep.subr.mxu0 0.0
      %1991 = vmatpush2.xpose.msra.mxu0 0.0
      %1992 = vmatprep.subr.mxu0 0.0
      %1993 = vmatpush2.xpose.msra.mxu0 0.0
      %1994 = vmatprep.subr.mxu0 0.0
      %1995 = vmatpush2.xpose.msra.mxu0 0.0
      %1996 = vmatprep.mubr.f32.mxu0 0.0
      %1997 = vmatmul.mubr.f32.gmra.mxu0 %v1906
      %v1998 = vpop.f32.mrf.mxu0
      %v1999 = vadd.f32 0.0, %v1998
      %v2000 = vpop.f32.mrf.mxu0
      %2001 = vdwg.mxu0
      %v2003 = vsel %vm1328, %v1825, 0
      %v2006 = vsel %vm1328, %v1657, 0
      %v2009 = vsel %vm1328, %v1658, 0
      %v2012 = vsel %vm1328, %v1659, 0
      %v2015 = vsel %vm1328, %v1660, 0
      %v2018 = vsel %vm1328, %v1661, 0
      %v2021 = vsel %vm1328, %v1662, 0
      %v2024 = vsel %vm1328, %v1663, 0
      %v2027 = vsel %vm1328, %v1664, 0
      %2029 = vmatprep.subr.mxu0 0.0
      %2030 = vmatpush1.xpose.msra.mxu0 0.0
      %2031 = vmatprep.subr.mxu0 0.0
      %2032 = vmatpush1.xpose.msra.mxu0 0.0
      %2033 = vmatprep.subr.mxu0 0.0
      %2034 = vmatpush1.xpose.msra.mxu0 0.0
      %2035 = vmatprep.subr.mxu0 0.0
      %2036 = vmatpush1.xpose.msra.mxu0 0.0
      %2037 = vmatprep.subr.mxu0 0.0
      %2038 = vmatpush1.xpose.msra.mxu0 0.0
      %2039 = vmatprep.subr.mxu0 0.0
      %2040 = vmatpush1.xpose.msra.mxu0 0.0
      %2041 = vmatprep.subr.mxu0 0.0
      %2042 = vmatpush1.xpose.msra.mxu0 0.0
      %2043 = vmatprep.subr.mxu0 0.0
      %2044 = vmatpush1.xpose.msra.mxu0 0.0
      %2045 = vmatprep.subr.mxu0 0.0
      %2046 = vmatpush1.xpose.msra.mxu0 %v2027
      %2047 = vmatprep.subr.mxu0 0.0
      %2048 = vmatpush1.xpose.msra.mxu0 %v2024
      %2049 = vmatprep.subr.mxu0 0.0
      %2050 = vmatpush1.xpose.msra.mxu0 %v2021
      %2051 = vmatprep.subr.mxu0 0.0
      %2052 = vmatpush1.xpose.msra.mxu0 %v2018
      %2053 = vmatprep.subr.mxu0 0.0
      %2054 = vmatpush1.xpose.msra.mxu0 %v2015
      %2055 = vmatprep.subr.mxu0 0.0
      %2056 = vmatpush1.xpose.msra.mxu0 %v2012
      %2057 = vmatprep.subr.mxu0 0.0
      %2058 = vmatpush1.xpose.msra.mxu0 %v2009
      %2059 = vmatprep.subr.mxu0 0.0
      %2060 = vmatpush1.xpose.msra.mxu0 %v2006
      %2061 = vmatprep.subr.mxu0 0.0
      %2062 = vmatpush2.xpose.msra.mxu0 0.0
      %2063 = vmatprep.subr.mxu0 0.0
      %2064 = vmatpush2.xpose.msra.mxu0 0.0
      %2065 = vmatprep.subr.mxu0 0.0
      %2066 = vmatpush2.xpose.msra.mxu0 0.0
      %2067 = vmatprep.subr.mxu0 0.0
      %2068 = vmatpush2.xpose.msra.mxu0 0.0
      %2069 = vmatprep.subr.mxu0 0.0
      %2070 = vmatpush2.xpose.msra.mxu0 0.0
      %2071 = vmatprep.subr.mxu0 0.0
      %2072 = vmatpush2.xpose.msra.mxu0 0.0
      %2073 = vmatprep.subr.mxu0 0.0
      %2074 = vmatpush2.xpose.msra.mxu0 0.0
      %2075 = vmatprep.subr.mxu0 0.0
      %2076 = vmatpush2.xpose.msra.mxu0 0.0
      %2077 = vmatprep.subr.mxu0 0.0
      %2078 = vmatpush2.xpose.msra.mxu0 0.0
      %2079 = vmatprep.subr.mxu0 0.0
      %2080 = vmatpush2.xpose.msra.mxu0 0.0
      %2081 = vmatprep.subr.mxu0 0.0
      %2082 = vmatpush2.xpose.msra.mxu0 0.0
      %2083 = vmatprep.subr.mxu0 0.0
      %2084 = vmatpush2.xpose.msra.mxu0 0.0
      %2085 = vmatprep.subr.mxu0 0.0
      %2086 = vmatpush2.xpose.msra.mxu0 0.0
      %2087 = vmatprep.subr.mxu0 0.0
      %2088 = vmatpush2.xpose.msra.mxu0 0.0
      %2089 = vmatprep.subr.mxu0 0.0
      %2090 = vmatpush2.xpose.msra.mxu0 0.0
      %2091 = vmatprep.subr.mxu0 0.0
      %2092 = vmatpush2.xpose.msra.mxu0 0.0
      %2093 = vmatprep.mubr.f32.mxu0 0.0
      %2094 = vmatmul.mubr.f32.gmra.mxu0 %v2003
      %v2095 = vpop.f32.mrf.mxu0
      %v2096 = vadd.f32 0.0, %v2095
      %v2097 = vpop.f32.mrf.mxu0
      %2098 = vdwg.mxu0
      %v2100 = vsel %vm1328, %v1857, 0
      %v2103 = vsel %vm1328, %v1665, 0
      %v2106 = vsel %vm1328, %v1666, 0
      %v2109 = vsel %vm1328, %v1667, 0
      %v2112 = vsel %vm1328, %v1668, 0
      %v2115 = vsel %vm1328, %v1669, 0
      %v2118 = vsel %vm1328, %v1670, 0
      %v2121 = vsel %vm1328, %v1671, 0
      %v2124 = vsel %vm1328, %v1672, 0
      %2126 = vmatprep.subr.mxu0 0.0
      %2127 = vmatpush1.xpose.msra.mxu0 0.0
      %2128 = vmatprep.subr.mxu0 0.0
      %2129 = vmatpush1.xpose.msra.mxu0 0.0
      %2130 = vmatprep.subr.mxu0 0.0
      %2131 = vmatpush1.xpose.msra.mxu0 0.0
      %2132 = vmatprep.subr.mxu0 0.0
      %2133 = vmatpush1.xpose.msra.mxu0 0.0
      %2134 = vmatprep.subr.mxu0 0.0
      %2135 = vmatpush1.xpose.msra.mxu0 0.0
      %2136 = vmatprep.subr.mxu0 0.0
      %2137 = vmatpush1.xpose.msra.mxu0 0.0
      %2138 = vmatprep.subr.mxu0 0.0
      %2139 = vmatpush1.xpose.msra.mxu0 0.0
      %2140 = vmatprep.subr.mxu0 0.0
      %2141 = vmatpush1.xpose.msra.mxu0 0.0
      %2142 = vmatprep.subr.mxu0 0.0
      %2143 = vmatpush1.xpose.msra.mxu0 %v2124
      %2144 = vmatprep.subr.mxu0 0.0
      %2145 = vmatpush1.xpose.msra.mxu0 %v2121
      %2146 = vmatprep.subr.mxu0 0.0
      %2147 = vmatpush1.xpose.msra.mxu0 %v2118
      %2148 = vmatprep.subr.mxu0 0.0
      %2149 = vmatpush1.xpose.msra.mxu0 %v2115
      %2150 = vmatprep.subr.mxu0 0.0
      %2151 = vmatpush1.xpose.msra.mxu0 %v2112
      %2152 = vmatprep.subr.mxu0 0.0
      %2153 = vmatpush1.xpose.msra.mxu0 %v2109
      %2154 = vmatprep.subr.mxu0 0.0
      %2155 = vmatpush1.xpose.msra.mxu0 %v2106
      %2156 = vmatprep.subr.mxu0 0.0
      %2157 = vmatpush1.xpose.msra.mxu0 %v2103
      %2158 = vmatprep.subr.mxu0 0.0
      %2159 = vmatpush2.xpose.msra.mxu0 0.0
      %2160 = vmatprep.subr.mxu0 0.0
      %2161 = vmatpush2.xpose.msra.mxu0 0.0
      %2162 = vmatprep.subr.mxu0 0.0
      %2163 = vmatpush2.xpose.msra.mxu0 0.0
      %2164 = vmatprep.subr.mxu0 0.0
      %2165 = vmatpush2.xpose.msra.mxu0 0.0
      %2166 = vmatprep.subr.mxu0 0.0
      %2167 = vmatpush2.xpose.msra.mxu0 0.0
      %2168 = vmatprep.subr.mxu0 0.0
      %2169 = vmatpush2.xpose.msra.mxu0 0.0
      %2170 = vmatprep.subr.mxu0 0.0
      %2171 = vmatpush2.xpose.msra.mxu0 0.0
      %2172 = vmatprep.subr.mxu0 0.0
      %2173 = vmatpush2.xpose.msra.mxu0 0.0
      %2174 = vmatprep.subr.mxu0 0.0
      %2175 = vmatpush2.xpose.msra.mxu0 0.0
      %2176 = vmatprep.subr.mxu0 0.0
      %2177 = vmatpush2.xpose.msra.mxu0 0.0
      %2178 = vmatprep.subr.mxu0 0.0
      %2179 = vmatpush2.xpose.msra.mxu0 0.0
      %2180 = vmatprep.subr.mxu0 0.0
      %2181 = vmatpush2.xpose.msra.mxu0 0.0
      %2182 = vmatprep.subr.mxu0 0.0
      %2183 = vmatpush2.xpose.msra.mxu0 0.0
      %2184 = vmatprep.subr.mxu0 0.0
      %2185 = vmatpush2.xpose.msra.mxu0 0.0
      %2186 = vmatprep.subr.mxu0 0.0
      %2187 = vmatpush2.xpose.msra.mxu0 0.0
      %2188 = vmatprep.subr.mxu0 0.0
      %2189 = vmatpush2.xpose.msra.mxu0 0.0
      %2190 = vmatprep.mubr.f32.mxu0 0.0
      %2191 = vmatmul.mubr.f32.gmra.mxu0 %v2100
      %v2192 = vpop.f32.mrf.mxu0
      %v2193 = vadd.f32 0.0, %v2192
      %v2194 = vpop.f32.mrf.mxu0
      %2195 = vdwg.mxu0
      %v2197 = vsel %vm1328, %v1889, 0
      %v2200 = vsel %vm1328, %v1673, 0
      %v2203 = vsel %vm1328, %v1674, 0
      %v2206 = vsel %vm1328, %v1675, 0
      %v2209 = vsel %vm1328, %v1676, 0
      %v2212 = vsel %vm1328, %v1677, 0
      %v2215 = vsel %vm1328, %v1678, 0
      %v2218 = vsel %vm1328, %v1679, 0
      %v2221 = vsel %vm1328, %v1680, 0
      %2223 = vmatprep.subr.mxu0 0.0
      %2224 = vmatpush1.xpose.msra.mxu0 0.0
      %2225 = vmatprep.subr.mxu0 0.0
      %2226 = vmatpush1.xpose.msra.mxu0 0.0
      %2227 = vmatprep.subr.mxu0 0.0
      %2228 = vmatpush1.xpose.msra.mxu0 0.0
      %2229 = vmatprep.subr.mxu0 0.0
      %2230 = vmatpush1.xpose.msra.mxu0 0.0
      %2231 = vmatprep.subr.mxu0 0.0
      %2232 = vmatpush1.xpose.msra.mxu0 0.0
      %2233 = vmatprep.subr.mxu0 0.0
      %2234 = vmatpush1.xpose.msra.mxu0 0.0
      %2235 = vmatprep.subr.mxu0 0.0
      %2236 = vmatpush1.xpose.msra.mxu0 0.0
      %2237 = vmatprep.subr.mxu0 0.0
      %2238 = vmatpush1.xpose.msra.mxu0 0.0
      %2239 = vmatprep.subr.mxu0 0.0
      %2240 = vmatpush1.xpose.msra.mxu0 %v2221
      %2241 = vmatprep.subr.mxu0 0.0
      %2242 = vmatpush1.xpose.msra.mxu0 %v2218
      %2243 = vmatprep.subr.mxu0 0.0
      %2244 = vmatpush1.xpose.msra.mxu0 %v2215
      %2245 = vmatprep.subr.mxu0 0.0
      %2246 = vmatpush1.xpose.msra.mxu0 %v2212
      %2247 = vmatprep.subr.mxu0 0.0
      %2248 = vmatpush1.xpose.msra.mxu0 %v2209
      %2249 = vmatprep.subr.mxu0 0.0
      %2250 = vmatpush1.xpose.msra.mxu0 %v2206
      %2251 = vmatprep.subr.mxu0 0.0
      %2252 = vmatpush1.xpose.msra.mxu0 %v2203
      %2253 = vmatprep.subr.mxu0 0.0
      %2254 = vmatpush1.xpose.msra.mxu0 %v2200
      %2255 = vmatprep.subr.mxu0 0.0
      %2256 = vmatpush2.xpose.msra.mxu0 0.0
      %2257 = vmatprep.subr.mxu0 0.0
      %2258 = vmatpush2.xpose.msra.mxu0 0.0
      %2259 = vmatprep.subr.mxu0 0.0
      %2260 = vmatpush2.xpose.msra.mxu0 0.0
      %2261 = vmatprep.subr.mxu0 0.0
      %2262 = vmatpush2.xpose.msra.mxu0 0.0
      %2263 = vmatprep.subr.mxu0 0.0
      %2264 = vmatpush2.xpose.msra.mxu0 0.0
      %2265 = vmatprep.subr.mxu0 0.0
      %2266 = vmatpush2.xpose.msra.mxu0 0.0
      %2267 = vmatprep.subr.mxu0 0.0
      %2268 = vmatpush2.xpose.msra.mxu0 0.0
      %2269 = vmatprep.subr.mxu0 0.0
      %2270 = vmatpush2.xpose.msra.mxu0 0.0
      %2271 = vmatprep.subr.mxu0 0.0
      %2272 = vmatpush2.xpose.msra.mxu0 0.0
      %2273 = vmatprep.subr.mxu0 0.0
      %2274 = vmatpush2.xpose.msra.mxu0 0.0
      %2275 = vmatprep.subr.mxu0 0.0
      %2276 = vmatpush2.xpose.msra.mxu0 0.0
      %2277 = vmatprep.subr.mxu0 0.0
      %2278 = vmatpush2.xpose.msra.mxu0 0.0
      %2279 = vmatprep.subr.mxu0 0.0
      %2280 = vmatpush2.xpose.msra.mxu0 0.0
      %2281 = vmatprep.subr.mxu0 0.0
      %2282 = vmatpush2.xpose.msra.mxu0 0.0
      %2283 = vmatprep.subr.mxu0 0.0
      %2284 = vmatpush2.xpose.msra.mxu0 0.0
      %2285 = vmatprep.subr.mxu0 0.0
      %2286 = vmatpush2.xpose.msra.mxu0 0.0
      %2287 = vmatprep.mubr.f32.mxu0 0.0
      %2288 = vmatmul.mubr.f32.gmra.mxu0 %v2197
      %v2289 = vpop.f32.mrf.mxu0
      %v2290 = vadd.f32 0.0, %v2289
      %v2291 = vpop.f32.mrf.mxu0
      %2292 = vdwg.mxu0
      %2293 = vxpose.xlu0.b32.start [1/16] %v1999, 128
      %2294 = vxpose.xlu0.b32.cont [2/16] 0.0, 128
      %2295 = vxpose.xlu0.b32.cont [3/16] 0.0, 128
      %2296 = vxpose.xlu0.b32.cont [4/16] 0.0, 128
      %2297 = vxpose.xlu0.b32.cont [5/16] 0.0, 128
      %2298 = vxpose.xlu0.b32.cont [6/16] 0.0, 128
      %2299 = vxpose.xlu0.b32.cont [7/16] 0.0, 128
      %2300 = vxpose.xlu0.b32.cont [8/16] 0.0, 128
      %2301 = vxpose.xlu0.b32.cont [9/16] 0.0, 128
      %2302 = vxpose.xlu0.b32.cont [10/16] 0.0, 128
      %2303 = vxpose.xlu0.b32.cont [11/16] 0.0, 128
      %2304 = vxpose.xlu0.b32.cont [12/16] 0.0, 128
      %2305 = vxpose.xlu0.b32.cont [13/16] 0.0, 128
      %2306 = vxpose.xlu0.b32.cont [14/16] 0.0, 128
      %2307 = vxpose.xlu0.b32.cont [15/16] 0.0, 128
      %2308 = vxpose.xlu0.b32.end [16/16] 0.0, 128
      %v2309 = vpop.trf.xlu0
      %v2310 = vpop.trf.xlu0
      %v2311 = vpop.trf.xlu0
      %v2312 = vpop.trf.xlu0
      %v2313 = vpop.trf.xlu0
      %v2314 = vpop.trf.xlu0
      %v2315 = vpop.trf.xlu0
      %v2316 = vpop.trf.xlu0
      %v2317 = vpop.trf.xlu0
      %v2318 = vpop.trf.xlu0
      %v2319 = vpop.trf.xlu0
      %v2320 = vpop.trf.xlu0
      %v2321 = vpop.trf.xlu0
      %v2322 = vpop.trf.xlu0
      %v2323 = vpop.trf.xlu0
      %v2324 = vpop.trf.xlu0
      %2325 = vxpose.xlu0.b32.start [1/16] %v2096, 128
      %2326 = vxpose.xlu0.b32.cont [2/16] 0.0, 128
      %2327 = vxpose.xlu0.b32.cont [3/16] 0.0, 128
      %2328 = vxpose.xlu0.b32.cont [4/16] 0.0, 128
      %2329 = vxpose.xlu0.b32.cont [5/16] 0.0, 128
      %2330 = vxpose.xlu0.b32.cont [6/16] 0.0, 128
      %2331 = vxpose.xlu0.b32.cont [7/16] 0.0, 128
      %2332 = vxpose.xlu0.b32.cont [8/16] 0.0, 128
      %2333 = vxpose.xlu0.b32.cont [9/16] 0.0, 128
      %2334 = vxpose.xlu0.b32.cont [10/16] 0.0, 128
      %2335 = vxpose.xlu0.b32.cont [11/16] 0.0, 128
      %2336 = vxpose.xlu0.b32.cont [12/16] 0.0, 128
      %2337 = vxpose.xlu0.b32.cont [13/16] 0.0, 128
      %2338 = vxpose.xlu0.b32.cont [14/16] 0.0, 128
      %2339 = vxpose.xlu0.b32.cont [15/16] 0.0, 128
      %2340 = vxpose.xlu0.b32.end [16/16] 0.0, 128
      %v2341 = vpop.trf.xlu0
      %v2342 = vpop.trf.xlu0
      %v2343 = vpop.trf.xlu0
      %v2344 = vpop.trf.xlu0
      %v2345 = vpop.trf.xlu0
      %v2346 = vpop.trf.xlu0
      %v2347 = vpop.trf.xlu0
      %v2348 = vpop.trf.xlu0
      %v2349 = vpop.trf.xlu0
      %v2350 = vpop.trf.xlu0
      %v2351 = vpop.trf.xlu0
      %v2352 = vpop.trf.xlu0
      %v2353 = vpop.trf.xlu0
      %v2354 = vpop.trf.xlu0
      %v2355 = vpop.trf.xlu0
      %v2356 = vpop.trf.xlu0
      %2357 = vxpose.xlu0.b32.start [1/16] %v2193, 128
      %2358 = vxpose.xlu0.b32.cont [2/16] 0.0, 128
      %2359 = vxpose.xlu0.b32.cont [3/16] 0.0, 128
      %2360 = vxpose.xlu0.b32.cont [4/16] 0.0, 128
      %2361 = vxpose.xlu0.b32.cont [5/16] 0.0, 128
      %2362 = vxpose.xlu0.b32.cont [6/16] 0.0, 128
      %2363 = vxpose.xlu0.b32.cont [7/16] 0.0, 128
      %2364 = vxpose.xlu0.b32.cont [8/16] 0.0, 128
      %2365 = vxpose.xlu0.b32.cont [9/16] 0.0, 128
      %2366 = vxpose.xlu0.b32.cont [10/16] 0.0, 128
      %2367 = vxpose.xlu0.b32.cont [11/16] 0.0, 128
      %2368 = vxpose.xlu0.b32.cont [12/16] 0.0, 128
      %2369 = vxpose.xlu0.b32.cont [13/16] 0.0, 128
      %2370 = vxpose.xlu0.b32.cont [14/16] 0.0, 128
      %2371 = vxpose.xlu0.b32.cont [15/16] 0.0, 128
      %2372 = vxpose.xlu0.b32.end [16/16] 0.0, 128
      %v2373 = vpop.trf.xlu0
      %v2374 = vpop.trf.xlu0
      %v2375 = vpop.trf.xlu0
      %v2376 = vpop.trf.xlu0
      %v2377 = vpop.trf.xlu0
      %v2378 = vpop.trf.xlu0
      %v2379 = vpop.trf.xlu0
      %v2380 = vpop.trf.xlu0
      %v2381 = vpop.trf.xlu0
      %v2382 = vpop.trf.xlu0
      %v2383 = vpop.trf.xlu0
      %v2384 = vpop.trf.xlu0
      %v2385 = vpop.trf.xlu0
      %v2386 = vpop.trf.xlu0
      %v2387 = vpop.trf.xlu0
      %v2388 = vpop.trf.xlu0
      %2389 = vxpose.xlu0.b32.start [1/16] %v2290, 128
      %2390 = vxpose.xlu0.b32.cont [2/16] 0.0, 128
      %2391 = vxpose.xlu0.b32.cont [3/16] 0.0, 128
      %2392 = vxpose.xlu0.b32.cont [4/16] 0.0, 128
      %2393 = vxpose.xlu0.b32.cont [5/16] 0.0, 128
      %2394 = vxpose.xlu0.b32.cont [6/16] 0.0, 128
      %2395 = vxpose.xlu0.b32.cont [7/16] 0.0, 128
      %2396 = vxpose.xlu0.b32.cont [8/16] 0.0, 128
      %2397 = vxpose.xlu0.b32.cont [9/16] 0.0, 128
      %2398 = vxpose.xlu0.b32.cont [10/16] 0.0, 128
      %2399 = vxpose.xlu0.b32.cont [11/16] 0.0, 128
      %2400 = vxpose.xlu0.b32.cont [12/16] 0.0, 128
      %2401 = vxpose.xlu0.b32.cont [13/16] 0.0, 128
      %2402 = vxpose.xlu0.b32.cont [14/16] 0.0, 128
      %2403 = vxpose.xlu0.b32.cont [15/16] 0.0, 128
      %2404 = vxpose.xlu0.b32.end [16/16] 0.0, 128
      %v2405 = vpop.trf.xlu0
      %v2406 = vpop.trf.xlu0
      %v2407 = vpop.trf.xlu0
      %v2408 = vpop.trf.xlu0
      %v2409 = vpop.trf.xlu0
      %v2410 = vpop.trf.xlu0
      %v2411 = vpop.trf.xlu0
      %v2412 = vpop.trf.xlu0
      %v2413 = vpop.trf.xlu0
      %v2414 = vpop.trf.xlu0
      %v2415 = vpop.trf.xlu0
      %v2416 = vpop.trf.xlu0
      %v2417 = vpop.trf.xlu0
      %v2418 = vpop.trf.xlu0
      %v2419 = vpop.trf.xlu0
      %v2420 = vpop.trf.xlu0
      %v2421 = vcombine.low %v2309, %v2373
      %v2422 = vcombine.high %v2309, %v2373
      %v2424 = vunpack.c.l.s4 1983009808
      %v2425 = vunpack.c.0.s8 %v2424
      %v2426 = vlaneseq
      %v2427 = vshrl.u32 %v2426, 7
      %v2428 = vsub.s32 %v2425, %v2427
      %v2429 = vrot.slane %v2421, %v2428
      %v2431 = vunpack.c.l.s4 1983009808
      %v2432 = vunpack.c.0.s8 %v2431
      %v2433 = vlaneseq
      %v2434 = vshrl.u32 %v2433, 7
      %v2435 = vsub.s32 %v2432, %v2434
      %v2436 = vrot.slane %v2422, %v2435
      %v2437 = vcombine.low %v2341, %v2405
      %v2438 = vcombine.high %v2341, %v2405
      %v2440 = vunpack.c.l.s4 1983009808
      %v2441 = vunpack.c.0.s8 %v2440
      %v2442 = vlaneseq
      %v2443 = vshrl.u32 %v2442, 7
      %v2444 = vsub.s32 %v2441, %v2443
      %v2445 = vrot.slane %v2437, %v2444
      %v2447 = vunpack.c.l.s4 1983009808
      %v2448 = vunpack.c.0.s8 %v2447
      %v2449 = vlaneseq
      %v2450 = vshrl.u32 %v2449, 7
      %v2451 = vsub.s32 %v2448, %v2450
      %v2452 = vrot.slane %v2438, %v2451
      %v2453 = vcombine.low %v2429, %v2445
      %v2454 = vcombine.high %v2429, %v2445
      %v2456 = vunpack.c.l.s4 1934713408
      %v2457 = vunpack.c.0.s8 %v2456
      %v2458 = vlaneseq
      %v2459 = vshrl.u32 %v2458, 7
      %v2460 = vsub.s32 %v2457, %v2459
      %v2461 = vrot.slane %v2453, %v2460
      %v2463 = vunpack.c.l.s4 1934713408
      %v2464 = vunpack.c.0.s8 %v2463
      %v2465 = vlaneseq
      %v2466 = vshrl.u32 %v2465, 7
      %v2467 = vsub.s32 %v2464, %v2466
      %v2468 = vrot.slane %v2454, %v2467
      %v2469 = vcombine.low %v2436, %v2452
      %v2470 = vcombine.high %v2436, %v2452
      %v2472 = vunpack.c.l.s4 1934713408
      %v2473 = vunpack.c.0.s8 %v2472
      %v2474 = vlaneseq
      %v2475 = vshrl.u32 %v2474, 7
      %v2476 = vsub.s32 %v2473, %v2475
      %v2477 = vrot.slane %v2469, %v2476
      %v2479 = vunpack.c.l.s4 1934713408
      %v2480 = vunpack.c.0.s8 %v2479
      %v2481 = vlaneseq
      %v2482 = vshrl.u32 %v2481, 7
      %v2483 = vsub.s32 %v2480, %v2482
      %v2484 = vrot.slane %v2470, %v2483
      %v2485 = vcombine.high %v2461, 0.0
      %v2486 = vcombine.high %v2468, 0.0
      %v2487 = vcombine.high %v2477, 0.0
      %v2488 = vcombine.high %v2484, 0.0
      %v2489 = vcombine.low %v2310, %v2374
      %v2490 = vcombine.high %v2310, %v2374
      %v2492 = vunpack.c.l.s4 1983009808
      %v2493 = vunpack.c.0.s8 %v2492
      %v2494 = vlaneseq
      %v2495 = vshrl.u32 %v2494, 7
      %v2496 = vsub.s32 %v2493, %v2495
      %v2497 = vrot.slane %v2489, %v2496
      %v2499 = vunpack.c.l.s4 1983009808
      %v2500 = vunpack.c.0.s8 %v2499
      %v2501 = vlaneseq
      %v2502 = vshrl.u32 %v2501, 7
      %v2503 = vsub.s32 %v2500, %v2502
      %v2504 = vrot.slane %v2490, %v2503
      %v2505 = vcombine.low %v2342, %v2406
      %v2506 = vcombine.high %v2342, %v2406
      %v2508 = vunpack.c.l.s4 1983009808
      %v2509 = vunpack.c.0.s8 %v2508
      %v2510 = vlaneseq
      %v2511 = vshrl.u32 %v2510, 7
      %v2512 = vsub.s32 %v2509, %v2511
      %v2513 = vrot.slane %v2505, %v2512
      %v2515 = vunpack.c.l.s4 1983009808
      %v2516 = vunpack.c.0.s8 %v2515
      %v2517 = vlaneseq
      %v2518 = vshrl.u32 %v2517, 7
      %v2519 = vsub.s32 %v2516, %v2518
      %v2520 = vrot.slane %v2506, %v2519
      %v2521 = vcombine.low %v2497, %v2513
      %v2522 = vcombine.high %v2497, %v2513
      %v2524 = vunpack.c.l.s4 1934713408
      %v2525 = vunpack.c.0.s8 %v2524
      %v2526 = vlaneseq
      %v2527 = vshrl.u32 %v2526, 7
      %v2528 = vsub.s32 %v2525, %v2527
      %v2529 = vrot.slane %v2521, %v2528
      %v2531 = vunpack.c.l.s4 1934713408
      %v2532 = vunpack.c.0.s8 %v2531
      %v2533 = vlaneseq
      %v2534 = vshrl.u32 %v2533, 7
      %v2535 = vsub.s32 %v2532, %v2534
      %v2536 = vrot.slane %v2522, %v2535
      %v2537 = vcombine.low %v2504, %v2520
      %v2538 = vcombine.high %v2504, %v2520
      %v2540 = vunpack.c.l.s4 1934713408
      %v2541 = vunpack.c.0.s8 %v2540
      %v2542 = vlaneseq
      %v2543 = vshrl.u32 %v2542, 7
      %v2544 = vsub.s32 %v2541, %v2543
      %v2545 = vrot.slane %v2537, %v2544
      %v2547 = vunpack.c.l.s4 1934713408
      %v2548 = vunpack.c.0.s8 %v2547
      %v2549 = vlaneseq
      %v2550 = vshrl.u32 %v2549, 7
      %v2551 = vsub.s32 %v2548, %v2550
      %v2552 = vrot.slane %v2538, %v2551
      %v2553 = vcombine.high %v2529, 0.0
      %v2554 = vcombine.high %v2536, 0.0
      %v2555 = vcombine.high %v2545, 0.0
      %v2556 = vcombine.high %v2552, 0.0
      %v2557 = vcombine.low %v2311, %v2375
      %v2558 = vcombine.high %v2311, %v2375
      %v2560 = vunpack.c.l.s4 1983009808
      %v2561 = vunpack.c.0.s8 %v2560
      %v2562 = vlaneseq
      %v2563 = vshrl.u32 %v2562, 7
      %v2564 = vsub.s32 %v2561, %v2563
      %v2565 = vrot.slane %v2557, %v2564
      %v2567 = vunpack.c.l.s4 1983009808
      %v2568 = vunpack.c.0.s8 %v2567
      %v2569 = vlaneseq
      %v2570 = vshrl.u32 %v2569, 7
      %v2571 = vsub.s32 %v2568, %v2570
      %v2572 = vrot.slane %v2558, %v2571
      %v2573 = vcombine.low %v2343, %v2407
      %v2574 = vcombine.high %v2343, %v2407
      %v2576 = vunpack.c.l.s4 1983009808
      %v2577 = vunpack.c.0.s8 %v2576
      %v2578 = vlaneseq
      %v2579 = vshrl.u32 %v2578, 7
      %v2580 = vsub.s32 %v2577, %v2579
      %v2581 = vrot.slane %v2573, %v2580
      %v2583 = vunpack.c.l.s4 1983009808
      %v2584 = vunpack.c.0.s8 %v2583
      %v2585 = vlaneseq
      %v2586 = vshrl.u32 %v2585, 7
      %v2587 = vsub.s32 %v2584, %v2586
      %v2588 = vrot.slane %v2574, %v2587
      %v2589 = vcombine.low %v2565, %v2581
      %v2590 = vcombine.high %v2565, %v2581
      %v2592 = vunpack.c.l.s4 1934713408
      %v2593 = vunpack.c.0.s8 %v2592
      %v2594 = vlaneseq
      %v2595 = vshrl.u32 %v2594, 7
      %v2596 = vsub.s32 %v2593, %v2595
      %v2597 = vrot.slane %v2589, %v2596
      %v2599 = vunpack.c.l.s4 1934713408
      %v2600 = vunpack.c.0.s8 %v2599
      %v2601 = vlaneseq
      %v2602 = vshrl.u32 %v2601, 7
      %v2603 = vsub.s32 %v2600, %v2602
      %v2604 = vrot.slane %v2590, %v2603
      %v2605 = vcombine.low %v2572, %v2588
      %v2606 = vcombine.high %v2572, %v2588
      %v2608 = vunpack.c.l.s4 1934713408
      %v2609 = vunpack.c.0.s8 %v2608
      %v2610 = vlaneseq
      %v2611 = vshrl.u32 %v2610, 7
      %v2612 = vsub.s32 %v2609, %v2611
      %v2613 = vrot.slane %v2605, %v2612
      %v2615 = vunpack.c.l.s4 1934713408
      %v2616 = vunpack.c.0.s8 %v2615
      %v2617 = vlaneseq
      %v2618 = vshrl.u32 %v2617, 7
      %v2619 = vsub.s32 %v2616, %v2618
      %v2620 = vrot.slane %v2606, %v2619
      %v2621 = vcombine.high %v2597, 0.0
      %v2622 = vcombine.high %v2604, 0.0
      %v2623 = vcombine.high %v2613, 0.0
      %v2624 = vcombine.high %v2620, 0.0
      %v2625 = vcombine.low %v2312, %v2376
      %v2626 = vcombine.high %v2312, %v2376
      %v2628 = vunpack.c.l.s4 1983009808
      %v2629 = vunpack.c.0.s8 %v2628
      %v2630 = vlaneseq
      %v2631 = vshrl.u32 %v2630, 7
      %v2632 = vsub.s32 %v2629, %v2631
      %v2633 = vrot.slane %v2625, %v2632
      %v2635 = vunpack.c.l.s4 1983009808
      %v2636 = vunpack.c.0.s8 %v2635
      %v2637 = vlaneseq
      %v2638 = vshrl.u32 %v2637, 7
      %v2639 = vsub.s32 %v2636, %v2638
      %v2640 = vrot.slane %v2626, %v2639
      %v2641 = vcombine.low %v2344, %v2408
      %v2642 = vcombine.high %v2344, %v2408
      %v2644 = vunpack.c.l.s4 1983009808
      %v2645 = vunpack.c.0.s8 %v2644
      %v2646 = vlaneseq
      %v2647 = vshrl.u32 %v2646, 7
      %v2648 = vsub.s32 %v2645, %v2647
      %v2649 = vrot.slane %v2641, %v2648
      %v2651 = vunpack.c.l.s4 1983009808
      %v2652 = vunpack.c.0.s8 %v2651
      %v2653 = vlaneseq
      %v2654 = vshrl.u32 %v2653, 7
      %v2655 = vsub.s32 %v2652, %v2654
      %v2656 = vrot.slane %v2642, %v2655
      %v2657 = vcombine.low %v2633, %v2649
      %v2658 = vcombine.high %v2633, %v2649
      %v2660 = vunpack.c.l.s4 1934713408
      %v2661 = vunpack.c.0.s8 %v2660
      %v2662 = vlaneseq
      %v2663 = vshrl.u32 %v2662, 7
      %v2664 = vsub.s32 %v2661, %v2663
      %v2665 = vrot.slane %v2657, %v2664
      %v2667 = vunpack.c.l.s4 1934713408
      %v2668 = vunpack.c.0.s8 %v2667
      %v2669 = vlaneseq
      %v2670 = vshrl.u32 %v2669, 7
      %v2671 = vsub.s32 %v2668, %v2670
      %v2672 = vrot.slane %v2658, %v2671
      %v2673 = vcombine.low %v2640, %v2656
      %v2674 = vcombine.high %v2640, %v2656
      %v2676 = vunpack.c.l.s4 1934713408
      %v2677 = vunpack.c.0.s8 %v2676
      %v2678 = vlaneseq
      %v2679 = vshrl.u32 %v2678, 7
      %v2680 = vsub.s32 %v2677, %v2679
      %v2681 = vrot.slane %v2673, %v2680
      %v2683 = vunpack.c.l.s4 1934713408
      %v2684 = vunpack.c.0.s8 %v2683
      %v2685 = vlaneseq
      %v2686 = vshrl.u32 %v2685, 7
      %v2687 = vsub.s32 %v2684, %v2686
      %v2688 = vrot.slane %v2674, %v2687
      %v2689 = vcombine.high %v2665, 0.0
      %v2690 = vcombine.high %v2672, 0.0
      %v2691 = vcombine.high %v2681, 0.0
      %v2692 = vcombine.high %v2688, 0.0
      %v2693 = vcombine.low %v2313, %v2377
      %v2694 = vcombine.high %v2313, %v2377
      %v2696 = vunpack.c.l.s4 1983009808
      %v2697 = vunpack.c.0.s8 %v2696
      %v2698 = vlaneseq
      %v2699 = vshrl.u32 %v2698, 7
      %v2700 = vsub.s32 %v2697, %v2699
      %v2701 = vrot.slane %v2693, %v2700
      %v2703 = vunpack.c.l.s4 1983009808
      %v2704 = vunpack.c.0.s8 %v2703
      %v2705 = vlaneseq
      %v2706 = vshrl.u32 %v2705, 7
      %v2707 = vsub.s32 %v2704, %v2706
      %v2708 = vrot.slane %v2694, %v2707
      %v2709 = vcombine.low %v2345, %v2409
      %v2710 = vcombine.high %v2345, %v2409
      %v2712 = vunpack.c.l.s4 1983009808
      %v2713 = vunpack.c.0.s8 %v2712
      %v2714 = vlaneseq
      %v2715 = vshrl.u32 %v2714, 7
      %v2716 = vsub.s32 %v2713, %v2715
      %v2717 = vrot.slane %v2709, %v2716
      %v2719 = vunpack.c.l.s4 1983009808
      %v2720 = vunpack.c.0.s8 %v2719
      %v2721 = vlaneseq
      %v2722 = vshrl.u32 %v2721, 7
      %v2723 = vsub.s32 %v2720, %v2722
      %v2724 = vrot.slane %v2710, %v2723
      %v2725 = vcombine.low %v2701, %v2717
      %v2726 = vcombine.high %v2701, %v2717
      %v2728 = vunpack.c.l.s4 1934713408
      %v2729 = vunpack.c.0.s8 %v2728
      %v2730 = vlaneseq
      %v2731 = vshrl.u32 %v2730, 7
      %v2732 = vsub.s32 %v2729, %v2731
      %v2733 = vrot.slane %v2725, %v2732
      %v2735 = vunpack.c.l.s4 1934713408
      %v2736 = vunpack.c.0.s8 %v2735
      %v2737 = vlaneseq
      %v2738 = vshrl.u32 %v2737, 7
      %v2739 = vsub.s32 %v2736, %v2738
      %v2740 = vrot.slane %v2726, %v2739
      %v2741 = vcombine.low %v2708, %v2724
      %v2742 = vcombine.high %v2708, %v2724
      %v2744 = vunpack.c.l.s4 1934713408
      %v2745 = vunpack.c.0.s8 %v2744
      %v2746 = vlaneseq
      %v2747 = vshrl.u32 %v2746, 7
      %v2748 = vsub.s32 %v2745, %v2747
      %v2749 = vrot.slane %v2741, %v2748
      %v2751 = vunpack.c.l.s4 1934713408
      %v2752 = vunpack.c.0.s8 %v2751
      %v2753 = vlaneseq
      %v2754 = vshrl.u32 %v2753, 7
      %v2755 = vsub.s32 %v2752, %v2754
      %v2756 = vrot.slane %v2742, %v2755
      %v2757 = vcombine.high %v2733, 0.0
      %v2758 = vcombine.high %v2740, 0.0
      %v2759 = vcombine.high %v2749, 0.0
      %v2760 = vcombine.high %v2756, 0.0
      %v2761 = vcombine.low %v2314, %v2378
      %v2762 = vcombine.high %v2314, %v2378
      %v2764 = vunpack.c.l.s4 1983009808
      %v2765 = vunpack.c.0.s8 %v2764
      %v2766 = vlaneseq
      %v2767 = vshrl.u32 %v2766, 7
      %v2768 = vsub.s32 %v2765, %v2767
      %v2769 = vrot.slane %v2761, %v2768
      %v2771 = vunpack.c.l.s4 1983009808
      %v2772 = vunpack.c.0.s8 %v2771
      %v2773 = vlaneseq
      %v2774 = vshrl.u32 %v2773, 7
      %v2775 = vsub.s32 %v2772, %v2774
      %v2776 = vrot.slane %v2762, %v2775
      %v2777 = vcombine.low %v2346, %v2410
      %v2778 = vcombine.high %v2346, %v2410
      %v2780 = vunpack.c.l.s4 1983009808
      %v2781 = vunpack.c.0.s8 %v2780
      %v2782 = vlaneseq
      %v2783 = vshrl.u32 %v2782, 7
      %v2784 = vsub.s32 %v2781, %v2783
      %v2785 = vrot.slane %v2777, %v2784
      %v2787 = vunpack.c.l.s4 1983009808
      %v2788 = vunpack.c.0.s8 %v2787
      %v2789 = vlaneseq
      %v2790 = vshrl.u32 %v2789, 7
      %v2791 = vsub.s32 %v2788, %v2790
      %v2792 = vrot.slane %v2778, %v2791
      %v2793 = vcombine.low %v2769, %v2785
      %v2794 = vcombine.high %v2769, %v2785
      %v2796 = vunpack.c.l.s4 1934713408
      %v2797 = vunpack.c.0.s8 %v2796
      %v2798 = vlaneseq
      %v2799 = vshrl.u32 %v2798, 7
      %v2800 = vsub.s32 %v2797, %v2799
      %v2801 = vrot.slane %v2793, %v2800
      %v2803 = vunpack.c.l.s4 1934713408
      %v2804 = vunpack.c.0.s8 %v2803
      %v2805 = vlaneseq
      %v2806 = vshrl.u32 %v2805, 7
      %v2807 = vsub.s32 %v2804, %v2806
      %v2808 = vrot.slane %v2794, %v2807
      %v2809 = vcombine.low %v2776, %v2792
      %v2810 = vcombine.high %v2776, %v2792
      %v2812 = vunpack.c.l.s4 1934713408
      %v2813 = vunpack.c.0.s8 %v2812
      %v2814 = vlaneseq
      %v2815 = vshrl.u32 %v2814, 7
      %v2816 = vsub.s32 %v2813, %v2815
      %v2817 = vrot.slane %v2809, %v2816
      %v2819 = vunpack.c.l.s4 1934713408
      %v2820 = vunpack.c.0.s8 %v2819
      %v2821 = vlaneseq
      %v2822 = vshrl.u32 %v2821, 7
      %v2823 = vsub.s32 %v2820, %v2822
      %v2824 = vrot.slane %v2810, %v2823
      %v2825 = vcombine.high %v2801, 0.0
      %v2826 = vcombine.high %v2808, 0.0
      %v2827 = vcombine.high %v2817, 0.0
      %v2828 = vcombine.high %v2824, 0.0
      %v2829 = vcombine.low %v2315, %v2379
      %v2830 = vcombine.high %v2315, %v2379
      %v2832 = vunpack.c.l.s4 1983009808
      %v2833 = vunpack.c.0.s8 %v2832
      %v2834 = vlaneseq
      %v2835 = vshrl.u32 %v2834, 7
      %v2836 = vsub.s32 %v2833, %v2835
      %v2837 = vrot.slane %v2829, %v2836
      %v2839 = vunpack.c.l.s4 1983009808
      %v2840 = vunpack.c.0.s8 %v2839
      %v2841 = vlaneseq
      %v2842 = vshrl.u32 %v2841, 7
      %v2843 = vsub.s32 %v2840, %v2842
      %v2844 = vrot.slane %v2830, %v2843
      %v2845 = vcombine.low %v2347, %v2411
      %v2846 = vcombine.high %v2347, %v2411
      %v2848 = vunpack.c.l.s4 1983009808
      %v2849 = vunpack.c.0.s8 %v2848
      %v2850 = vlaneseq
      %v2851 = vshrl.u32 %v2850, 7
      %v2852 = vsub.s32 %v2849, %v2851
      %v2853 = vrot.slane %v2845, %v2852
      %v2855 = vunpack.c.l.s4 1983009808
      %v2856 = vunpack.c.0.s8 %v2855
      %v2857 = vlaneseq
      %v2858 = vshrl.u32 %v2857, 7
      %v2859 = vsub.s32 %v2856, %v2858
      %v2860 = vrot.slane %v2846, %v2859
      %v2861 = vcombine.low %v2837, %v2853
      %v2862 = vcombine.high %v2837, %v2853
      %v2864 = vunpack.c.l.s4 1934713408
      %v2865 = vunpack.c.0.s8 %v2864
      %v2866 = vlaneseq
      %v2867 = vshrl.u32 %v2866, 7
      %v2868 = vsub.s32 %v2865, %v2867
      %v2869 = vrot.slane %v2861, %v2868
      %v2871 = vunpack.c.l.s4 1934713408
      %v2872 = vunpack.c.0.s8 %v2871
      %v2873 = vlaneseq
      %v2874 = vshrl.u32 %v2873, 7
      %v2875 = vsub.s32 %v2872, %v2874
      %v2876 = vrot.slane %v2862, %v2875
      %v2877 = vcombine.low %v2844, %v2860
      %v2878 = vcombine.high %v2844, %v2860
      %v2880 = vunpack.c.l.s4 1934713408
      %v2881 = vunpack.c.0.s8 %v2880
      %v2882 = vlaneseq
      %v2883 = vshrl.u32 %v2882, 7
      %v2884 = vsub.s32 %v2881, %v2883
      %v2885 = vrot.slane %v2877, %v2884
      %v2887 = vunpack.c.l.s4 1934713408
      %v2888 = vunpack.c.0.s8 %v2887
      %v2889 = vlaneseq
      %v2890 = vshrl.u32 %v2889, 7
      %v2891 = vsub.s32 %v2888, %v2890
      %v2892 = vrot.slane %v2878, %v2891
      %v2893 = vcombine.high %v2869, 0.0
      %v2894 = vcombine.high %v2876, 0.0
      %v2895 = vcombine.high %v2885, 0.0
      %v2896 = vcombine.high %v2892, 0.0
      %v2897 = vcombine.low %v2316, %v2380
      %v2898 = vcombine.high %v2316, %v2380
      %v2900 = vunpack.c.l.s4 1983009808
      %v2901 = vunpack.c.0.s8 %v2900
      %v2902 = vlaneseq
      %v2903 = vshrl.u32 %v2902, 7
      %v2904 = vsub.s32 %v2901, %v2903
      %v2905 = vrot.slane %v2897, %v2904
      %v2907 = vunpack.c.l.s4 1983009808
      %v2908 = vunpack.c.0.s8 %v2907
      %v2909 = vlaneseq
      %v2910 = vshrl.u32 %v2909, 7
      %v2911 = vsub.s32 %v2908, %v2910
      %v2912 = vrot.slane %v2898, %v2911
      %v2913 = vcombine.low %v2348, %v2412
      %v2914 = vcombine.high %v2348, %v2412
      %v2916 = vunpack.c.l.s4 1983009808
      %v2917 = vunpack.c.0.s8 %v2916
      %v2918 = vlaneseq
      %v2919 = vshrl.u32 %v2918, 7
      %v2920 = vsub.s32 %v2917, %v2919
      %v2921 = vrot.slane %v2913, %v2920
      %v2923 = vunpack.c.l.s4 1983009808
      %v2924 = vunpack.c.0.s8 %v2923
      %v2925 = vlaneseq
      %v2926 = vshrl.u32 %v2925, 7
      %v2927 = vsub.s32 %v2924, %v2926
      %v2928 = vrot.slane %v2914, %v2927
      %v2929 = vcombine.low %v2905, %v2921
      %v2930 = vcombine.high %v2905, %v2921
      %v2932 = vunpack.c.l.s4 1934713408
      %v2933 = vunpack.c.0.s8 %v2932
      %v2934 = vlaneseq
      %v2935 = vshrl.u32 %v2934, 7
      %v2936 = vsub.s32 %v2933, %v2935
      %v2937 = vrot.slane %v2929, %v2936
      %v2939 = vunpack.c.l.s4 1934713408
      %v2940 = vunpack.c.0.s8 %v2939
      %v2941 = vlaneseq
      %v2942 = vshrl.u32 %v2941, 7
      %v2943 = vsub.s32 %v2940, %v2942
      %v2944 = vrot.slane %v2930, %v2943
      %v2945 = vcombine.low %v2912, %v2928
      %v2946 = vcombine.high %v2912, %v2928
      %v2948 = vunpack.c.l.s4 1934713408
      %v2949 = vunpack.c.0.s8 %v2948
      %v2950 = vlaneseq
      %v2951 = vshrl.u32 %v2950, 7
      %v2952 = vsub.s32 %v2949, %v2951
      %v2953 = vrot.slane %v2945, %v2952
      %v2955 = vunpack.c.l.s4 1934713408
      %v2956 = vunpack.c.0.s8 %v2955
      %v2957 = vlaneseq
      %v2958 = vshrl.u32 %v2957, 7
      %v2959 = vsub.s32 %v2956, %v2958
      %v2960 = vrot.slane %v2946, %v2959
      %v2961 = vcombine.high %v2937, 0.0
      %v2962 = vcombine.high %v2944, 0.0
      %v2963 = vcombine.high %v2953, 0.0
      %v2964 = vcombine.high %v2960, 0.0
      %v2965 = vcombine.low %v2461, %v2468
      %v2967 = vunpack.c.l.s4 1983009808
      %v2968 = vunpack.c.0.s8 %v2967
      %v2969 = vlaneseq
      %v2970 = vshrl.u32 %v2969, 7
      %v2971 = vsub.s32 %v2968, %v2970
      %v2972 = vrot.slane %v2965, %v2971
      %v2973 = vcombine.low %v2485, %v2486
      %v2975 = vunpack.c.l.s4 1983009808
      %v2976 = vunpack.c.0.s8 %v2975
      %v2977 = vlaneseq
      %v2978 = vshrl.u32 %v2977, 7
      %v2979 = vsub.s32 %v2976, %v2978
      %v2980 = vrot.slane %v2973, %v2979
      %v2981 = vcombine.low %v2477, %v2484
      %v2983 = vunpack.c.l.s4 1983009808
      %v2984 = vunpack.c.0.s8 %v2983
      %v2985 = vlaneseq
      %v2986 = vshrl.u32 %v2985, 7
      %v2987 = vsub.s32 %v2984, %v2986
      %v2988 = vrot.slane %v2981, %v2987
      %v2989 = vcombine.low %v2487, %v2488
      %v2991 = vunpack.c.l.s4 1983009808
      %v2992 = vunpack.c.0.s8 %v2991
      %v2993 = vlaneseq
      %v2994 = vshrl.u32 %v2993, 7
      %v2995 = vsub.s32 %v2992, %v2994
      %v2996 = vrot.slane %v2989, %v2995
      %v2997 = vcombine.low %v2972, %v2980
      %v2998 = vcombine.high %v2972, %v2980
      %v3000 = vunpack.c.l.s4 1934713408
      %v3001 = vunpack.c.0.s8 %v3000
      %v3002 = vlaneseq
      %v3003 = vshrl.u32 %v3002, 7
      %v3004 = vsub.s32 %v3001, %v3003
      %v3005 = vrot.slane %v2997, %v3004
      %v3007 = vunpack.c.l.s4 1934713408
      %v3008 = vunpack.c.0.s8 %v3007
      %v3009 = vlaneseq
      %v3010 = vshrl.u32 %v3009, 7
      %v3011 = vsub.s32 %v3008, %v3010
      %v3012 = vrot.slane %v2998, %v3011
      %v3013 = vcombine.low %v2988, %v2996
      %v3014 = vcombine.high %v2988, %v2996
      %v3016 = vunpack.c.l.s4 1934713408
      %v3017 = vunpack.c.0.s8 %v3016
      %v3018 = vlaneseq
      %v3019 = vshrl.u32 %v3018, 7
      %v3020 = vsub.s32 %v3017, %v3019
      %v3021 = vrot.slane %v3013, %v3020
      %v3023 = vunpack.c.l.s4 1934713408
      %v3024 = vunpack.c.0.s8 %v3023
      %v3025 = vlaneseq
      %v3026 = vshrl.u32 %v3025, 7
      %v3027 = vsub.s32 %v3024, %v3026
      %v3028 = vrot.slane %v3014, %v3027
      %v3029 = vcombine.low %v3005, %v3021
      %v3030 = vcombine.high %v3005, %v3021
      %v3031 = vcombine.low %v3012, %v3028
      %v3032 = vcombine.high %v3012, %v3028
      %v3033 = vcombine.low %v2529, %v2536
      %v3035 = vunpack.c.l.s4 1983009808
      %v3036 = vunpack.c.0.s8 %v3035
      %v3037 = vlaneseq
      %v3038 = vshrl.u32 %v3037, 7
      %v3039 = vsub.s32 %v3036, %v3038
      %v3040 = vrot.slane %v3033, %v3039
      %v3041 = vcombine.low %v2553, %v2554
      %v3043 = vunpack.c.l.s4 1983009808
      %v3044 = vunpack.c.0.s8 %v3043
      %v3045 = vlaneseq
      %v3046 = vshrl.u32 %v3045, 7
      %v3047 = vsub.s32 %v3044, %v3046
      %v3048 = vrot.slane %v3041, %v3047
      %v3049 = vcombine.low %v2545, %v2552
      %v3051 = vunpack.c.l.s4 1983009808
      %v3052 = vunpack.c.0.s8 %v3051
      %v3053 = vlaneseq
      %v3054 = vshrl.u32 %v3053, 7
      %v3055 = vsub.s32 %v3052, %v3054
      %v3056 = vrot.slane %v3049, %v3055
      %v3057 = vcombine.low %v2555, %v2556
      %v3059 = vunpack.c.l.s4 1983009808
      %v3060 = vunpack.c.0.s8 %v3059
      %v3061 = vlaneseq
      %v3062 = vshrl.u32 %v3061, 7
      %v3063 = vsub.s32 %v3060, %v3062
      %v3064 = vrot.slane %v3057, %v3063
      %v3065 = vcombine.low %v3040, %v3048
      %v3066 = vcombine.high %v3040, %v3048
      %v3068 = vunpack.c.l.s4 1934713408
      %v3069 = vunpack.c.0.s8 %v3068
      %v3070 = vlaneseq
      %v3071 = vshrl.u32 %v3070, 7
      %v3072 = vsub.s32 %v3069, %v3071
      %v3073 = vrot.slane %v3065, %v3072
      %v3075 = vunpack.c.l.s4 1934713408
      %v3076 = vunpack.c.0.s8 %v3075
      %v3077 = vlaneseq
      %v3078 = vshrl.u32 %v3077, 7
      %v3079 = vsub.s32 %v3076, %v3078
      %v3080 = vrot.slane %v3066, %v3079
      %v3081 = vcombine.low %v3056, %v3064
      %v3082 = vcombine.high %v3056, %v3064
      %v3084 = vunpack.c.l.s4 1934713408
      %v3085 = vunpack.c.0.s8 %v3084
      %v3086 = vlaneseq
      %v3087 = vshrl.u32 %v3086, 7
      %v3088 = vsub.s32 %v3085, %v3087
      %v3089 = vrot.slane %v3081, %v3088
      %v3091 = vunpack.c.l.s4 1934713408
      %v3092 = vunpack.c.0.s8 %v3091
      %v3093 = vlaneseq
      %v3094 = vshrl.u32 %v3093, 7
      %v3095 = vsub.s32 %v3092, %v3094
      %v3096 = vrot.slane %v3082, %v3095
      %v3097 = vcombine.low %v3073, %v3089
      %v3098 = vcombine.high %v3073, %v3089
      %v3099 = vcombine.low %v3080, %v3096
      %v3100 = vcombine.high %v3080, %v3096
      %v3101 = vcombine.low %v2597, %v2604
      %v3103 = vunpack.c.l.s4 1983009808
      %v3104 = vunpack.c.0.s8 %v3103
      %v3105 = vlaneseq
      %v3106 = vshrl.u32 %v3105, 7
      %v3107 = vsub.s32 %v3104, %v3106
      %v3108 = vrot.slane %v3101, %v3107
      %v3109 = vcombine.low %v2621, %v2622
      %v3111 = vunpack.c.l.s4 1983009808
      %v3112 = vunpack.c.0.s8 %v3111
      %v3113 = vlaneseq
      %v3114 = vshrl.u32 %v3113, 7
      %v3115 = vsub.s32 %v3112, %v3114
      %v3116 = vrot.slane %v3109, %v3115
      %v3117 = vcombine.low %v2613, %v2620
      %v3119 = vunpack.c.l.s4 1983009808
      %v3120 = vunpack.c.0.s8 %v3119
      %v3121 = vlaneseq
      %v3122 = vshrl.u32 %v3121, 7
      %v3123 = vsub.s32 %v3120, %v3122
      %v3124 = vrot.slane %v3117, %v3123
      %v3125 = vcombine.low %v2623, %v2624
      %v3127 = vunpack.c.l.s4 1983009808
      %v3128 = vunpack.c.0.s8 %v3127
      %v3129 = vlaneseq
      %v3130 = vshrl.u32 %v3129, 7
      %v3131 = vsub.s32 %v3128, %v3130
      %v3132 = vrot.slane %v3125, %v3131
      %v3133 = vcombine.low %v3108, %v3116
      %v3134 = vcombine.high %v3108, %v3116
      %v3136 = vunpack.c.l.s4 1934713408
      %v3137 = vunpack.c.0.s8 %v3136
      %v3138 = vlaneseq
      %v3139 = vshrl.u32 %v3138, 7
      %v3140 = vsub.s32 %v3137, %v3139
      %v3141 = vrot.slane %v3133, %v3140
      %v3143 = vunpack.c.l.s4 1934713408
      %v3144 = vunpack.c.0.s8 %v3143
      %v3145 = vlaneseq
      %v3146 = vshrl.u32 %v3145, 7
      %v3147 = vsub.s32 %v3144, %v3146
      %v3148 = vrot.slane %v3134, %v3147
      %v3149 = vcombine.low %v3124, %v3132
      %v3150 = vcombine.high %v3124, %v3132
      %v3152 = vunpack.c.l.s4 1934713408
      %v3153 = vunpack.c.0.s8 %v3152
      %v3154 = vlaneseq
      %v3155 = vshrl.u32 %v3154, 7
      %v3156 = vsub.s32 %v3153, %v3155
      %v3157 = vrot.slane %v3149, %v3156
      %v3159 = vunpack.c.l.s4 1934713408
      %v3160 = vunpack.c.0.s8 %v3159
      %v3161 = vlaneseq
      %v3162 = vshrl.u32 %v3161, 7
      %v3163 = vsub.s32 %v3160, %v3162
      %v3164 = vrot.slane %v3150, %v3163
      %v3165 = vcombine.low %v3141, %v3157
      %v3166 = vcombine.high %v3141, %v3157
      %v3167 = vcombine.low %v3148, %v3164
      %v3168 = vcombine.high %v3148, %v3164
      %v3169 = vcombine.low %v2665, %v2672
      %v3171 = vunpack.c.l.s4 1983009808
      %v3172 = vunpack.c.0.s8 %v3171
      %v3173 = vlaneseq
      %v3174 = vshrl.u32 %v3173, 7
      %v3175 = vsub.s32 %v3172, %v3174
      %v3176 = vrot.slane %v3169, %v3175
      %v3177 = vcombine.low %v2689, %v2690
      %v3179 = vunpack.c.l.s4 1983009808
      %v3180 = vunpack.c.0.s8 %v3179
      %v3181 = vlaneseq
      %v3182 = vshrl.u32 %v3181, 7
      %v3183 = vsub.s32 %v3180, %v3182
      %v3184 = vrot.slane %v3177, %v3183
      %v3185 = vcombine.low %v2681, %v2688
      %v3187 = vunpack.c.l.s4 1983009808
      %v3188 = vunpack.c.0.s8 %v3187
      %v3189 = vlaneseq
      %v3190 = vshrl.u32 %v3189, 7
      %v3191 = vsub.s32 %v3188, %v3190
      %v3192 = vrot.slane %v3185, %v3191
      %v3193 = vcombine.low %v2691, %v2692
      %v3195 = vunpack.c.l.s4 1983009808
      %v3196 = vunpack.c.0.s8 %v3195
      %v3197 = vlaneseq
      %v3198 = vshrl.u32 %v3197, 7
      %v3199 = vsub.s32 %v3196, %v3198
      %v3200 = vrot.slane %v3193, %v3199
      %v3201 = vcombine.low %v3176, %v3184
      %v3202 = vcombine.high %v3176, %v3184
      %v3204 = vunpack.c.l.s4 1934713408
      %v3205 = vunpack.c.0.s8 %v3204
      %v3206 = vlaneseq
      %v3207 = vshrl.u32 %v3206, 7
      %v3208 = vsub.s32 %v3205, %v3207
      %v3209 = vrot.slane %v3201, %v3208
      %v3211 = vunpack.c.l.s4 1934713408
      %v3212 = vunpack.c.0.s8 %v3211
      %v3213 = vlaneseq
      %v3214 = vshrl.u32 %v3213, 7
      %v3215 = vsub.s32 %v3212, %v3214
      %v3216 = vrot.slane %v3202, %v3215
      %v3217 = vcombine.low %v3192, %v3200
      %v3218 = vcombine.high %v3192, %v3200
      %v3220 = vunpack.c.l.s4 1934713408
      %v3221 = vunpack.c.0.s8 %v3220
      %v3222 = vlaneseq
      %v3223 = vshrl.u32 %v3222, 7
      %v3224 = vsub.s32 %v3221, %v3223
      %v3225 = vrot.slane %v3217, %v3224
      %v3227 = vunpack.c.l.s4 1934713408
      %v3228 = vunpack.c.0.s8 %v3227
      %v3229 = vlaneseq
      %v3230 = vshrl.u32 %v3229, 7
      %v3231 = vsub.s32 %v3228, %v3230
      %v3232 = vrot.slane %v3218, %v3231
      %v3233 = vcombine.low %v3209, %v3225
      %v3234 = vcombine.high %v3209, %v3225
      %v3235 = vcombine.low %v3216, %v3232
      %v3236 = vcombine.high %v3216, %v3232
      %v3237 = vcombine.low %v2733, %v2740
      %v3239 = vunpack.c.l.s4 1983009808
      %v3240 = vunpack.c.0.s8 %v3239
      %v3241 = vlaneseq
      %v3242 = vshrl.u32 %v3241, 7
      %v3243 = vsub.s32 %v3240, %v3242
      %v3244 = vrot.slane %v3237, %v3243
      %v3245 = vcombine.low %v2757, %v2758
      %v3247 = vunpack.c.l.s4 1983009808
      %v3248 = vunpack.c.0.s8 %v3247
      %v3249 = vlaneseq
      %v3250 = vshrl.u32 %v3249, 7
      %v3251 = vsub.s32 %v3248, %v3250
      %v3252 = vrot.slane %v3245, %v3251
      %v3253 = vcombine.low %v2749, %v2756
      %v3255 = vunpack.c.l.s4 1983009808
      %v3256 = vunpack.c.0.s8 %v3255
      %v3257 = vlaneseq
      %v3258 = vshrl.u32 %v3257, 7
      %v3259 = vsub.s32 %v3256, %v3258
      %v3260 = vrot.slane %v3253, %v3259
      %v3261 = vcombine.low %v2759, %v2760
      %v3263 = vunpack.c.l.s4 1983009808
      %v3264 = vunpack.c.0.s8 %v3263
      %v3265 = vlaneseq
      %v3266 = vshrl.u32 %v3265, 7
      %v3267 = vsub.s32 %v3264, %v3266
      %v3268 = vrot.slane %v3261, %v3267
      %v3269 = vcombine.low %v3244, %v3252
      %v3270 = vcombine.high %v3244, %v3252
      %v3272 = vunpack.c.l.s4 1934713408
      %v3273 = vunpack.c.0.s8 %v3272
      %v3274 = vlaneseq
      %v3275 = vshrl.u32 %v3274, 7
      %v3276 = vsub.s32 %v3273, %v3275
      %v3277 = vrot.slane %v3269, %v3276
      %v3279 = vunpack.c.l.s4 1934713408
      %v3280 = vunpack.c.0.s8 %v3279
      %v3281 = vlaneseq
      %v3282 = vshrl.u32 %v3281, 7
      %v3283 = vsub.s32 %v3280, %v3282
      %v3284 = vrot.slane %v3270, %v3283
      %v3285 = vcombine.low %v3260, %v3268
      %v3286 = vcombine.high %v3260, %v3268
      %v3288 = vunpack.c.l.s4 1934713408
      %v3289 = vunpack.c.0.s8 %v3288
      %v3290 = vlaneseq
      %v3291 = vshrl.u32 %v3290, 7
      %v3292 = vsub.s32 %v3289, %v3291
      %v3293 = vrot.slane %v3285, %v3292
      %v3295 = vunpack.c.l.s4 1934713408
      %v3296 = vunpack.c.0.s8 %v3295
      %v3297 = vlaneseq
      %v3298 = vshrl.u32 %v3297, 7
      %v3299 = vsub.s32 %v3296, %v3298
      %v3300 = vrot.slane %v3286, %v3299
      %v3301 = vcombine.low %v3277, %v3293
      %v3302 = vcombine.high %v3277, %v3293
      %v3303 = vcombine.low %v3284, %v3300
      %v3304 = vcombine.high %v3284, %v3300
      %v3305 = vcombine.low %v2801, %v2808
      %v3307 = vunpack.c.l.s4 1983009808
      %v3308 = vunpack.c.0.s8 %v3307
      %v3309 = vlaneseq
      %v3310 = vshrl.u32 %v3309, 7
      %v3311 = vsub.s32 %v3308, %v3310
      %v3312 = vrot.slane %v3305, %v3311
      %v3313 = vcombine.low %v2825, %v2826
      %v3315 = vunpack.c.l.s4 1983009808
      %v3316 = vunpack.c.0.s8 %v3315
      %v3317 = vlaneseq
      %v3318 = vshrl.u32 %v3317, 7
      %v3319 = vsub.s32 %v3316, %v3318
      %v3320 = vrot.slane %v3313, %v3319
      %v3321 = vcombine.low %v2817, %v2824
      %v3323 = vunpack.c.l.s4 1983009808
      %v3324 = vunpack.c.0.s8 %v3323
      %v3325 = vlaneseq
      %v3326 = vshrl.u32 %v3325, 7
      %v3327 = vsub.s32 %v3324, %v3326
      %v3328 = vrot.slane %v3321, %v3327
      %v3329 = vcombine.low %v2827, %v2828
      %v3331 = vunpack.c.l.s4 1983009808
      %v3332 = vunpack.c.0.s8 %v3331
      %v3333 = vlaneseq
      %v3334 = vshrl.u32 %v3333, 7
      %v3335 = vsub.s32 %v3332, %v3334
      %v3336 = vrot.slane %v3329, %v3335
      %v3337 = vcombine.low %v3312, %v3320
      %v3338 = vcombine.high %v3312, %v3320
      %v3340 = vunpack.c.l.s4 1934713408
      %v3341 = vunpack.c.0.s8 %v3340
      %v3342 = vlaneseq
      %v3343 = vshrl.u32 %v3342, 7
      %v3344 = vsub.s32 %v3341, %v3343
      %v3345 = vrot.slane %v3337, %v3344
      %v3347 = vunpack.c.l.s4 1934713408
      %v3348 = vunpack.c.0.s8 %v3347
      %v3349 = vlaneseq
      %v3350 = vshrl.u32 %v3349, 7
      %v3351 = vsub.s32 %v3348, %v3350
      %v3352 = vrot.slane %v3338, %v3351
      %v3353 = vcombine.low %v3328, %v3336
      %v3354 = vcombine.high %v3328, %v3336
      %v3356 = vunpack.c.l.s4 1934713408
      %v3357 = vunpack.c.0.s8 %v3356
      %v3358 = vlaneseq
      %v3359 = vshrl.u32 %v3358, 7
      %v3360 = vsub.s32 %v3357, %v3359
      %v3361 = vrot.slane %v3353, %v3360
      %v3363 = vunpack.c.l.s4 1934713408
      %v3364 = vunpack.c.0.s8 %v3363
      %v3365 = vlaneseq
      %v3366 = vshrl.u32 %v3365, 7
      %v3367 = vsub.s32 %v3364, %v3366
      %v3368 = vrot.slane %v3354, %v3367
      %v3369 = vcombine.low %v3345, %v3361
      %v3370 = vcombine.high %v3345, %v3361
      %v3371 = vcombine.low %v3352, %v3368
      %v3372 = vcombine.high %v3352, %v3368
      %v3373 = vcombine.low %v2869, %v2876
      %v3375 = vunpack.c.l.s4 1983009808
      %v3376 = vunpack.c.0.s8 %v3375
      %v3377 = vlaneseq
      %v3378 = vshrl.u32 %v3377, 7
      %v3379 = vsub.s32 %v3376, %v3378
      %v3380 = vrot.slane %v3373, %v3379
      %v3381 = vcombine.low %v2893, %v2894
      %v3383 = vunpack.c.l.s4 1983009808
      %v3384 = vunpack.c.0.s8 %v3383
      %v3385 = vlaneseq
      %v3386 = vshrl.u32 %v3385, 7
      %v3387 = vsub.s32 %v3384, %v3386
      %v3388 = vrot.slane %v3381, %v3387
      %v3389 = vcombine.low %v2885, %v2892
      %v3391 = vunpack.c.l.s4 1983009808
      %v3392 = vunpack.c.0.s8 %v3391
      %v3393 = vlaneseq
      %v3394 = vshrl.u32 %v3393, 7
      %v3395 = vsub.s32 %v3392, %v3394
      %v3396 = vrot.slane %v3389, %v3395
      %v3397 = vcombine.low %v2895, %v2896
      %v3399 = vunpack.c.l.s4 1983009808
      %v3400 = vunpack.c.0.s8 %v3399
      %v3401 = vlaneseq
      %v3402 = vshrl.u32 %v3401, 7
      %v3403 = vsub.s32 %v3400, %v3402
      %v3404 = vrot.slane %v3397, %v3403
      %v3405 = vcombine.low %v3380, %v3388
      %v3406 = vcombine.high %v3380, %v3388
      %v3408 = vunpack.c.l.s4 1934713408
      %v3409 = vunpack.c.0.s8 %v3408
      %v3410 = vlaneseq
      %v3411 = vshrl.u32 %v3410, 7
      %v3412 = vsub.s32 %v3409, %v3411
      %v3413 = vrot.slane %v3405, %v3412
      %v3415 = vunpack.c.l.s4 1934713408
      %v3416 = vunpack.c.0.s8 %v3415
      %v3417 = vlaneseq
      %v3418 = vshrl.u32 %v3417, 7
      %v3419 = vsub.s32 %v3416, %v3418
      %v3420 = vrot.slane %v3406, %v3419
      %v3421 = vcombine.low %v3396, %v3404
      %v3422 = vcombine.high %v3396, %v3404
      %v3424 = vunpack.c.l.s4 1934713408
      %v3425 = vunpack.c.0.s8 %v3424
      %v3426 = vlaneseq
      %v3427 = vshrl.u32 %v3426, 7
      %v3428 = vsub.s32 %v3425, %v3427
      %v3429 = vrot.slane %v3421, %v3428
      %v3431 = vunpack.c.l.s4 1934713408
      %v3432 = vunpack.c.0.s8 %v3431
      %v3433 = vlaneseq
      %v3434 = vshrl.u32 %v3433, 7
      %v3435 = vsub.s32 %v3432, %v3434
      %v3436 = vrot.slane %v3422, %v3435
      %v3437 = vcombine.low %v3413, %v3429
      %v3438 = vcombine.high %v3413, %v3429
      %v3439 = vcombine.low %v3420, %v3436
      %v3440 = vcombine.high %v3420, %v3436
      %v3441 = vcombine.low %v2937, %v2944
      %v3443 = vunpack.c.l.s4 1983009808
      %v3444 = vunpack.c.0.s8 %v3443
      %v3445 = vlaneseq
      %v3446 = vshrl.u32 %v3445, 7
      %v3447 = vsub.s32 %v3444, %v3446
      %v3448 = vrot.slane %v3441, %v3447
      %v3449 = vcombine.low %v2961, %v2962
      %v3451 = vunpack.c.l.s4 1983009808
      %v3452 = vunpack.c.0.s8 %v3451
      %v3453 = vlaneseq
      %v3454 = vshrl.u32 %v3453, 7
      %v3455 = vsub.s32 %v3452, %v3454
      %v3456 = vrot.slane %v3449, %v3455
      %v3457 = vcombine.low %v2953, %v2960
      %v3459 = vunpack.c.l.s4 1983009808
      %v3460 = vunpack.c.0.s8 %v3459
      %v3461 = vlaneseq
      %v3462 = vshrl.u32 %v3461, 7
      %v3463 = vsub.s32 %v3460, %v3462
      %v3464 = vrot.slane %v3457, %v3463
      %v3465 = vcombine.low %v2963, %v2964
      %v3467 = vunpack.c.l.s4 1983009808
      %v3468 = vunpack.c.0.s8 %v3467
      %v3469 = vlaneseq
      %v3470 = vshrl.u32 %v3469, 7
      %v3471 = vsub.s32 %v3468, %v3470
      %v3472 = vrot.slane %v3465, %v3471
      %v3473 = vcombine.low %v3448, %v3456
      %v3474 = vcombine.high %v3448, %v3456
      %v3476 = vunpack.c.l.s4 1934713408
      %v3477 = vunpack.c.0.s8 %v3476
      %v3478 = vlaneseq
      %v3479 = vshrl.u32 %v3478, 7
      %v3480 = vsub.s32 %v3477, %v3479
      %v3481 = vrot.slane %v3473, %v3480
      %v3483 = vunpack.c.l.s4 1934713408
      %v3484 = vunpack.c.0.s8 %v3483
      %v3485 = vlaneseq
      %v3486 = vshrl.u32 %v3485, 7
      %v3487 = vsub.s32 %v3484, %v3486
      %v3488 = vrot.slane %v3474, %v3487
      %v3489 = vcombine.low %v3464, %v3472
      %v3490 = vcombine.high %v3464, %v3472
      %v3492 = vunpack.c.l.s4 1934713408
      %v3493 = vunpack.c.0.s8 %v3492
      %v3494 = vlaneseq
      %v3495 = vshrl.u32 %v3494, 7
      %v3496 = vsub.s32 %v3493, %v3495
      %v3497 = vrot.slane %v3489, %v3496
      %v3499 = vunpack.c.l.s4 1934713408
      %v3500 = vunpack.c.0.s8 %v3499
      %v3501 = vlaneseq
      %v3502 = vshrl.u32 %v3501, 7
      %v3503 = vsub.s32 %v3500, %v3502
      %v3504 = vrot.slane %v3490, %v3503
      %v3505 = vcombine.low %v3481, %v3497
      %v3506 = vcombine.high %v3481, %v3497
      %v3507 = vcombine.low %v3488, %v3504
      %v3508 = vcombine.high %v3488, %v3504
      %3517 = vrot.lane.b32.xlu0 %v3030, 8
      %v3518 = vpop.permute.xlu0 %3517
      %3519 = vrot.lane.b32.xlu0 %v3098, 8
      %v3520 = vpop.permute.xlu0 %3519
      %3521 = vrot.lane.b32.xlu0 %v3166, 8
      %v3522 = vpop.permute.xlu0 %3521
      %3523 = vrot.lane.b32.xlu0 %v3234, 8
      %v3524 = vpop.permute.xlu0 %3523
      %3525 = vrot.lane.b32.xlu0 %v3302, 8
      %v3526 = vpop.permute.xlu0 %3525
      %3527 = vrot.lane.b32.xlu0 %v3370, 8
      %v3528 = vpop.permute.xlu0 %3527
      %3529 = vrot.lane.b32.xlu0 %v3438, 8
      %v3530 = vpop.permute.xlu0 %3529
      %3531 = vrot.lane.b32.xlu0 %v3506, 8
      %v3532 = vpop.permute.xlu0 %3531
      %3549 = vrot.lane.b32.xlu0 %v3031, 16
      %v3550 = vpop.permute.xlu0 %3549
      %3551 = vrot.lane.b32.xlu0 %v3099, 16
      %v3552 = vpop.permute.xlu0 %3551
      %3553 = vrot.lane.b32.xlu0 %v3167, 16
      %v3554 = vpop.permute.xlu0 %3553
      %3555 = vrot.lane.b32.xlu0 %v3235, 16
      %v3556 = vpop.permute.xlu0 %3555
      %3557 = vrot.lane.b32.xlu0 %v3303, 16
      %v3558 = vpop.permute.xlu0 %3557
      %3559 = vrot.lane.b32.xlu0 %v3371, 16
      %v3560 = vpop.permute.xlu0 %3559
      %3561 = vrot.lane.b32.xlu0 %v3439, 16
      %v3562 = vpop.permute.xlu0 %3561
      %3563 = vrot.lane.b32.xlu0 %v3507, 16
      %v3564 = vpop.permute.xlu0 %3563
      %3581 = vrot.lane.b32.xlu0 %v3032, 24
      %v3582 = vpop.permute.xlu0 %3581
      %3583 = vrot.lane.b32.xlu0 %v3100, 24
      %v3584 = vpop.permute.xlu0 %3583
      %3585 = vrot.lane.b32.xlu0 %v3168, 24
      %v3586 = vpop.permute.xlu0 %3585
      %3587 = vrot.lane.b32.xlu0 %v3236, 24
      %v3588 = vpop.permute.xlu0 %3587
      %3589 = vrot.lane.b32.xlu0 %v3304, 24
      %v3590 = vpop.permute.xlu0 %3589
      %3591 = vrot.lane.b32.xlu0 %v3372, 24
      %v3592 = vpop.permute.xlu0 %3591
      %3593 = vrot.lane.b32.xlu0 %v3440, 24
      %v3594 = vpop.permute.xlu0 %3593
      %3595 = vrot.lane.b32.xlu0 %v3508, 24
      %v3596 = vpop.permute.xlu0 %3595
      %v3605 = vsel %vm843, %v3029, %v3518
      %v3606 = vsel %vm843, %v3097, %v3520
      %v3607 = vsel %vm843, %v3165, %v3522
      %v3608 = vsel %vm843, %v3233, %v3524
      %v3609 = vsel %vm843, %v3301, %v3526
      %v3610 = vsel %vm843, %v3369, %v3528
      %v3611 = vsel %vm843, %v3437, %v3530
      %v3612 = vsel %vm843, %v3505, %v3532
      %vm3613 = vcmask 130048
      %v3614 = vsel %vm3613, %v3605, %v3550
      %v3615 = vsel %vm3613, %v3606, %v3552
      %v3616 = vsel %vm3613, %v3607, %v3554
      %v3617 = vsel %vm3613, %v3608, %v3556
      %v3618 = vsel %vm3613, %v3609, %v3558
      %v3619 = vsel %vm3613, %v3610, %v3560
      %v3620 = vsel %vm3613, %v3611, %v3562
      %v3621 = vsel %vm3613, %v3612, %v3564
      %vm3622 = vcmask 195584
      %v3623 = vsel %vm3622, %v3614, %v3582
      %v3624 = vsel %vm3622, %v3615, %v3584
      %v3625 = vsel %vm3622, %v3616, %v3586
      %v3626 = vsel %vm3622, %v3617, %v3588
      %v3627 = vsel %vm3622, %v3618, %v3590
      %v3628 = vsel %vm3622, %v3619, %v3592
      %v3629 = vsel %vm3622, %v3620, %v3594
      %v3630 = vsel %vm3622, %v3621, %v3596
      %v3631 = vld [vmem:[%s5] sm:$0xff]
      %v3632 = vld [vmem:[%s5 + $0x8] sm:$0xff]
      %v3633 = vld [vmem:[%s5 + $0x10] sm:$0xff]
      %v3634 = vld [vmem:[%s5 + $0x18] sm:$0xff]
      %v3635 = vld [vmem:[%s6] sm:$0x1]
      %v3637 = vlaneseq
      %v3638 = vshrl.u32 %v3637, 7
      %v3639 = vsub.s32 0, %v3638
      %v3640 = vrot.slane %v3635, %v3639
      %v3643 = vsel %vm289, %v3623, 0
      %v3646 = vsel %vm289, %v3624, 0
      %v3649 = vsel %vm289, %v3625, 0
      %v3652 = vsel %vm289, %v3626, 0
      %v3655 = vsel %vm289, %v3627, 0
      %v3658 = vsel %vm289, %v3628, 0
      %v3661 = vsel %vm289, %v3629, 0
      %v3664 = vsel %vm289, %v3630, 0
      %3666 = vmatprep.subr.mxu0 0.0
      %3667 = vmatpush1.msra.mxu0 0.0
      %3668 = vmatprep.subr.mxu0 0.0
      %3669 = vmatpush1.msra.mxu0 0.0
      %3670 = vmatprep.subr.mxu0 0.0
      %3671 = vmatpush1.msra.mxu0 0.0
      %3672 = vmatprep.subr.mxu0 0.0
      %3673 = vmatpush1.msra.mxu0 0.0
      %3674 = vmatprep.subr.mxu0 0.0
      %3675 = vmatpush1.msra.mxu0 0.0
      %3676 = vmatprep.subr.mxu0 0.0
      %3677 = vmatpush1.msra.mxu0 0.0
      %3678 = vmatprep.subr.mxu0 0.0
      %3679 = vmatpush1.msra.mxu0 0.0
      %3680 = vmatprep.subr.mxu0 0.0
      %3681 = vmatpush1.msra.mxu0 0.0
      %3682 = vmatprep.subr.mxu0 0.0
      %3683 = vmatpush1.msra.mxu0 0.0
      %3684 = vmatprep.subr.mxu0 0.0
      %3685 = vmatpush1.msra.mxu0 0.0
      %3686 = vmatprep.subr.mxu0 0.0
      %3687 = vmatpush1.msra.mxu0 0.0
      %3688 = vmatprep.subr.mxu0 0.0
      %3689 = vmatpush1.msra.mxu0 0.0
      %3690 = vmatprep.subr.mxu0 0.0
      %3691 = vmatpush1.msra.mxu0 %v3634
      %3692 = vmatprep.subr.mxu0 0.0
      %3693 = vmatpush1.msra.mxu0 %v3633
      %3694 = vmatprep.subr.mxu0 0.0
      %3695 = vmatpush1.msra.mxu0 %v3632
      %3696 = vmatprep.subr.mxu0 0.0
      %3697 = vmatpush1.msra.mxu0 %v3631
      %3698 = vmatprep.subr.mxu0 0.0
      %3699 = vmatpush2.msra.mxu0 0.0
      %3700 = vmatprep.subr.mxu0 0.0
      %3701 = vmatpush2.msra.mxu0 0.0
      %3702 = vmatprep.subr.mxu0 0.0
      %3703 = vmatpush2.msra.mxu0 0.0
      %3704 = vmatprep.subr.mxu0 0.0
      %3705 = vmatpush2.msra.mxu0 0.0
      %3706 = vmatprep.subr.mxu0 0.0
      %3707 = vmatpush2.msra.mxu0 0.0
      %3708 = vmatprep.subr.mxu0 0.0
      %3709 = vmatpush2.msra.mxu0 0.0
      %3710 = vmatprep.subr.mxu0 0.0
      %3711 = vmatpush2.msra.mxu0 0.0
      %3712 = vmatprep.subr.mxu0 0.0
      %3713 = vmatpush2.msra.mxu0 0.0
      %3714 = vmatprep.subr.mxu0 0.0
      %3715 = vmatpush2.msra.mxu0 0.0
      %3716 = vmatprep.subr.mxu0 0.0
      %3717 = vmatpush2.msra.mxu0 0.0
      %3718 = vmatprep.subr.mxu0 0.0
      %3719 = vmatpush2.msra.mxu0 0.0
      %3720 = vmatprep.subr.mxu0 0.0
      %3721 = vmatpush2.msra.mxu0 0.0
      %3722 = vmatprep.subr.mxu0 0.0
      %3723 = vmatpush2.msra.mxu0 0.0
      %3724 = vmatprep.subr.mxu0 0.0
      %3725 = vmatpush2.msra.mxu0 0.0
      %3726 = vmatprep.subr.mxu0 0.0
      %3727 = vmatpush2.msra.mxu0 0.0
      %3728 = vmatprep.subr.mxu0 0.0
      %3729 = vmatpush2.msra.mxu0 0.0
      %3730 = vmatprep.mubr.f32.mxu0 0.0
      %3731 = vmatmul.mubr.f32.gmra.mxu0 %v3643
      %v3732 = vpop.f32.mrf.mxu0
      %v3733 = vadd.f32 %v3640, %v3732
      %v3734 = vpop.f32.mrf.mxu0
      %3735 = vmatprep.mubr.f32.mxu0 0.0
      %3736 = vmatmul.mubr.f32.gmra.mxu0 %v3646
      %v3737 = vpop.f32.mrf.mxu0
      %v3738 = vadd.f32 %v3640, %v3737
      %v3739 = vpop.f32.mrf.mxu0
      %3740 = vmatprep.mubr.f32.mxu0 0.0
      %3741 = vmatmul.mubr.f32.gmra.mxu0 %v3649
      %v3742 = vpop.f32.mrf.mxu0
      %v3743 = vadd.f32 %v3640, %v3742
      %v3744 = vpop.f32.mrf.mxu0
      %3745 = vmatprep.mubr.f32.mxu0 0.0
      %3746 = vmatmul.mubr.f32.gmra.mxu0 %v3652
      %v3747 = vpop.f32.mrf.mxu0
      %v3748 = vadd.f32 %v3640, %v3747
      %v3749 = vpop.f32.mrf.mxu0
      %3750 = vmatprep.mubr.f32.mxu0 0.0
      %3751 = vmatmul.mubr.f32.gmra.mxu0 %v3655
      %v3752 = vpop.f32.mrf.mxu0
      %v3753 = vadd.f32 %v3640, %v3752
      %v3754 = vpop.f32.mrf.mxu0
      %3755 = vmatprep.mubr.f32.mxu0 0.0
      %3756 = vmatmul.mubr.f32.gmra.mxu0 %v3658
      %v3757 = vpop.f32.mrf.mxu0
      %v3758 = vadd.f32 %v3640, %v3757
      %v3759 = vpop.f32.mrf.mxu0
      %3760 = vmatprep.mubr.f32.mxu0 0.0
      %3761 = vmatmul.mubr.f32.gmra.mxu0 %v3661
      %v3762 = vpop.f32.mrf.mxu0
      %v3763 = vadd.f32 %v3640, %v3762
      %v3764 = vpop.f32.mrf.mxu0
      %3765 = vmatprep.mubr.f32.mxu0 0.0
      %3766 = vmatmul.mubr.f32.gmra.mxu0 %v3664
      %v3767 = vpop.f32.mrf.mxu0
      %v3768 = vadd.f32 %v3640, %v3767
      %v3769 = vpop.f32.mrf.mxu0
      %3770 = vdwg.mxu0
      %3771 = vst.msk [vmem:[%s278] sm:$0xff] %vm289, %v3733
      %3772 = vst.msk [vmem:[%s278 + $0x8] sm:$0xff] %vm289, %v3738
      %3773 = vst.msk [vmem:[%s278 + $0x10] sm:$0xff] %vm289, %v3743
      %3774 = vst.msk [vmem:[%s278 + $0x18] sm:$0xff] %vm289, %v3748
      %3775 = vst.msk [vmem:[%s278 + $0x20] sm:$0xff] %vm289, %v3753
      %3776 = vst.msk [vmem:[%s278 + $0x28] sm:$0xff] %vm289, %v3758
      %3777 = vst.msk [vmem:[%s278 + $0x30] sm:$0xff] %vm289, %v3763
      %3778 = vst.msk [vmem:[%s278 + $0x38] sm:$0xff] %vm289, %v3768
      %p3779 = scmp.lt.s32.totalorder %s18, 1
      %s3780 = scalar_select %p3779, %s18, 1
      %s3781 = smul.addr %s3780, 8
      %s3782 = smul.addr %s3781, 8
      %s3783 = scalar_lea.vmem %s7, %s3782
      // Predicated region
      $region49: #{tpu_custom_call.1} parent=47 // pred_check
        %p3784 = pneg %p188
      $region50: #{tpu_custom_call.1} parent=47 // pred_check_branch
        %3786 = sbr.rel (%p3784) target = $region52
      $region51: #{tpu_custom_call.1} parent=47 // pred_region
        _
      $region52: #{tpu_custom_call.1} parent=47 // pred_fallthru
        _
    $region48: #{tpu_custom_call.1} parent=5 // pred_fallthru
      _
    %p3787 = scmp.le.s32.totalorder 2, %s13
    // Predicated region
    $region53: #{tpu_custom_call.1} parent=5 // pred_check
      %p3788 = pneg %p3787
    $region54: #{tpu_custom_call.1} parent=5 // pred_check_branch
      %3790 = sbr.rel (%p3788) target = $region56
    $region55: #{tpu_custom_call.1} parent=5 // pred_region
      %s3791 = ssub.s32 %s13, 2
      // Predicated region
      $region57: #{tpu_custom_call.1} parent=55 // pred_check
        %p3792 = pneg %p194
      $region58: #{tpu_custom_call.1} parent=55 // pred_check_branch
        %3794 = sbr.rel (%p3792) target = $region60
      $region59: #{tpu_custom_call.1} parent=55 // pred_region
        %p3795 = scmp.lt.s32.totalorder %s19, 1
        %s3796 = scalar_select %p3795, %s19, 1
        %s3797 = smul.addr %s3796, 8
        %s3798 = smul.addr %s3797, 8
        %s3799 = scalar_lea.vmem %s7, %s3798
      $region60: #{tpu_custom_call.1} parent=55 // pred_fallthru
        _
    $region56: #{tpu_custom_call.1} parent=5 // pred_fallthru
      _
  $region6: #{tpu_custom_call.1} parent=0 // loop_footer
    %s17 = sadd.s32 1, %s13
  $region7: #{tpu_custom_call.1} parent=0 // loop_footer_branch
    %12 = sbr.rel target = $region3
  $region8: #{tpu_custom_call.1} parent=0 // loop_exit
    _

</llo_original>
